<compile_context>
chip_gen: v5e
topology: v5e:2x2
jax: 0.10.0
libtpu: 0.0.40
codegen_flags: <defaults>
</compile_context>

<pallas_src>
import functools
import math

import numpy as np

import jax
import jax.numpy as jnp
from jax.experimental import pallas as pl
from jax.experimental.pallas import tpu as pltpu


def _round_up(x, m):
    return -(-x // m) * m


def _vmem_limit_bytes():
    """~3/4 of physical VMEM: ~96 MiB on 128 MiB parts (v5e/v6e), ~48 MiB on v7x."""
    cap = 64 * 1024 * 1024
    try:
        info = pltpu.get_tpu_info()
        cap = int(getattr(info, "vmem_capacity_bytes", cap))
    except Exception:
        pass
    return max(32 * 1024 * 1024, (cap * 3) // 4)


def _choose_tiles(N, H, W, Cin, C1, vmem_limit):
    """Pick (NB, TO, Wp): images per grid step, output rows per step, 8-aligned row pitch."""
    Wp = _round_up(W + 4, 8)

    def step_bytes(nb, to):
        S = (to + 5) * Wp            # halo'd input slab rows per image
        L1 = (to + 2) * Wp           # conv1 outputs (incl. halo)
        L2 = to * Wp                 # conv2 outputs (pitch-Wp slab)
        blocks = 2 * nb * (S * Cin * 2 + to * Wp * C1 * 4)    # double-buffered in/out
        weights = 2 * (9 * Cin * C1 + 9 * C1 * C1) * 2 + 4 * C1 * 4
        # large value temporaries (xcat/acc1/z + zcat/acc2); static NB unroll may keep
        # them live, so scale by nb to stay conservative.
        temps = nb * (L1 * (9 * Cin * 2 + C1 * 6 + 4) + L2 * (9 * C1 * 2 + C1 * 4))
        return blocks + weights + temps

    budget = (vmem_limit * 3) // 5
    divisors = [t for t in range(1, H + 1) if H % t == 0]
    fitting = [t for t in divisors if step_bytes(1, t) <= budget] or [1]
    # prefer >= 4 total grid steps (>= 2 per TensorCore on v7x) when the shape allows it
    preferred = [t for t in fitting if N * (H // t) >= 4]
    TO = max(preferred) if preferred else max(fitting)

    NB = 1
    if TO * Wp <= 2048:              # tiny per-step work: batch images to amortize overhead
        for nb in range(1, N + 1):
            if N % nb == 0 and step_bytes(nb, TO) <= budget and (N // nb) * (H // TO) >= 4:
                NB = nb
    return NB, TO, Wp


# ---------------------------------------------------------------------------
# Fused ConvBlock kernel
# ---------------------------------------------------------------------------

def _conv_block_kernel(x_ref, w1_ref, b1_ref, w2_ref, b2_ref, o_ref, *, H, W, Wp, TO, NB):
    # x_ref  : (NB, 1, (TO+5)*Wp, Cin) bf16  flattened, halo'd, zero-padded input slabs
    #                                        (row pitch Wp = round_up(W+4, 8))
    # w1_ref : (9*Cin, C1) bf16   w2_ref: (9*C1, C1) bf16   (BN folded, tap-major rows)
    # b1_ref : (1, C1) f32        b2_ref: (1, C1) f32       (BN folded)
    # o_ref  : (NB, TO, Wp, C1) f32  pitch-Wp output slab (pad columns stripped outside)
    C1 = w1_ref.shape[1]
    L1 = (TO + 2) * Wp              # conv1 outputs incl. the 1-pixel halo conv2 needs
    L2 = TO * Wp - 4                # conv2 outputs (cols >= W are garbage, discarded)
    i = pl.program_id(1)

    # In-kernel validity mask: slab position (a, b) is image row i*TO - 1 + a, col b - 1.
    # Out-of-image positions are zeroed so they act as conv2's zero padding (and kill the
    # wrap-around garbage of the flattened slab).  Two iota compares on the VPU, no DMA.
    a_idx = jax.lax.broadcasted_iota(jnp.int32, (TO + 2, Wp, 1), 0)
    b_idx = jax.lax.broadcasted_iota(jnp.int32, (TO + 2, Wp, 1), 1)
    row = i * TO - 1 + a_idx
    col = b_idx - 1
    valid = (row >= 0) & (row < H) & (col >= 0) & (col < W)

    w1 = w1_ref[...]
    b1 = b1_ref[...]
    w2 = w2_ref[...]
    b2 = b2_ref[...]
    zeros4 = jnp.zeros((4, C1), jnp.float32)

    for b in range(NB):             # static unroll over the images blocked into this step
        xflat = x_ref[b, 0]         # ((TO+5)*Wp, Cin) bf16

        # conv1 + BN1 + ReLU: all 9 taps concatenated along K -> ONE MXU matmul (K = 9*Cin)
        xcat = jnp.concatenate(
            [xflat[dh * Wp + dw:dh * Wp + dw + L1, :]
             for dh in range(3) for dw in range(3)], axis=1)
        y1 = jnp.dot(xcat, w1, preferred_element_type=jnp.float32) + b1
        y1 = jnp.maximum(y1, 0.0)
        z = jnp.where(valid, y1.reshape(TO + 2, Wp, C1), 0.0)      # zero pad / garbage
        z = z.reshape(L1, C1).astype(jnp.bfloat16)

        # conv2 + BN2 + ReLU: ONE MXU matmul with K = 9*C1
        zcat = jnp.concatenate(
            [z[dh * Wp + dw:dh * Wp + dw + L2, :]
             for dh in range(3) for dw in range(3)], axis=1)
        y2 = jnp.dot(zcat, w2, preferred_element_type=jnp.float32) + b2
        y2 = jnp.maximum(y2, 0.0)

        # single aligned, contiguous store of the whole pitch-Wp output slab
        y2 = jnp.concatenate([y2, zeros4], axis=0)                 # -> (TO*Wp, C1)
        o_ref[b] = y2.reshape(TO, Wp, C1)


# ---------------------------------------------------------------------------
# Wrapper (layout glue only)
# ---------------------------------------------------------------------------

def conv_block_forward(x_nchw, params, *, single_buffer_weights=True):
    """ConvBlock forward.  x_nchw: (N, Cin, H, W) f32 -> (N, Cout, H, W) f32."""
    w1, b1, w2, b2 = params["w1"], params["b1"], params["w2"], params["b2"]
    C1 = w1.shape[-1]
    x = jnp.transpose(x_nchw, (0, 2, 3, 1))               # NCHW -> NHWC (channels on lanes)
    N, H, W, Cin = x.shape

    vmem_limit = _vmem_limit_bytes()
    NB, TO, Wp = _choose_tiles(N, H, W, Cin, C1, vmem_limit)
    n_tiles = H // TO
    S = (TO + 5) * Wp

    # Zero-pad (2 left/top for the two stacked 3x3 convs, plus 8-alignment padding on the
    # right / an extra halo row at the bottom), cast to bf16 BEFORE duplicating halo rows,
    # then cut into per-tile slabs and flatten rows*cols with pitch Wp.
    xpad = jnp.pad(x.astype(jnp.bfloat16), ((0, 0), (2, 3), (2, Wp - W - 2), (0, 0)))
    xtiles = jnp.stack([xpad[:, i * TO:i * TO + TO + 5] for i in range(n_tiles)], axis=1)
    xtiles = xtiles.reshape(N, n_tiles, S, Cin)
    # TODO(synk): a manual-DMA halo fetch (memory_space=pl.ANY + pltpu.make_async_copy)
    #             would avoid materializing this (TO+5)/TO-duplicated copy in HBM entirely.

    w1b = w1.reshape(9 * Cin, C1).astype(jnp.bfloat16)    # tap-major (dh, dw, cin) rows
    w2b = w2.reshape(9 * C1, C1).astype(jnp.bfloat16)
    b1r = b1.reshape(1, C1).astype(jnp.float32)
    b2r = b2.reshape(1, C1).astype(jnp.float32)

    def resident_spec(shape):
        # grid-invariant blocks (weights / biases): single-buffer them when allowed
        if single_buffer_weights:
            return pl.BlockSpec(shape, lambda n, i: (0,) * len(shape),
                                pipeline_mode=pl.Buffered(1))
        return pl.BlockSpec(shape, lambda n, i: (0,) * len(shape))

    out = pl.pallas_call(
        functools.partial(_conv_block_kernel, H=H, W=W, Wp=Wp, TO=TO, NB=NB),
        out_shape=jax.ShapeDtypeStruct((N, H, Wp, C1), jnp.float32),
        grid_spec=pltpu.PrefetchScalarGridSpec(
            num_scalar_prefetch=0,
            grid=(N // NB, n_tiles),
            in_specs=[
                pl.BlockSpec((NB, 1, S, Cin), lambda n, i: (n, i, 0, 0)),
                resident_spec((9 * Cin, C1)),
                resident_spec((1, C1)),
                resident_spec((9 * C1, C1)),
                resident_spec((1, C1)),
            ],
            out_specs=pl.BlockSpec((NB, TO, Wp, C1), lambda n, i: (n, i, 0, 0)),
        ),
        compiler_params=pltpu.CompilerParams(
            dimension_semantics=("parallel", "parallel"),
            vmem_limit_bytes=vmem_limit,
        ),
    )(xtiles, w1b, b1r, w2b, b2r)

    # strip the alignment/pad columns and return NCHW f32 to match the PyTorch module
    return jnp.transpose(out[:, :, :W, :], (0, 3, 1, 2))


# ---------------------------------------------------------------------------
# Parameters (deterministic) + pure-JAX reference
# ---------------------------------------------------------------------------

def _fold_bn(w, b, gamma, beta, mean=0.0, var=1.0, eps=1e-5):
    s = gamma / jnp.sqrt(var + eps)
    return w * s, (b - mean) * s + beta


def init_conv_block_params(key, in_channels, out_channels):
    k = jax.random.split(key, 8)

    def conv_w(kk, cin, cout):
        return jax.random.normal(kk, (3, 3, cin, cout), jnp.float32) / math.sqrt(9 * cin)

    w1 = conv_w(k[0], in_channels, out_channels)
    b1 = 0.05 * jax.random.normal(k[1], (out_channels,), jnp.float32)
    g1 = 1.0 + 0.1 * jax.random.normal(k[2], (out_channels,), jnp.float32)
    be1 = 0.1 * jax.random.normal(k[3], (out_channels,), jnp.float32)
    w2 = conv_w(k[4], out_channels, out_channels)
    b2 = 0.05 * jax.random.normal(k[5], (out_channels,), jnp.float32)
    g2 = 1.0 + 0.1 * jax.random.normal(k[6], (out_channels,), jnp.float32)
    be2 = 0.1 * jax.random.normal(k[7], (out_channels,), jnp.float32)

    w1f, b1f = _fold_bn(w1, b1, g1, be1)
    w2f, b2f = _fold_bn(w2, b2, g2, be2)
    return {"w1": w1f, "b1": b1f, "w2": w2f, "b2": b2f}


def _ref_conv_block(x_nchw, params):
    """Reference ConvBlock forward (XLA convs, same bf16-operand / f32-accumulate numerics)."""
    x = jnp.transpose(x_nchw, (0, 2, 3, 1)).astype(jnp.float32)
    xq = x.astype(jnp.bfloat16).astype(jnp.float32)
    w1q = params["w1"].astype(jnp.bfloat16).astype(jnp.float32)
    w2q = params["w2"].astype(jnp.bfloat16).astype(jnp.float32)
    dn = jax.lax.conv_dimension_numbers(x.shape, params["w1"].shape,
                                        ("NHWC", "HWIO", "NHWC"))
    y = jax.lax.conv_general_dilated(xq, w1q, (1, 1), "SAME",
                                     dimension_numbers=dn) + params["b1"]
    y = jnp.maximum(y, 0.0).astype(jnp.bfloat16).astype(jnp.float32)
    y = jax.lax.conv_general_dilated(y, w2q, (1, 1), "SAME",
                                     dimension_numbers=dn) + params["b2"]
    y = jnp.maximum(y, 0.0)
    return jnp.transpose(y, (0, 3, 1, 2))


if __name__ == "__main__":
    key = jax.random.PRNGKey(0)
    kx, kp = jax.random.split(key)

    N, Cin, H, W = 2, 4, 16, 16          # NCHW, like the PyTorch module
    Cout = 32
    x = jax.random.normal(kx, (N, Cin, H, W), jnp.float32)
    params = init_conv_block_params(kp, Cin, Cout)

    try:
        fwd = jax.jit(functools.partial(conv_block_forward, single_buffer_weights=True))
        out = fwd(x, params)
        jax.block_until_ready(out)
    except Exception:
        # pl.Buffered(1) single-buffering of the resident weights is a pure VMEM
        # optimization; fall back to default double-buffering if this jax/libtpu build
        # rejects it.
        fwd = jax.jit(functools.partial(conv_block_forward, single_buffer_weights=False))
        out = fwd(x, params)
        jax.block_until_ready(out)

    assert out.shape == (N, Cout, H, W) and out.dtype == jnp.float32
    ref = _ref_conv_block(x, params)
    err = float(jnp.max(jnp.abs(out - ref)))
    assert np.isfinite(err) and err < 2e-2, f"max abs error vs reference: {err}"
    print("KERNEL_OK")
</pallas_src>

<mosaic_0001>
module attributes {stable_mosaic.version = 11 : i64} {
  func.func @_conv_block_kernel(%arg0: i32, %arg1: i32, %arg2: memref<1x1x312x4xbf16, #tpu.memory_space<vmem>>, %arg3: memref<36x32xbf16, #tpu.memory_space<vmem>>, %arg4: memref<1x32xf32, #tpu.memory_space<vmem>>, %arg5: memref<288x32xbf16, #tpu.memory_space<vmem>>, %arg6: memref<1x32xf32, #tpu.memory_space<vmem>>, %arg7: memref<1x8x24x32xf32, #tpu.memory_space<vmem>>) attributes {dimension_semantics = [#tpu.dimension_semantics<parallel>, #tpu.dimension_semantics<parallel>], iteration_bounds = array<i64: 2, 2>, scalar_prefetch = 0 : i64, scratch_operands = 0 : i64, tpu.core_type = #tpu.core_type<tc>, window_params = [{transform_indices = @transform_0, window_bounds = array<i64: 1, 1, 312, 4>}, {pipeline_mode = #tpu.pipeline_mode<synchronous>, transform_indices = @transform_1, window_bounds = array<i64: 36, 32>}, {pipeline_mode = #tpu.pipeline_mode<synchronous>, transform_indices = @transform_2, window_bounds = array<i64: 1, 32>}, {pipeline_mode = #tpu.pipeline_mode<synchronous>, transform_indices = @transform_3, window_bounds = array<i64: 288, 32>}, {pipeline_mode = #tpu.pipeline_mode<synchronous>, transform_indices = @transform_4, window_bounds = array<i64: 1, 32>}, {transform_indices = @transform_5, window_bounds = array<i64: 1, 8, 24, 32>}]} {
    %0 = tpu.iota {dimensions = array<i32: 0>} : vector<10x24x1xi32>
    %1 = tpu.iota {dimensions = array<i32: 1>} : vector<10x24x1xi32>
    %c8_i32 = arith.constant 8 : i32
    %2 = arith.muli %arg1, %c8_i32 : i32
    %c1_i32 = arith.constant 1 : i32
    %3 = arith.subi %2, %c1_i32 : i32
    %4 = vector.broadcast %3 : i32 to vector<10x24x1xi32>
    %5 = arith.addi %4, %0 : vector<10x24x1xi32>
    %c1_i32_0 = arith.constant 1 : i32
    %6 = vector.broadcast %c1_i32_0 : i32 to vector<10x24x1xi32>
    %7 = arith.subi %1, %6 : vector<10x24x1xi32>
    %c0_i32 = arith.constant 0 : i32
    %8 = vector.broadcast %c0_i32 : i32 to vector<10x24x1xi32>
    %9 = arith.cmpi sge, %5, %8 : vector<10x24x1xi32>
    %c16_i32 = arith.constant 16 : i32
    %10 = vector.broadcast %c16_i32 : i32 to vector<10x24x1xi32>
    %11 = arith.cmpi slt, %5, %10 : vector<10x24x1xi32>
    %12 = arith.andi %9, %11 : vector<10x24x1xi1>
    %c0_i32_1 = arith.constant 0 : i32
    %13 = vector.broadcast %c0_i32_1 : i32 to vector<10x24x1xi32>
    %14 = arith.cmpi sge, %7, %13 : vector<10x24x1xi32>
    %15 = arith.andi %12, %14 : vector<10x24x1xi1>
    %c16_i32_2 = arith.constant 16 : i32
    %16 = vector.broadcast %c16_i32_2 : i32 to vector<10x24x1xi32>
    %17 = arith.cmpi slt, %7, %16 : vector<10x24x1xi32>
    %18 = arith.andi %15, %17 : vector<10x24x1xi1>
    %c0 = arith.constant 0 : index
    %c0_3 = arith.constant 0 : index
    %19 = vector.load %arg3[%c0, %c0_3] : memref<36x32xbf16, #tpu.memory_space<vmem>>, vector<36x32xbf16>
    %c0_4 = arith.constant 0 : index
    %c0_5 = arith.constant 0 : index
    %20 = vector.load %arg4[%c0_4, %c0_5] : memref<1x32xf32, #tpu.memory_space<vmem>>, vector<1x32xf32>
    %c0_6 = arith.constant 0 : index
    %c0_7 = arith.constant 0 : index
    %21 = vector.load %arg5[%c0_6, %c0_7] : memref<288x32xbf16, #tpu.memory_space<vmem>>, vector<288x32xbf16>
    %c0_8 = arith.constant 0 : index
    %c0_9 = arith.constant 0 : index
    %22 = vector.load %arg6[%c0_8, %c0_9] : memref<1x32xf32, #tpu.memory_space<vmem>>, vector<1x32xf32>
    %cst = arith.constant 0.000000e+00 : f32
    %23 = vector.broadcast %cst : f32 to vector<4x32xf32>
    %c0_10 = arith.constant 0 : index
    %c0_11 = arith.constant 0 : index
    %c0_12 = arith.constant 0 : index
    %c0_13 = arith.constant 0 : index
    %24 = vector.load %arg2[%c0_10, %c0_11, %c0_12, %c0_13] : memref<1x1x312x4xbf16, #tpu.memory_space<vmem>>, vector<1x1x312x4xbf16>
    %25 = vector.shape_cast %24 : vector<1x1x312x4xbf16> to vector<312x4xbf16>
    %26 = vector.extract_strided_slice %25 {offsets = [0, 0], sizes = [240, 4], strides = [1, 1]} : vector<312x4xbf16> to vector<240x4xbf16>
    %27 = vector.extract_strided_slice %25 {offsets = [1, 0], sizes = [240, 4], strides = [1, 1]} : vector<312x4xbf16> to vector<240x4xbf16>
    %28 = vector.extract_strided_slice %25 {offsets = [2, 0], sizes = [240, 4], strides = [1, 1]} : vector<312x4xbf16> to vector<240x4xbf16>
    %29 = vector.extract_strided_slice %25 {offsets = [24, 0], sizes = [240, 4], strides = [1, 1]} : vector<312x4xbf16> to vector<240x4xbf16>
    %30 = vector.extract_strided_slice %25 {offsets = [25, 0], sizes = [240, 4], strides = [1, 1]} : vector<312x4xbf16> to vector<240x4xbf16>
    %31 = vector.extract_strided_slice %25 {offsets = [26, 0], sizes = [240, 4], strides = [1, 1]} : vector<312x4xbf16> to vector<240x4xbf16>
    %32 = vector.extract_strided_slice %25 {offsets = [48, 0], sizes = [240, 4], strides = [1, 1]} : vector<312x4xbf16> to vector<240x4xbf16>
    %33 = vector.extract_strided_slice %25 {offsets = [49, 0], sizes = [240, 4], strides = [1, 1]} : vector<312x4xbf16> to vector<240x4xbf16>
    %34 = vector.extract_strided_slice %25 {offsets = [50, 0], sizes = [240, 4], strides = [1, 1]} : vector<312x4xbf16> to vector<240x4xbf16>
    %35 = tpu.concatenate %26, %27, %28, %29, %30, %31, %32, %33, %34 in 1 : vector<240x4xbf16>, vector<240x4xbf16>, vector<240x4xbf16>, vector<240x4xbf16>, vector<240x4xbf16>, vector<240x4xbf16>, vector<240x4xbf16>, vector<240x4xbf16>, vector<240x4xbf16> -> vector<240x36xbf16>
    %cst_14 = arith.constant dense<0.000000e+00> : vector<240x32xf32>
    %36 = tpu.matmul %35, %19, %cst_14 {dimension_numbers = #tpu.dot_dimension_numbers<[1], [0], [0], [1], [0, 0, 1, 1], [], []>} : vector<240x36xbf16>, vector<36x32xbf16>, vector<240x32xf32> -> vector<240x32xf32>
    %37 = vector.broadcast %20 : vector<1x32xf32> to vector<240x32xf32>
    %38 = arith.addf %36, %37 : vector<240x32xf32>
    %cst_15 = arith.constant 0.000000e+00 : f32
    %39 = vector.broadcast %cst_15 : f32 to vector<240x32xf32>
    %40 = arith.maximumf %38, %39 : vector<240x32xf32>
    %41 = vector.shape_cast %40 : vector<240x32xf32> to vector<10x24x32xf32>
    %cst_16 = arith.constant 0.000000e+00 : f32
    %42 = vector.shape_cast %18 : vector<10x24x1xi1> to vector<10x24x1xi1>
    %43 = vector.broadcast %42 : vector<10x24x1xi1> to vector<10x24x32xi1>
    %44 = vector.broadcast %cst_16 : f32 to vector<10x24x32xf32>
    %45 = arith.select %43, %41, %44 : vector<10x24x32xi1>, vector<10x24x32xf32>
    %46 = vector.shape_cast %45 : vector<10x24x32xf32> to vector<240x32xf32>
    %47 = arith.truncf %46 : vector<240x32xf32> to vector<240x32xbf16>
    %48 = vector.extract_strided_slice %47 {offsets = [0, 0], sizes = [188, 32], strides = [1, 1]} : vector<240x32xbf16> to vector<188x32xbf16>
    %49 = vector.extract_strided_slice %47 {offsets = [1, 0], sizes = [188, 32], strides = [1, 1]} : vector<240x32xbf16> to vector<188x32xbf16>
    %50 = vector.extract_strided_slice %47 {offsets = [2, 0], sizes = [188, 32], strides = [1, 1]} : vector<240x32xbf16> to vector<188x32xbf16>
    %51 = vector.extract_strided_slice %47 {offsets = [24, 0], sizes = [188, 32], strides = [1, 1]} : vector<240x32xbf16> to vector<188x32xbf16>
    %52 = vector.extract_strided_slice %47 {offsets = [25, 0], sizes = [188, 32], strides = [1, 1]} : vector<240x32xbf16> to vector<188x32xbf16>
    %53 = vector.extract_strided_slice %47 {offsets = [26, 0], sizes = [188, 32], strides = [1, 1]} : vector<240x32xbf16> to vector<188x32xbf16>
    %54 = vector.extract_strided_slice %47 {offsets = [48, 0], sizes = [188, 32], strides = [1, 1]} : vector<240x32xbf16> to vector<188x32xbf16>
    %55 = vector.extract_strided_slice %47 {offsets = [49, 0], sizes = [188, 32], strides = [1, 1]} : vector<240x32xbf16> to vector<188x32xbf16>
    %56 = vector.extract_strided_slice %47 {offsets = [50, 0], sizes = [188, 32], strides = [1, 1]} : vector<240x32xbf16> to vector<188x32xbf16>
    %57 = tpu.concatenate %48, %49, %50, %51, %52, %53, %54, %55, %56 in 1 : vector<188x32xbf16>, vector<188x32xbf16>, vector<188x32xbf16>, vector<188x32xbf16>, vector<188x32xbf16>, vector<188x32xbf16>, vector<188x32xbf16>, vector<188x32xbf16>, vector<188x32xbf16> -> vector<188x288xbf16>
    %cst_17 = arith.constant dense<0.000000e+00> : vector<188x32xf32>
    %58 = tpu.matmul %57, %21, %cst_17 {dimension_numbers = #tpu.dot_dimension_numbers<[1], [0], [0], [1], [0, 0, 1, 1], [], []>} : vector<188x288xbf16>, vector<288x32xbf16>, vector<188x32xf32> -> vector<188x32xf32>
    %59 = vector.broadcast %22 : vector<1x32xf32> to vector<188x32xf32>
    %60 = arith.addf %58, %59 : vector<188x32xf32>
    %cst_18 = arith.constant 0.000000e+00 : f32
    %61 = vector.broadcast %cst_18 : f32 to vector<188x32xf32>
    %62 = arith.maximumf %60, %61 : vector<188x32xf32>
    %63 = tpu.concatenate %62, %23 in 0 : vector<188x32xf32>, vector<4x32xf32> -> vector<192x32xf32>
    %64 = vector.shape_cast %63 : vector<192x32xf32> to vector<8x24x32xf32>
    %c0_19 = arith.constant 0 : index
    %c0_20 = arith.constant 0 : index
    %c0_21 = arith.constant 0 : index
    %c0_22 = arith.constant 0 : index
    %65 = vector.load %arg7[%c0_19, %c0_20, %c0_21, %c0_22] : memref<1x8x24x32xf32, #tpu.memory_space<vmem>>, vector<1x8x24x32xf32>
    %66 = vector.shape_cast %65 : vector<1x8x24x32xf32> to vector<8x24x32xf32>
    %67 = vector.shape_cast %64 : vector<8x24x32xf32> to vector<1x8x24x32xf32>
    tpu.vector_store %arg7[%c0_19, %c0_20, %c0_21, %c0_22], %67 {strides = array<i32>} : memref<1x8x24x32xf32, #tpu.memory_space<vmem>>, vector<1x8x24x32xf32>,
    return
  }
  func.func @transform_0(%arg0: i32, %arg1: i32) -> (i32, i32, i32, i32) {
    %c0_i32 = arith.constant 0 : i32
    %c0_i32_0 = arith.constant 0 : i32
    %c0_i32_1 = arith.constant 0 : i32
    return %arg0, %arg1, %c0_i32, %c0_i32_0 : i32, i32, i32, i32
  }
  func.func @transform_1(%arg0: i32, %arg1: i32) -> (i32, i32) {
    %c0_i32 = arith.constant 0 : i32
    %c0_i32_0 = arith.constant 0 : i32
    %c0_i32_1 = arith.constant 0 : i32
    return %c0_i32, %c0_i32_0 : i32, i32
  }
  func.func @transform_2(%arg0: i32, %arg1: i32) -> (i32, i32) {
    %c0_i32 = arith.constant 0 : i32
    %c0_i32_0 = arith.constant 0 : i32
    %c0_i32_1 = arith.constant 0 : i32
    return %c0_i32, %c0_i32_0 : i32, i32
  }
  func.func @transform_3(%arg0: i32, %arg1: i32) -> (i32, i32) {
    %c0_i32 = arith.constant 0 : i32
    %c0_i32_0 = arith.constant 0 : i32
    %c0_i32_1 = arith.constant 0 : i32
    return %c0_i32, %c0_i32_0 : i32, i32
  }
  func.func @transform_4(%arg0: i32, %arg1: i32) -> (i32, i32) {
    %c0_i32 = arith.constant 0 : i32
    %c0_i32_0 = arith.constant 0 : i32
    %c0_i32_1 = arith.constant 0 : i32
    return %c0_i32, %c0_i32_0 : i32, i32
  }
  func.func @transform_5(%arg0: i32, %arg1: i32) -> (i32, i32, i32, i32) {
    %c0_i32 = arith.constant 0 : i32
    %c0_i32_0 = arith.constant 0 : i32
    %c0_i32_1 = arith.constant 0 : i32
    return %arg0, %arg1, %c0_i32, %c0_i32_0 : i32, i32, i32, i32
  }
}

module attributes {stable_mosaic.version = 11 : i64} {
  func.func @_conv_block_kernel(%arg0: i32, %arg1: i32, %arg2: memref<1x1x312x4xbf16, #tpu.memory_space<vmem>>, %arg3: memref<36x32xbf16, #tpu.memory_space<vmem>>, %arg4: memref<1x32xf32, #tpu.memory_space<vmem>>, %arg5: memref<288x32xbf16, #tpu.memory_space<vmem>>, %arg6: memref<1x32xf32, #tpu.memory_space<vmem>>, %arg7: memref<1x8x24x32xf32, #tpu.memory_space<vmem>>) attributes {dimension_semantics = [#tpu.dimension_semantics<parallel>, #tpu.dimension_semantics<parallel>], iteration_bounds = array<i64: 2, 2>, scalar_prefetch = 0 : i64, scratch_operands = 0 : i64, tpu.core_type = #tpu.core_type<tc>, window_params = [{transform_indices = @transform_0, window_bounds = array<i64: 1, 1, 312, 4>}, {pipeline_mode = #tpu.pipeline_mode<synchronous>, transform_indices = @transform_1, window_bounds = array<i64: 36, 32>}, {pipeline_mode = #tpu.pipeline_mode<synchronous>, transform_indices = @transform_2, window_bounds = array<i64: 1, 32>}, {pipeline_mode = #tpu.pipeline_mode<synchronous>, transform_indices = @transform_3, window_bounds = array<i64: 288, 32>}, {pipeline_mode = #tpu.pipeline_mode<synchronous>, transform_indices = @transform_4, window_bounds = array<i64: 1, 32>}, {transform_indices = @transform_5, window_bounds = array<i64: 1, 8, 24, 32>}]} {
    %0 = tpu.iota {dimensions = array<i32: 0>} : vector<10x24x1xi32>
    %1 = tpu.iota {dimensions = array<i32: 1>} : vector<10x24x1xi32>
    %c8_i32 = arith.constant 8 : i32
    %2 = arith.muli %arg1, %c8_i32 : i32
    %c1_i32 = arith.constant 1 : i32
    %3 = arith.subi %2, %c1_i32 : i32
    %4 = vector.broadcast %3 : i32 to vector<10x24x1xi32>
    %5 = arith.addi %4, %0 : vector<10x24x1xi32>
    %c1_i32_0 = arith.constant 1 : i32
    %6 = vector.broadcast %c1_i32_0 : i32 to vector<10x24x1xi32>
    %7 = arith.subi %1, %6 : vector<10x24x1xi32>
    %c0_i32 = arith.constant 0 : i32
    %8 = vector.broadcast %c0_i32 : i32 to vector<10x24x1xi32>
    %9 = arith.cmpi sge, %5, %8 : vector<10x24x1xi32>
    %c16_i32 = arith.constant 16 : i32
    %10 = vector.broadcast %c16_i32 : i32 to vector<10x24x1xi32>
    %11 = arith.cmpi slt, %5, %10 : vector<10x24x1xi32>
    %12 = arith.andi %9, %11 : vector<10x24x1xi1>
    %c0_i32_1 = arith.constant 0 : i32
    %13 = vector.broadcast %c0_i32_1 : i32 to vector<10x24x1xi32>
    %14 = arith.cmpi sge, %7, %13 : vector<10x24x1xi32>
    %15 = arith.andi %12, %14 : vector<10x24x1xi1>
    %c16_i32_2 = arith.constant 16 : i32
    %16 = vector.broadcast %c16_i32_2 : i32 to vector<10x24x1xi32>
    %17 = arith.cmpi slt, %7, %16 : vector<10x24x1xi32>
    %18 = arith.andi %15, %17 : vector<10x24x1xi1>
    %c0 = arith.constant 0 : index
    %c0_3 = arith.constant 0 : index
    %19 = vector.load %arg3[%c0, %c0_3] : memref<36x32xbf16, #tpu.memory_space<vmem>>, vector<36x32xbf16>
    %c0_4 = arith.constant 0 : index
    %c0_5 = arith.constant 0 : index
    %20 = vector.load %arg4[%c0_4, %c0_5] : memref<1x32xf32, #tpu.memory_space<vmem>>, vector<1x32xf32>
    %c0_6 = arith.constant 0 : index
    %c0_7 = arith.constant 0 : index
    %21 = vector.load %arg5[%c0_6, %c0_7] : memref<288x32xbf16, #tpu.memory_space<vmem>>, vector<288x32xbf16>
    %c0_8 = arith.constant 0 : index
    %c0_9 = arith.constant 0 : index
    %22 = vector.load %arg6[%c0_8, %c0_9] : memref<1x32xf32, #tpu.memory_space<vmem>>, vector<1x32xf32>
    %cst = arith.constant 0.000000e+00 : f32
    %23 = vector.broadcast %cst : f32 to vector<4x32xf32>
    %c0_10 = arith.constant 0 : index
    %c0_11 = arith.constant 0 : index
    %c0_12 = arith.constant 0 : index
    %c0_13 = arith.constant 0 : index
    %24 = vector.load %arg2[%c0_10, %c0_11, %c0_12, %c0_13] : memref<1x1x312x4xbf16, #tpu.memory_space<vmem>>, vector<1x1x312x4xbf16>
    %25 = vector.shape_cast %24 : vector<1x1x312x4xbf16> to vector<312x4xbf16>
    %26 = vector.extract_strided_slice %25 {offsets = [0, 0], sizes = [240, 4], strides = [1, 1]} : vector<312x4xbf16> to vector<240x4xbf16>
    %27 = vector.extract_strided_slice %25 {offsets = [1, 0], sizes = [240, 4], strides = [1, 1]} : vector<312x4xbf16> to vector<240x4xbf16>
    %28 = vector.extract_strided_slice %25 {offsets = [2, 0], sizes = [240, 4], strides = [1, 1]} : vector<312x4xbf16> to vector<240x4xbf16>
    %29 = vector.extract_strided_slice %25 {offsets = [24, 0], sizes = [240, 4], strides = [1, 1]} : vector<312x4xbf16> to vector<240x4xbf16>
    %30 = vector.extract_strided_slice %25 {offsets = [25, 0], sizes = [240, 4], strides = [1, 1]} : vector<312x4xbf16> to vector<240x4xbf16>
    %31 = vector.extract_strided_slice %25 {offsets = [26, 0], sizes = [240, 4], strides = [1, 1]} : vector<312x4xbf16> to vector<240x4xbf16>
    %32 = vector.extract_strided_slice %25 {offsets = [48, 0], sizes = [240, 4], strides = [1, 1]} : vector<312x4xbf16> to vector<240x4xbf16>
    %33 = vector.extract_strided_slice %25 {offsets = [49, 0], sizes = [240, 4], strides = [1, 1]} : vector<312x4xbf16> to vector<240x4xbf16>
    %34 = vector.extract_strided_slice %25 {offsets = [50, 0], sizes = [240, 4], strides = [1, 1]} : vector<312x4xbf16> to vector<240x4xbf16>
    %35 = tpu.concatenate %26, %27, %28, %29, %30, %31, %32, %33, %34 in 1 : vector<240x4xbf16>, vector<240x4xbf16>, vector<240x4xbf16>, vector<240x4xbf16>, vector<240x4xbf16>, vector<240x4xbf16>, vector<240x4xbf16>, vector<240x4xbf16>, vector<240x4xbf16> -> vector<240x36xbf16>
    %cst_14 = arith.constant dense<0.000000e+00> : vector<240x32xf32>
    %36 = tpu.matmul %35, %19, %cst_14 {dimension_numbers = #tpu.dot_dimension_numbers<[1], [0], [0], [1], [0, 0, 1, 1], [], []>} : vector<240x36xbf16>, vector<36x32xbf16>, vector<240x32xf32> -> vector<240x32xf32>
    %37 = vector.broadcast %20 : vector<1x32xf32> to vector<240x32xf32>
    %38 = arith.addf %36, %37 : vector<240x32xf32>
    %cst_15 = arith.constant 0.000000e+00 : f32
    %39 = vector.broadcast %cst_15 : f32 to vector<240x32xf32>
    %40 = arith.maximumf %38, %39 : vector<240x32xf32>
    %41 = vector.shape_cast %40 : vector<240x32xf32> to vector<10x24x32xf32>
    %cst_16 = arith.constant 0.000000e+00 : f32
    %42 = vector.shape_cast %18 : vector<10x24x1xi1> to vector<10x24x1xi1>
    %43 = vector.broadcast %42 : vector<10x24x1xi1> to vector<10x24x32xi1>
    %44 = vector.broadcast %cst_16 : f32 to vector<10x24x32xf32>
    %45 = arith.select %43, %41, %44 : vector<10x24x32xi1>, vector<10x24x32xf32>
    %46 = vector.shape_cast %45 : vector<10x24x32xf32> to vector<240x32xf32>
    %47 = arith.truncf %46 : vector<240x32xf32> to vector<240x32xbf16>
    %48 = vector.extract_strided_slice %47 {offsets = [0, 0], sizes = [188, 32], strides = [1, 1]} : vector<240x32xbf16> to vector<188x32xbf16>
    %49 = vector.extract_strided_slice %47 {offsets = [1, 0], sizes = [188, 32], strides = [1, 1]} : vector<240x32xbf16> to vector<188x32xbf16>
    %50 = vector.extract_strided_slice %47 {offsets = [2, 0], sizes = [188, 32], strides = [1, 1]} : vector<240x32xbf16> to vector<188x32xbf16>
    %51 = vector.extract_strided_slice %47 {offsets = [24, 0], sizes = [188, 32], strides = [1, 1]} : vector<240x32xbf16> to vector<188x32xbf16>
    %52 = vector.extract_strided_slice %47 {offsets = [25, 0], sizes = [188, 32], strides = [1, 1]} : vector<240x32xbf16> to vector<188x32xbf16>
    %53 = vector.extract_strided_slice %47 {offsets = [26, 0], sizes = [188, 32], strides = [1, 1]} : vector<240x32xbf16> to vector<188x32xbf16>
    %54 = vector.extract_strided_slice %47 {offsets = [48, 0], sizes = [188, 32], strides = [1, 1]} : vector<240x32xbf16> to vector<188x32xbf16>
    %55 = vector.extract_strided_slice %47 {offsets = [49, 0], sizes = [188, 32], strides = [1, 1]} : vector<240x32xbf16> to vector<188x32xbf16>
    %56 = vector.extract_strided_slice %47 {offsets = [50, 0], sizes = [188, 32], strides = [1, 1]} : vector<240x32xbf16> to vector<188x32xbf16>
    %57 = tpu.concatenate %48, %49, %50, %51, %52, %53, %54, %55, %56 in 1 : vector<188x32xbf16>, vector<188x32xbf16>, vector<188x32xbf16>, vector<188x32xbf16>, vector<188x32xbf16>, vector<188x32xbf16>, vector<188x32xbf16>, vector<188x32xbf16>, vector<188x32xbf16> -> vector<188x288xbf16>
    %cst_17 = arith.constant dense<0.000000e+00> : vector<188x32xf32>
    %58 = tpu.matmul %57, %21, %cst_17 {dimension_numbers = #tpu.dot_dimension_numbers<[1], [0], [0], [1], [0, 0, 1, 1], [], []>} : vector<188x288xbf16>, vector<288x32xbf16>, vector<188x32xf32> -> vector<188x32xf32>
    %59 = vector.broadcast %22 : vector<1x32xf32> to vector<188x32xf32>
    %60 = arith.addf %58, %59 : vector<188x32xf32>
    %cst_18 = arith.constant 0.000000e+00 : f32
    %61 = vector.broadcast %cst_18 : f32 to vector<188x32xf32>
    %62 = arith.maximumf %60, %61 : vector<188x32xf32>
    %63 = tpu.concatenate %62, %23 in 0 : vector<188x32xf32>, vector<4x32xf32> -> vector<192x32xf32>
    %64 = vector.shape_cast %63 : vector<192x32xf32> to vector<8x24x32xf32>
    %c0_19 = arith.constant 0 : index
    %c0_20 = arith.constant 0 : index
    %c0_21 = arith.constant 0 : index
    %c0_22 = arith.constant 0 : index
    %65 = vector.load %arg7[%c0_19, %c0_20, %c0_21, %c0_22] : memref<1x8x24x32xf32, #tpu.memory_space<vmem>>, vector<1x8x24x32xf32>
    %66 = vector.shape_cast %65 : vector<1x8x24x32xf32> to vector<8x24x32xf32>
    %67 = vector.shape_cast %64 : vector<8x24x32xf32> to vector<1x8x24x32xf32>
    tpu.vector_store %arg7[%c0_19, %c0_20, %c0_21, %c0_22], %67 {strides = array<i32>} : memref<1x8x24x32xf32, #tpu.memory_space<vmem>>, vector<1x8x24x32xf32>,
    return
  }
  func.func @transform_0(%arg0: i32, %arg1: i32) -> (i32, i32, i32, i32) {
    %c0_i32 = arith.constant 0 : i32
    %c0_i32_0 = arith.constant 0 : i32
    %c0_i32_1 = arith.constant 0 : i32
    return %arg0, %arg1, %c0_i32, %c0_i32_0 : i32, i32, i32, i32
  }
  func.func @transform_1(%arg0: i32, %arg1: i32) -> (i32, i32) {
    %c0_i32 = arith.constant 0 : i32
    %c0_i32_0 = arith.constant 0 : i32
    %c0_i32_1 = arith.constant 0 : i32
    return %c0_i32, %c0_i32_0 : i32, i32
  }
  func.func @transform_2(%arg0: i32, %arg1: i32) -> (i32, i32) {
    %c0_i32 = arith.constant 0 : i32
    %c0_i32_0 = arith.constant 0 : i32
    %c0_i32_1 = arith.constant 0 : i32
    return %c0_i32, %c0_i32_0 : i32, i32
  }
  func.func @transform_3(%arg0: i32, %arg1: i32) -> (i32, i32) {
    %c0_i32 = arith.constant 0 : i32
    %c0_i32_0 = arith.constant 0 : i32
    %c0_i32_1 = arith.constant 0 : i32
    return %c0_i32, %c0_i32_0 : i32, i32
  }
  func.func @transform_4(%arg0: i32, %arg1: i32) -> (i32, i32) {
    %c0_i32 = arith.constant 0 : i32
    %c0_i32_0 = arith.constant 0 : i32
    %c0_i32_1 = arith.constant 0 : i32
    return %c0_i32, %c0_i32_0 : i32, i32
  }
  func.func @transform_5(%arg0: i32, %arg1: i32) -> (i32, i32, i32, i32) {
    %c0_i32 = arith.constant 0 : i32
    %c0_i32_0 = arith.constant 0 : i32
    %c0_i32_1 = arith.constant 0 : i32
    return %arg0, %arg1, %c0_i32, %c0_i32_0 : i32, i32, i32, i32
  }
}

</mosaic_0001>

<llo_original>
// kernel: conv_block_forward.1
$region0: #{conv_block_forward.1}
  #allocation0 [shape = 'u32[]', space=smem, size = 0x4, offset = 0x4, fixed_abs, tag = 'smem constant byte address 0x4 - core index']
  #allocation1 [shape = 'u32[72,128]{1,0:T(1,128)}', space=vmem, size = 0x9000, scoped, tag = 'internal scratch']
  %s0 = inlined_call_operand.vmem [shape: bf16[2,2,312,4], index: 0, kind: input, shape index: {}]
  %s1 = inlined_call_operand.vmem [shape: bf16[36,32], index: 1, kind: input, shape index: {}]
  %s2 = inlined_call_operand.vmem [shape: f32[1,32], index: 2, kind: input, shape index: {}]
  %s3 = inlined_call_operand.vmem [shape: bf16[288,32], index: 3, kind: input, shape index: {}]
  %s4 = inlined_call_operand.vmem [shape: f32[1,32], index: 4, kind: input, shape index: {}]
  %s5 = inlined_call_operand.vmem [shape: f32[2,16,24,32], index: 5, kind: output, shape index: {}]
  %s6 = sld [smem:[#allocation0]]
  $region53: #{conv_block_forward.1} parent=0
    _
  %s8 = ssub.s32 1, %s6
  %s9 = scalar_select 0, %s8, %s6
  loop: start=0, step=1, limit=6
  $region2: #{conv_block_forward.1} parent=0 // loop_pre_header
    _
  $region3: #{conv_block_forward.1} parent=0 // loop_header
    %s11 = sphi 0, %s15
    %p12 = scmp.ge.s32.totalorder %s11, 6
    %s18 = sphi 0, %s30
    %s19 = sphi 0, %s26
    %s20 = sphi 0, %s18
    %s21 = sphi 0, %s19
    %s22 = sphi 0, %s20
    %s23 = sphi 0, %s21
    %s35 = sphi 0, %s37
    %s38 = sphi 0, %s35
    %s39 = sphi 0, %s38
    %s55 = sphi 0, %s39
    %s59 = sphi 0, %s59
    %s61 = sphi 0, %s59
    %s62 = sphi 0, %s61
    %s76 = sphi 0, %s62
    %s80 = sphi 0, %s80
    %s82 = sphi 0, %s80
    %s83 = sphi 0, %s82
    %s97 = sphi 0, %s83
    %s101 = sphi 0, %s101
    %s103 = sphi 0, %s101
    %s104 = sphi 0, %s103
    %s118 = sphi 0, %s104
    %s122 = sphi 0, %s122
    %s124 = sphi 0, %s122
    %s125 = sphi 0, %s124
    %s139 = sphi 0, %s125
    %s147 = sphi 0, %s149
    %s150 = sphi 0, %s147
    %s151 = sphi 0, %s150
    %s167 = sphi 0, %s151
  $region4: #{conv_block_forward.1} parent=0 // loop_header_branch
    %14 = sbr.rel (%p12) target = $region8
  $region5: #{conv_block_forward.1} parent=0 // loop_body
    %s16 = ssub.s32 %s11, 1
    %s17 = ssub.s32 %s11, 2
    %s24 = sadd.s32 1, %s19
    %p25 = scmp.ge.s32.totalorder %s24, 2
    %s26 = scalar_select %p25, 0, %s24
    %s27 = sadd.s32 1, %s18
    %s28 = scalar_select %p25, %s27, %s18
    %p29 = scmp.ge.s32.totalorder %s28, 2
    %s30 = scalar_select %p29, 0, %s28
    %s31 = ssub.s32 %s18, %s30
    %s32 = ssub.s32 %s19, %s26
    %s33 = sor.u32 %s31, %s32
    %p34 = scmp.eq.s32.totalorder %s33, 0
    %s36 = sadd.s32 %s35, 1
    %s37 = scalar_select %p34, %s35, %s36
    %p40 = pneg %p34
    %p41 = scmp.eq.s32.totalorder %s11, 3
    %p42 = por %p40, %p41
    %p43 = scmp.ne.s32.totalorder %s35, %s38
    %p44 = scmp.eq.s32.totalorder %s11, 0
    %p45 = por %p43, %p44
    %p46 = scmp.ne.s32.totalorder %s35, %s38
    %p47 = scmp.eq.s32.totalorder %s16, 3
    %p48 = por %p46, %p47
    %p49 = scmp.ne.s32.totalorder %s38, %s39
    %p50 = scmp.eq.s32.totalorder %s16, 0
    %p51 = por %p49, %p50
    %p52 = scmp.ne.s32.totalorder %s38, %s39
    %p53 = scmp.eq.s32.totalorder %s17, 3
    %p54 = por %p52, %p53
    %p56 = scmp.ne.s32.totalorder %s39, %s55
    %p57 = scmp.eq.s32.totalorder %s17, 0
    %p58 = por %p56, %p57
    %s60 = sadd.s32 %s59, 1
    %p63 = scmp.eq.s32.totalorder %s11, 3
    %p64 = scmp.ne.s32.totalorder %s59, %s61
    %p65 = scmp.eq.s32.totalorder %s11, 0
    %p66 = por %p64, %p65
    %p67 = scmp.ne.s32.totalorder %s59, %s61
    %p68 = scmp.eq.s32.totalorder %s16, 3
    %p69 = por %p67, %p68
    %p70 = scmp.ne.s32.totalorder %s61, %s62
    %p71 = scmp.eq.s32.totalorder %s16, 0
    %p72 = por %p70, %p71
    %p73 = scmp.ne.s32.totalorder %s61, %s62
    %p74 = scmp.eq.s32.totalorder %s17, 3
    %p75 = por %p73, %p74
    %p77 = scmp.ne.s32.totalorder %s62, %s76
    %p78 = scmp.eq.s32.totalorder %s17, 0
    %p79 = por %p77, %p78
    %s81 = sadd.s32 %s80, 1
    %p84 = scmp.eq.s32.totalorder %s11, 3
    %p85 = scmp.ne.s32.totalorder %s80, %s82
    %p86 = scmp.eq.s32.totalorder %s11, 0
    %p87 = por %p85, %p86
    %p88 = scmp.ne.s32.totalorder %s80, %s82
    %p89 = scmp.eq.s32.totalorder %s16, 3
    %p90 = por %p88, %p89
    %p91 = scmp.ne.s32.totalorder %s82, %s83
    %p92 = scmp.eq.s32.totalorder %s16, 0
    %p93 = por %p91, %p92
    %p94 = scmp.ne.s32.totalorder %s82, %s83
    %p95 = scmp.eq.s32.totalorder %s17, 3
    %p96 = por %p94, %p95
    %p98 = scmp.ne.s32.totalorder %s83, %s97
    %p99 = scmp.eq.s32.totalorder %s17, 0
    %p100 = por %p98, %p99
    %s102 = sadd.s32 %s101, 1
    %p105 = scmp.eq.s32.totalorder %s11, 3
    %p106 = scmp.ne.s32.totalorder %s101, %s103
    %p107 = scmp.eq.s32.totalorder %s11, 0
    %p108 = por %p106, %p107
    %p109 = scmp.ne.s32.totalorder %s101, %s103
    %p110 = scmp.eq.s32.totalorder %s16, 3
    %p111 = por %p109, %p110
    %p112 = scmp.ne.s32.totalorder %s103, %s104
    %p113 = scmp.eq.s32.totalorder %s16, 0
    %p114 = por %p112, %p113
    %p115 = scmp.ne.s32.totalorder %s103, %s104
    %p116 = scmp.eq.s32.totalorder %s17, 3
    %p117 = por %p115, %p116
    %p119 = scmp.ne.s32.totalorder %s104, %s118
    %p120 = scmp.eq.s32.totalorder %s17, 0
    %p121 = por %p119, %p120
    %s123 = sadd.s32 %s122, 1
    %p126 = scmp.eq.s32.totalorder %s11, 3
    %p127 = scmp.ne.s32.totalorder %s122, %s124
    %p128 = scmp.eq.s32.totalorder %s11, 0
    %p129 = por %p127, %p128
    %p130 = scmp.ne.s32.totalorder %s122, %s124
    %p131 = scmp.eq.s32.totalorder %s16, 3
    %p132 = por %p130, %p131
    %p133 = scmp.ne.s32.totalorder %s124, %s125
    %p134 = scmp.eq.s32.totalorder %s16, 0
    %p135 = por %p133, %p134
    %p136 = scmp.ne.s32.totalorder %s124, %s125
    %p137 = scmp.eq.s32.totalorder %s17, 3
    %p138 = por %p136, %p137
    %p140 = scmp.ne.s32.totalorder %s125, %s139
    %p141 = scmp.eq.s32.totalorder %s17, 0
    %p142 = por %p140, %p141
    %s143 = ssub.s32 %s18, %s30
    %s144 = ssub.s32 %s19, %s26
    %s145 = sor.u32 %s143, %s144
    %p146 = scmp.eq.s32.totalorder %s145, 0
    %s148 = sadd.s32 %s147, 1
    %s149 = scalar_select %p146, %s147, %s148
    %p152 = pneg %p146
    %p153 = scmp.eq.s32.totalorder %s11, 3
    %p154 = por %p152, %p153
    %p155 = scmp.ne.s32.totalorder %s147, %s150
    %p156 = scmp.eq.s32.totalorder %s11, 0
    %p157 = por %p155, %p156
    %p158 = scmp.ne.s32.totalorder %s147, %s150
    %p159 = scmp.eq.s32.totalorder %s16, 3
    %p160 = por %p158, %p159
    %p161 = scmp.ne.s32.totalorder %s150, %s151
    %p162 = scmp.eq.s32.totalorder %s16, 0
    %p163 = por %p161, %p162
    %p164 = scmp.ne.s32.totalorder %s150, %s151
    %p165 = scmp.eq.s32.totalorder %s17, 3
    %p166 = por %p164, %p165
    %p168 = scmp.ne.s32.totalorder %s151, %s167
    %p169 = scmp.eq.s32.totalorder %s17, 0
    %p170 = por %p168, %p169
    %p171 = scmp.le.s32.totalorder 1, %s11
    %p172 = scmp.lt.s32.totalorder %s11, 5
    %p173 = pnand %p171, %p172
    %p174 = pneg %p173
    // Predicated region
    $region9: #{conv_block_forward.1} parent=5 // pred_check
      _
    $region10: #{conv_block_forward.1} parent=5 // pred_check_branch
      %176 = sbr.rel (%p173) target = $region12
    $region11: #{conv_block_forward.1} parent=5 // pred_region
      %s177 = ssub.s32 %s11, 1
      // Predicated region
      $region13: #{conv_block_forward.1} parent=11 // pred_check
        %p178 = pneg %p72
      $region14: #{conv_block_forward.1} parent=11 // pred_check_branch
        %180 = sbr.rel (%p178) target = $region16
      $region15: #{conv_block_forward.1} parent=11 // pred_region
        _
      $region16: #{conv_block_forward.1} parent=11 // pred_fallthru
        _
      // Predicated region
      $region17: #{conv_block_forward.1} parent=11 // pred_check
        %p181 = pneg %p93
      $region18: #{conv_block_forward.1} parent=11 // pred_check_branch
        %183 = sbr.rel (%p181) target = $region20
      $region19: #{conv_block_forward.1} parent=11 // pred_region
        _
      $region20: #{conv_block_forward.1} parent=11 // pred_fallthru
        _
      // Predicated region
      $region21: #{conv_block_forward.1} parent=11 // pred_check
        %p184 = pneg %p114
      $region22: #{conv_block_forward.1} parent=11 // pred_check_branch
        %186 = sbr.rel (%p184) target = $region24
      $region23: #{conv_block_forward.1} parent=11 // pred_region
        _
      $region24: #{conv_block_forward.1} parent=11 // pred_fallthru
        _
      // Predicated region
      $region25: #{conv_block_forward.1} parent=11 // pred_check
        %p187 = pneg %p135
      $region26: #{conv_block_forward.1} parent=11 // pred_check_branch
        %189 = sbr.rel (%p187) target = $region28
      $region27: #{conv_block_forward.1} parent=11 // pred_region
        _
      $region28: #{conv_block_forward.1} parent=11 // pred_fallthru
        _
    $region12: #{conv_block_forward.1} parent=5 // pred_fallthru
      _
    %p190 = scmp.lt.s32.totalorder %s11, 4
    // Predicated region
    $region29: #{conv_block_forward.1} parent=5 // pred_check
      %p191 = pneg %p190
    $region30: #{conv_block_forward.1} parent=5 // pred_check_branch
      %193 = sbr.rel (%p191) target = $region32
    $region31: #{conv_block_forward.1} parent=5 // pred_region
      // Predicated region
      $region33: #{conv_block_forward.1} parent=31 // pred_check
        %p194 = pneg %p45
      $region34: #{conv_block_forward.1} parent=31 // pred_check_branch
        %196 = sbr.rel (%p194) target = $region36
      $region35: #{conv_block_forward.1} parent=31 // pred_region
        %p197 = scmp.lt.s32.totalorder %s18, 1
        %s198 = scalar_select %p197, %s18, 1
        %p199 = scmp.lt.s32.totalorder %s19, 1
        %s200 = scalar_select %p199, %s19, 1
        %s201 = smul.addr %s200, 39
        %s202 = smul.addr %s198, 78
        %s203 = sadd.s32 %s201, %s202
        %s204 = smul.addr %s203, 4
        %s205 = scalar_lea.vmem %s0, %s204
      $region36: #{conv_block_forward.1} parent=31 // pred_fallthru
        _
    $region32: #{conv_block_forward.1} parent=5 // pred_fallthru
      _
    %p206 = scmp.le.s32.totalorder 1, %s11
    %p207 = scmp.lt.s32.totalorder %s11, 5
    %p208 = pnand %p206, %p207
    %p209 = pneg %p208
    // Predicated region
    $region37: #{conv_block_forward.1} parent=5 // pred_check
      _
    $region38: #{conv_block_forward.1} parent=5 // pred_check_branch
      %211 = sbr.rel (%p208) target = $region40
    $region39: #{conv_block_forward.1} parent=5 // pred_region
      %s212 = ssub.s32 %s11, 1
      %p213 = scmp.lt.s32.totalorder %s20, 1
      %s214 = scalar_select %p213, %s20, 1
      %p215 = scmp.lt.s32.totalorder %s21, 1
      %s216 = scalar_select %p215, %s21, 1
      %s217 = smul.addr %s216, 39
      %s218 = smul.addr %s214, 78
      %s219 = sadd.s32 %s217, %s218
      %s220 = smul.addr %s219, 4
      %s221 = scalar_lea.vmem %s0, %s220
      %p222 = pneg %p51
      %p223 = pneg %p48
      %p224 = pneg %p72
      %p225 = pneg %p69
      %p226 = pneg %p93
      %p227 = pneg %p90
      %p228 = pneg %p114
      %p229 = pneg %p111
      %p230 = pneg %p135
      %p231 = pneg %p132
      %p232 = pneg %p163
      %p233 = pneg %p160
      %s234 = smul.u32 8, %s21
      %p235 = scmp.lt.s32.totalorder %s20, 1
      %s236 = scalar_select %p235, %s20, 1
      %p237 = scmp.lt.s32.totalorder %s234, 15
      %s238 = scalar_select %p237, %s234, 15
      %s239 = smul.addr %s238, 3
      %s240 = smul.addr %s236, 48
      %s241 = sadd.s32 %s239, %s240
      %s242 = smul.addr %s241, 8
      %s243 = scalar_lea.vmem %s5, %s242
      %p244 = scmp.lt.s32.totalorder %s20, 1
      %s245 = scalar_select %p244, %s20, 1
      %p246 = scmp.lt.s32.totalorder %s21, 1
      %s247 = scalar_select %p246, %s21, 1
      %s248 = smul.addr %s247, 39
      %s249 = smul.addr %s245, 78
      %s250 = sadd.s32 %s248, %s249
      %s251 = smul.addr %s250, 4
      %s252 = scalar_lea.vmem %s0, %s251
      %s253 = smul.u32 8, %s21
      %p254 = scmp.lt.s32.totalorder %s20, 1
      %s255 = scalar_select %p254, %s20, 1
      %p256 = scmp.lt.s32.totalorder %s253, 15
      %s257 = scalar_select %p256, %s253, 15
      %s258 = smul.addr %s257, 3
      %s259 = smul.addr %s255, 48
      %s260 = sadd.s32 %s258, %s259
      %s261 = smul.addr %s260, 8
      %s262 = scalar_lea.vmem %s5, %s261
      %s263 = smul.u32 8, %s21
      %v265 = vlaneseq
      %v266 = vshrl.u32 %v265, 7
      %v267 = vadd.s32 %v266, 8
      %v268 = vadd.s32 %v266, 16
      %s269 = smul.u32 %s21, 8
      %s270 = ssub.s32 %s269, 1
      %v271 = vstv %s270
      %v272 = vadd.s32 %v271, 1
      %v273 = vadd.s32 %v271, 2
      %v274 = vadd.s32 %v271, 3
      %v275 = vadd.s32 %v271, 4
      %v276 = vadd.s32 %v271, 5
      %v277 = vadd.s32 %v271, 6
      %v278 = vadd.s32 %v271, 7
      %v279 = vadd.s32 %v271, 8
      %v280 = vadd.s32 %v271, 9
      %v281 = vsub.s32 %v266, 1
      %v282 = vsub.s32 %v267, 1
      %v283 = vsub.s32 %v268, 1
      %vm284 = vcmp.ge.s32.totalorder %v271, 0
      %vm285 = vcmp.ge.s32.totalorder %v272, 0
      %vm286 = vcmp.ge.s32.totalorder %v273, 0
      %vm287 = vcmp.ge.s32.totalorder %v274, 0
      %vm288 = vcmp.ge.s32.totalorder %v275, 0
      %vm289 = vcmp.ge.s32.totalorder %v276, 0
      %vm290 = vcmp.ge.s32.totalorder %v277, 0
      %vm291 = vcmp.ge.s32.totalorder %v278, 0
      %vm292 = vcmp.ge.s32.totalorder %v279, 0
      %vm293 = vcmp.ge.s32.totalorder %v280, 0
      %vm294 = vcmp.lt.s32.totalorder %v271, 16
      %vm295 = vcmp.lt.s32.totalorder %v272, 16
      %vm296 = vcmp.lt.s32.totalorder %v273, 16
      %vm297 = vcmp.lt.s32.totalorder %v274, 16
      %vm298 = vcmp.lt.s32.totalorder %v275, 16
      %vm299 = vcmp.lt.s32.totalorder %v276, 16
      %vm300 = vcmp.lt.s32.totalorder %v277, 16
      %vm301 = vcmp.lt.s32.totalorder %v278, 16
      %vm302 = vcmp.lt.s32.totalorder %v279, 16
      %vm303 = vcmp.lt.s32.totalorder %v280, 16
      %vm304 = vmand %vm284, %vm294
      %vm305 = vmand %vm285, %vm295
      %vm306 = vmand %vm286, %vm296
      %vm307 = vmand %vm287, %vm297
      %vm308 = vmand %vm288, %vm298
      %vm309 = vmand %vm289, %vm299
      %vm310 = vmand %vm290, %vm300
      %vm311 = vmand %vm291, %vm301
      %vm312 = vmand %vm292, %vm302
      %vm313 = vmand %vm293, %vm303
      %vm314 = vcmp.ge.s32.totalorder %v281, 0
      %vm315 = vcmp.ge.s32.totalorder %v282, 0
      %vm316 = vcmp.ge.s32.totalorder %v283, 0
      %vm317 = vmand %vm304, %vm314
      %vm318 = vmand %vm304, %vm315
      %vm319 = vmand %vm304, %vm316
      %vm320 = vmand %vm305, %vm314
      %vm321 = vmand %vm305, %vm315
      %vm322 = vmand %vm305, %vm316
      %vm323 = vmand %vm306, %vm314
      %vm324 = vmand %vm306, %vm315
      %vm325 = vmand %vm306, %vm316
      %vm326 = vmand %vm307, %vm314
      %vm327 = vmand %vm307, %vm315
      %vm328 = vmand %vm307, %vm316
      %vm329 = vmand %vm308, %vm314
      %vm330 = vmand %vm308, %vm315
      %vm331 = vmand %vm308, %vm316
      %vm332 = vmand %vm309, %vm314
      %vm333 = vmand %vm309, %vm315
      %vm334 = vmand %vm309, %vm316
      %vm335 = vmand %vm310, %vm314
      %vm336 = vmand %vm310, %vm315
      %vm337 = vmand %vm310, %vm316
      %vm338 = vmand %vm311, %vm314
      %vm339 = vmand %vm311, %vm315
      %vm340 = vmand %vm311, %vm316
      %vm341 = vmand %vm312, %vm314
      %vm342 = vmand %vm312, %vm315
      %vm343 = vmand %vm312, %vm316
      %vm344 = vmand %vm313, %vm314
      %vm345 = vmand %vm313, %vm315
      %vm346 = vmand %vm313, %vm316
      %vm347 = vcmp.lt.s32.totalorder %v281, 16
      %vm348 = vcmp.lt.s32.totalorder %v282, 16
      %vm349 = vcmp.lt.s32.totalorder %v283, 16
      %vm350 = vmand %vm317, %vm347
      %vm351 = vmand %vm318, %vm348
      %vm352 = vmand %vm319, %vm349
      %vm353 = vmand %vm320, %vm347
      %vm354 = vmand %vm321, %vm348
      %vm355 = vmand %vm322, %vm349
      %vm356 = vmand %vm323, %vm347
      %vm357 = vmand %vm324, %vm348
      %vm358 = vmand %vm325, %vm349
      %vm359 = vmand %vm326, %vm347
      %vm360 = vmand %vm327, %vm348
      %vm361 = vmand %vm328, %vm349
      %vm362 = vmand %vm329, %vm347
      %vm363 = vmand %vm330, %vm348
      %vm364 = vmand %vm331, %vm349
      %vm365 = vmand %vm332, %vm347
      %vm366 = vmand %vm333, %vm348
      %vm367 = vmand %vm334, %vm349
      %vm368 = vmand %vm335, %vm347
      %vm369 = vmand %vm336, %vm348
      %vm370 = vmand %vm337, %vm349
      %vm371 = vmand %vm338, %vm347
      %vm372 = vmand %vm339, %vm348
      %vm373 = vmand %vm340, %vm349
      %vm374 = vmand %vm341, %vm347
      %vm375 = vmand %vm342, %vm348
      %vm376 = vmand %vm343, %vm349
      %vm377 = vmand %vm344, %vm347
      %vm378 = vmand %vm345, %vm348
      %vm379 = vmand %vm346, %vm349
      %v380 = vld [vmem:[%s1] sm:$0xf]
      %v381 = vld [vmem:[%s1 + $0x4] sm:$0xf]
      %v382 = vld [vmem:[%s1 + $0x8] sm:$0xf]
      %v383 = vld [vmem:[%s1 + $0xc] sm:$0xf]
      %v384 = vld [vmem:[%s1 + $0x10] sm:$0x3]
      %v385 = vld [vmem:[%s2] sm:$0x1]
      %v386 = vld [vmem:[%s3] sm:$0xf]
      %v387 = vld [vmem:[%s3 + $0x4] sm:$0xf]
      %v388 = vld [vmem:[%s3 + $0x8] sm:$0xf]
      %v389 = vld [vmem:[%s3 + $0xc] sm:$0xf]
      %v390 = vld [vmem:[%s3 + $0x10] sm:$0xf]
      %v391 = vld [vmem:[%s3 + $0x14] sm:$0xf]
      %v392 = vld [vmem:[%s3 + $0x18] sm:$0xf]
      %v393 = vld [vmem:[%s3 + $0x1c] sm:$0xf]
      %v394 = vld [vmem:[%s3 + $0x20] sm:$0xf]
      %v395 = vld [vmem:[%s3 + $0x24] sm:$0xf]
      %v396 = vld [vmem:[%s3 + $0x28] sm:$0xf]
      %v397 = vld [vmem:[%s3 + $0x2c] sm:$0xf]
      %v398 = vld [vmem:[%s3 + $0x30] sm:$0xf]
      %v399 = vld [vmem:[%s3 + $0x34] sm:$0xf]
      %v400 = vld [vmem:[%s3 + $0x38] sm:$0xf]
      %v401 = vld [vmem:[%s3 + $0x3c] sm:$0xf]
      %v402 = vld [vmem:[%s3 + $0x40] sm:$0xf]
      %v403 = vld [vmem:[%s3 + $0x44] sm:$0xf]
      %v404 = vld [vmem:[%s3 + $0x48] sm:$0xf]
      %v405 = vld [vmem:[%s3 + $0x4c] sm:$0xf]
      %v406 = vld [vmem:[%s3 + $0x50] sm:$0xf]
      %v407 = vld [vmem:[%s3 + $0x54] sm:$0xf]
      %v408 = vld [vmem:[%s3 + $0x58] sm:$0xf]
      %v409 = vld [vmem:[%s3 + $0x5c] sm:$0xf]
      %v410 = vld [vmem:[%s3 + $0x60] sm:$0xf]
      %v411 = vld [vmem:[%s3 + $0x64] sm:$0xf]
      %v412 = vld [vmem:[%s3 + $0x68] sm:$0xf]
      %v413 = vld [vmem:[%s3 + $0x6c] sm:$0xf]
      %v414 = vld [vmem:[%s3 + $0x70] sm:$0xf]
      %v415 = vld [vmem:[%s3 + $0x74] sm:$0xf]
      %v416 = vld [vmem:[%s3 + $0x78] sm:$0xf]
      %v417 = vld [vmem:[%s3 + $0x7c] sm:$0xf]
      %v418 = vld [vmem:[%s3 + $0x80] sm:$0xf]
      %v419 = vld [vmem:[%s3 + $0x84] sm:$0xf]
      %v420 = vld [vmem:[%s3 + $0x88] sm:$0xf]
      %v421 = vld [vmem:[%s3 + $0x8c] sm:$0xf]
      %v422 = vld [vmem:[%s4] sm:$0x1]
      %v423 = vld [vmem:[%s252] sm:$0xf]
      %v424 = vld [vmem:[%s252 + $0x4] sm:$0xf]
      %v425 = vld [vmem:[%s252 + $0x8] sm:$0xf]
      %v426 = vld [vmem:[%s252 + $0xc] sm:$0xf]
      %v427 = vld [vmem:[%s252 + $0x10] sm:$0xf]
      %v428 = vld [vmem:[%s252 + $0x14] sm:$0xf]
      %v429 = vld [vmem:[%s252 + $0x18] sm:$0xf]
      %v430 = vld [vmem:[%s252 + $0x1c] sm:$0xf]
      %v431 = vld [vmem:[%s252 + $0x20] sm:$0xf]
      %v432 = vld [vmem:[%s252 + $0x24] sm:$0xf]
      %v433 = vld [vmem:[%s252 + $0x28] sm:$0xf]
      %v434 = vld [vmem:[%s252 + $0x2c] sm:$0xf]
      %v435 = vld [vmem:[%s252 + $0x30] sm:$0xf]
      %v436 = vld [vmem:[%s252 + $0x34] sm:$0xf]
      %v437 = vld [vmem:[%s252 + $0x38] sm:$0xf]
      %v438 = vld [vmem:[%s252 + $0x3c] sm:$0xf]
      %v439 = vld [vmem:[%s252 + $0x40] sm:$0xf]
      %v440 = vld [vmem:[%s252 + $0x44] sm:$0xf]
      %v441 = vld [vmem:[%s252 + $0x48] sm:$0xf]
      %v442 = vld [vmem:[%s252 + $0x4c] sm:$0xf]
      %v443 = vld [vmem:[%s252 + $0x50] sm:$0xf]
      %v444 = vld [vmem:[%s252 + $0x54] sm:$0xf]
      %v445 = vld [vmem:[%s252 + $0x58] sm:$0xf]
      %v446 = vld [vmem:[%s252 + $0x5c] sm:$0xf]
      %v447 = vld [vmem:[%s252 + $0x60] sm:$0xf]
      %v448 = vld [vmem:[%s252 + $0x64] sm:$0xf]
      %v449 = vld [vmem:[%s252 + $0x68] sm:$0xf]
      %v450 = vld [vmem:[%s252 + $0x6c] sm:$0xf]
      %v451 = vld [vmem:[%s252 + $0x70] sm:$0xf]
      %v452 = vld [vmem:[%s252 + $0x74] sm:$0xf]
      %v453 = vld [vmem:[%s252 + $0x78] sm:$0xf]
      %v454 = vld [vmem:[%s252 + $0x7c] sm:$0xf]
      %v455 = vld [vmem:[%s252 + $0x80] sm:$0xf]
      %v456 = vld [vmem:[%s252 + $0x84] sm:$0xf]
      %v457 = vld [vmem:[%s252 + $0x88] sm:$0xf]
      %v458 = vld [vmem:[%s252 + $0x8c] sm:$0xf]
      %v459 = vld [vmem:[%s252 + $0x90] sm:$0xf]
      %v490 = vunpack.c.l.b16 %v423
      %v491 = vunpack.c.l.b16 %v424
      %v492 = vunpack.c.l.b16 %v425
      %v493 = vunpack.c.l.b16 %v426
      %v494 = vunpack.c.l.b16 %v427
      %v495 = vunpack.c.l.b16 %v428
      %v496 = vunpack.c.l.b16 %v429
      %v497 = vunpack.c.l.b16 %v430
      %v498 = vunpack.c.l.b16 %v431
      %v499 = vunpack.c.l.b16 %v432
      %v500 = vunpack.c.l.b16 %v433
      %v501 = vunpack.c.l.b16 %v434
      %v502 = vunpack.c.l.b16 %v435
      %v503 = vunpack.c.l.b16 %v436
      %v504 = vunpack.c.l.b16 %v437
      %v505 = vunpack.c.l.b16 %v438
      %v506 = vunpack.c.l.b16 %v439
      %v507 = vunpack.c.l.b16 %v440
      %v508 = vunpack.c.l.b16 %v441
      %v509 = vunpack.c.l.b16 %v442
      %v510 = vunpack.c.l.b16 %v443
      %v511 = vunpack.c.l.b16 %v444
      %v512 = vunpack.c.l.b16 %v445
      %v513 = vunpack.c.l.b16 %v446
      %v514 = vunpack.c.l.b16 %v447
      %v515 = vunpack.c.l.b16 %v448
      %v516 = vunpack.c.l.b16 %v449
      %v517 = vunpack.c.l.b16 %v450
      %v518 = vunpack.c.l.b16 %v451
      %v519 = vunpack.c.l.b16 %v452
      %v520 = vpack.c.b16 %v491, %v490
      %v521 = vpack.c.b16 %v493, %v492
      %v522 = vpack.c.b16 %v495, %v494
      %v523 = vpack.c.b16 %v497, %v496
      %v524 = vpack.c.b16 %v499, %v498
      %v525 = vpack.c.b16 %v501, %v500
      %v526 = vpack.c.b16 %v503, %v502
      %v527 = vpack.c.b16 %v505, %v504
      %v528 = vpack.c.b16 %v507, %v506
      %v529 = vpack.c.b16 %v509, %v508
      %v530 = vpack.c.b16 %v511, %v510
      %v531 = vpack.c.b16 %v513, %v512
      %v532 = vpack.c.b16 %v515, %v514
      %v533 = vpack.c.b16 %v517, %v516
      %v534 = vpack.c.b16 %v519, %v518
      %v536 = vunpack.c.l.b16 %v453
      %v537 = vpack.c.b16 %v536, %v536
      %vm538 = vsmask.f32 7424
      %v540 = vshrl.u32 %v520, 16
      %v542 = vshll.u32 %v520, 16
      %v544 = vrot.slane %v542, 1
      %v545 = vor.u32 %v540, %v544
      %v547 = vshll.u32 %v521, 16
      %v549 = vrot.slane %v547, 1
      %v550 = vsel %vm538, %v545, %v549
      %v551 = vshrl.u32 %v521, 16
      %v553 = vor.u32 %v551, %v549
      %v555 = vshll.u32 %v522, 16
      %v557 = vrot.slane %v555, 1
      %v558 = vsel %vm538, %v553, %v557
      %v559 = vshrl.u32 %v522, 16
      %v561 = vor.u32 %v559, %v557
      %v563 = vshll.u32 %v523, 16
      %v565 = vrot.slane %v563, 1
      %v566 = vsel %vm538, %v561, %v565
      %v567 = vshrl.u32 %v523, 16
      %v569 = vor.u32 %v567, %v565
      %v571 = vshll.u32 %v524, 16
      %v573 = vrot.slane %v571, 1
      %v574 = vsel %vm538, %v569, %v573
      %v575 = vshrl.u32 %v524, 16
      %v577 = vor.u32 %v575, %v573
      %v579 = vshll.u32 %v525, 16
      %v581 = vrot.slane %v579, 1
      %v582 = vsel %vm538, %v577, %v581
      %v583 = vshrl.u32 %v525, 16
      %v585 = vor.u32 %v583, %v581
      %v587 = vshll.u32 %v526, 16
      %v589 = vrot.slane %v587, 1
      %v590 = vsel %vm538, %v585, %v589
      %v591 = vshrl.u32 %v526, 16
      %v593 = vor.u32 %v591, %v589
      %v595 = vshll.u32 %v527, 16
      %v597 = vrot.slane %v595, 1
      %v598 = vsel %vm538, %v593, %v597
      %v599 = vshrl.u32 %v527, 16
      %v601 = vor.u32 %v599, %v597
      %v603 = vshll.u32 %v528, 16
      %v605 = vrot.slane %v603, 1
      %v606 = vsel %vm538, %v601, %v605
      %v607 = vshrl.u32 %v528, 16
      %v609 = vor.u32 %v607, %v605
      %v611 = vshll.u32 %v529, 16
      %v613 = vrot.slane %v611, 1
      %v614 = vsel %vm538, %v609, %v613
      %v615 = vshrl.u32 %v529, 16
      %v617 = vor.u32 %v615, %v613
      %v619 = vshll.u32 %v530, 16
      %v621 = vrot.slane %v619, 1
      %v622 = vsel %vm538, %v617, %v621
      %v623 = vshrl.u32 %v530, 16
      %v625 = vor.u32 %v623, %v621
      %v627 = vshll.u32 %v531, 16
      %v629 = vrot.slane %v627, 1
      %v630 = vsel %vm538, %v625, %v629
      %v631 = vshrl.u32 %v531, 16
      %v633 = vor.u32 %v631, %v629
      %v635 = vshll.u32 %v532, 16
      %v637 = vrot.slane %v635, 1
      %v638 = vsel %vm538, %v633, %v637
      %v639 = vshrl.u32 %v532, 16
      %v641 = vor.u32 %v639, %v637
      %v643 = vshll.u32 %v533, 16
      %v645 = vrot.slane %v643, 1
      %v646 = vsel %vm538, %v641, %v645
      %v647 = vshrl.u32 %v533, 16
      %v649 = vor.u32 %v647, %v645
      %v651 = vshll.u32 %v534, 16
      %v653 = vrot.slane %v651, 1
      %v654 = vsel %vm538, %v649, %v653
      %v655 = vshrl.u32 %v534, 16
      %v657 = vor.u32 %v655, %v653
      %v659 = vshll.u32 %v537, 16
      %v661 = vrot.slane %v659, 1
      %v662 = vsel %vm538, %v657, %v661
      %663 = vrot.lane.b32.xlu0 %v550, 4
      %v664 = vpop.permute.xlu0 %663
      %665 = vrot.lane.b32.xlu0 %v558, 4
      %v666 = vpop.permute.xlu0 %665
      %667 = vrot.lane.b32.xlu0 %v566, 4
      %v668 = vpop.permute.xlu0 %667
      %669 = vrot.lane.b32.xlu0 %v574, 4
      %v670 = vpop.permute.xlu0 %669
      %671 = vrot.lane.b32.xlu0 %v582, 4
      %v672 = vpop.permute.xlu0 %671
      %673 = vrot.lane.b32.xlu0 %v590, 4
      %v674 = vpop.permute.xlu0 %673
      %675 = vrot.lane.b32.xlu0 %v598, 4
      %v676 = vpop.permute.xlu0 %675
      %677 = vrot.lane.b32.xlu0 %v606, 4
      %v678 = vpop.permute.xlu0 %677
      %679 = vrot.lane.b32.xlu0 %v614, 4
      %v680 = vpop.permute.xlu0 %679
      %681 = vrot.lane.b32.xlu0 %v622, 4
      %v682 = vpop.permute.xlu0 %681
      %683 = vrot.lane.b32.xlu0 %v630, 4
      %v684 = vpop.permute.xlu0 %683
      %685 = vrot.lane.b32.xlu0 %v638, 4
      %v686 = vpop.permute.xlu0 %685
      %687 = vrot.lane.b32.xlu0 %v646, 4
      %v688 = vpop.permute.xlu0 %687
      %689 = vrot.lane.b32.xlu0 %v654, 4
      %v690 = vpop.permute.xlu0 %689
      %691 = vrot.lane.b32.xlu0 %v662, 4
      %v692 = vpop.permute.xlu0 %691
      %vm693 = vcmask 1046528
      %v694 = vrot.slane %v520, 1
      %v695 = vrot.slane %v521, 1
      %v696 = vsel %vm693, %v694, %v695
      %v697 = vrot.slane %v522, 1
      %v698 = vsel %vm693, %v695, %v697
      %v699 = vrot.slane %v523, 1
      %v700 = vsel %vm693, %v697, %v699
      %v701 = vrot.slane %v524, 1
      %v702 = vsel %vm693, %v699, %v701
      %v703 = vrot.slane %v525, 1
      %v704 = vsel %vm693, %v701, %v703
      %v705 = vrot.slane %v526, 1
      %v706 = vsel %vm693, %v703, %v705
      %v707 = vrot.slane %v527, 1
      %v708 = vsel %vm693, %v705, %v707
      %v709 = vrot.slane %v528, 1
      %v710 = vsel %vm693, %v707, %v709
      %v711 = vrot.slane %v529, 1
      %v712 = vsel %vm693, %v709, %v711
      %v713 = vrot.slane %v530, 1
      %v714 = vsel %vm693, %v711, %v713
      %v715 = vrot.slane %v531, 1
      %v716 = vsel %vm693, %v713, %v715
      %v717 = vrot.slane %v532, 1
      %v718 = vsel %vm693, %v715, %v717
      %v719 = vrot.slane %v533, 1
      %v720 = vsel %vm693, %v717, %v719
      %v721 = vrot.slane %v534, 1
      %v722 = vsel %vm693, %v719, %v721
      %v723 = vrot.slane %v537, 1
      %v724 = vsel %vm693, %v721, %v723
      %725 = vrot.lane.b32.xlu0 %v696, 8
      %v726 = vpop.permute.xlu0 %725
      %727 = vrot.lane.b32.xlu0 %v698, 8
      %v728 = vpop.permute.xlu0 %727
      %729 = vrot.lane.b32.xlu0 %v700, 8
      %v730 = vpop.permute.xlu0 %729
      %731 = vrot.lane.b32.xlu0 %v702, 8
      %v732 = vpop.permute.xlu0 %731
      %733 = vrot.lane.b32.xlu0 %v704, 8
      %v734 = vpop.permute.xlu0 %733
      %735 = vrot.lane.b32.xlu0 %v706, 8
      %v736 = vpop.permute.xlu0 %735
      %737 = vrot.lane.b32.xlu0 %v708, 8
      %v738 = vpop.permute.xlu0 %737
      %739 = vrot.lane.b32.xlu0 %v710, 8
      %v740 = vpop.permute.xlu0 %739
      %741 = vrot.lane.b32.xlu0 %v712, 8
      %v742 = vpop.permute.xlu0 %741
      %743 = vrot.lane.b32.xlu0 %v714, 8
      %v744 = vpop.permute.xlu0 %743
      %745 = vrot.lane.b32.xlu0 %v716, 8
      %v746 = vpop.permute.xlu0 %745
      %747 = vrot.lane.b32.xlu0 %v718, 8
      %v748 = vpop.permute.xlu0 %747
      %749 = vrot.lane.b32.xlu0 %v720, 8
      %v750 = vpop.permute.xlu0 %749
      %751 = vrot.lane.b32.xlu0 %v722, 8
      %v752 = vpop.permute.xlu0 %751
      %753 = vrot.lane.b32.xlu0 %v724, 8
      %v754 = vpop.permute.xlu0 %753
      %v757 = vunpack.c.l.b16 %v454
      %v758 = vunpack.c.l.b16 %v455
      %v759 = vpack.c.b16 %v494, %v493
      %v760 = vpack.c.b16 %v496, %v495
      %v761 = vpack.c.b16 %v498, %v497
      %v762 = vpack.c.b16 %v500, %v499
      %v763 = vpack.c.b16 %v502, %v501
      %v764 = vpack.c.b16 %v504, %v503
      %v765 = vpack.c.b16 %v506, %v505
      %v766 = vpack.c.b16 %v508, %v507
      %v767 = vpack.c.b16 %v510, %v509
      %v768 = vpack.c.b16 %v512, %v511
      %v769 = vpack.c.b16 %v514, %v513
      %v770 = vpack.c.b16 %v516, %v515
      %v771 = vpack.c.b16 %v518, %v517
      %v772 = vpack.c.b16 %v536, %v519
      %v773 = vpack.c.b16 %v758, %v757
      %774 = vrot.lane.b32.xlu0 %v759, 12
      %v775 = vpop.permute.xlu0 %774
      %776 = vrot.lane.b32.xlu0 %v760, 12
      %v777 = vpop.permute.xlu0 %776
      %778 = vrot.lane.b32.xlu0 %v761, 12
      %v779 = vpop.permute.xlu0 %778
      %780 = vrot.lane.b32.xlu0 %v762, 12
      %v781 = vpop.permute.xlu0 %780
      %782 = vrot.lane.b32.xlu0 %v763, 12
      %v783 = vpop.permute.xlu0 %782
      %784 = vrot.lane.b32.xlu0 %v764, 12
      %v785 = vpop.permute.xlu0 %784
      %786 = vrot.lane.b32.xlu0 %v765, 12
      %v787 = vpop.permute.xlu0 %786
      %788 = vrot.lane.b32.xlu0 %v766, 12
      %v789 = vpop.permute.xlu0 %788
      %790 = vrot.lane.b32.xlu0 %v767, 12
      %v791 = vpop.permute.xlu0 %790
      %792 = vrot.lane.b32.xlu0 %v768, 12
      %v793 = vpop.permute.xlu0 %792
      %794 = vrot.lane.b32.xlu0 %v769, 12
      %v795 = vpop.permute.xlu0 %794
      %796 = vrot.lane.b32.xlu0 %v770, 12
      %v797 = vpop.permute.xlu0 %796
      %798 = vrot.lane.b32.xlu0 %v771, 12
      %v799 = vpop.permute.xlu0 %798
      %800 = vrot.lane.b32.xlu0 %v772, 12
      %v801 = vpop.permute.xlu0 %800
      %802 = vrot.lane.b32.xlu0 %v773, 12
      %v803 = vpop.permute.xlu0 %802
      %v805 = vunpack.c.l.b16 %v456
      %v806 = vpack.c.b16 %v805, %v805
      %v808 = vshrl.u32 %v759, 16
      %v810 = vshll.u32 %v759, 16
      %v812 = vrot.slane %v810, 1
      %v813 = vor.u32 %v808, %v812
      %v815 = vshll.u32 %v760, 16
      %v817 = vrot.slane %v815, 1
      %v818 = vsel %vm538, %v813, %v817
      %v819 = vshrl.u32 %v760, 16
      %v821 = vor.u32 %v819, %v817
      %v823 = vshll.u32 %v761, 16
      %v825 = vrot.slane %v823, 1
      %v826 = vsel %vm538, %v821, %v825
      %v827 = vshrl.u32 %v761, 16
      %v829 = vor.u32 %v827, %v825
      %v831 = vshll.u32 %v762, 16
      %v833 = vrot.slane %v831, 1
      %v834 = vsel %vm538, %v829, %v833
      %v835 = vshrl.u32 %v762, 16
      %v837 = vor.u32 %v835, %v833
      %v839 = vshll.u32 %v763, 16
      %v841 = vrot.slane %v839, 1
      %v842 = vsel %vm538, %v837, %v841
      %v843 = vshrl.u32 %v763, 16
      %v845 = vor.u32 %v843, %v841
      %v847 = vshll.u32 %v764, 16
      %v849 = vrot.slane %v847, 1
      %v850 = vsel %vm538, %v845, %v849
      %v851 = vshrl.u32 %v764, 16
      %v853 = vor.u32 %v851, %v849
      %v855 = vshll.u32 %v765, 16
      %v857 = vrot.slane %v855, 1
      %v858 = vsel %vm538, %v853, %v857
      %v859 = vshrl.u32 %v765, 16
      %v861 = vor.u32 %v859, %v857
      %v863 = vshll.u32 %v766, 16
      %v865 = vrot.slane %v863, 1
      %v866 = vsel %vm538, %v861, %v865
      %v867 = vshrl.u32 %v766, 16
      %v869 = vor.u32 %v867, %v865
      %v871 = vshll.u32 %v767, 16
      %v873 = vrot.slane %v871, 1
      %v874 = vsel %vm538, %v869, %v873
      %v875 = vshrl.u32 %v767, 16
      %v877 = vor.u32 %v875, %v873
      %v879 = vshll.u32 %v768, 16
      %v881 = vrot.slane %v879, 1
      %v882 = vsel %vm538, %v877, %v881
      %v883 = vshrl.u32 %v768, 16
      %v885 = vor.u32 %v883, %v881
      %v887 = vshll.u32 %v769, 16
      %v889 = vrot.slane %v887, 1
      %v890 = vsel %vm538, %v885, %v889
      %v891 = vshrl.u32 %v769, 16
      %v893 = vor.u32 %v891, %v889
      %v895 = vshll.u32 %v770, 16
      %v897 = vrot.slane %v895, 1
      %v898 = vsel %vm538, %v893, %v897
      %v899 = vshrl.u32 %v770, 16
      %v901 = vor.u32 %v899, %v897
      %v903 = vshll.u32 %v771, 16
      %v905 = vrot.slane %v903, 1
      %v906 = vsel %vm538, %v901, %v905
      %v907 = vshrl.u32 %v771, 16
      %v909 = vor.u32 %v907, %v905
      %v911 = vshll.u32 %v772, 16
      %v913 = vrot.slane %v911, 1
      %v914 = vsel %vm538, %v909, %v913
      %v915 = vshrl.u32 %v772, 16
      %v917 = vor.u32 %v915, %v913
      %v919 = vshll.u32 %v773, 16
      %v921 = vrot.slane %v919, 1
      %v922 = vsel %vm538, %v917, %v921
      %v923 = vshrl.u32 %v773, 16
      %v925 = vor.u32 %v923, %v921
      %v927 = vshll.u32 %v806, 16
      %v929 = vrot.slane %v927, 1
      %v930 = vsel %vm538, %v925, %v929
      %931 = vrot.lane.b32.xlu0 %v818, 16
      %v932 = vpop.permute.xlu0 %931
      %933 = vrot.lane.b32.xlu0 %v826, 16
      %v934 = vpop.permute.xlu0 %933
      %935 = vrot.lane.b32.xlu0 %v834, 16
      %v936 = vpop.permute.xlu0 %935
      %937 = vrot.lane.b32.xlu0 %v842, 16
      %v938 = vpop.permute.xlu0 %937
      %939 = vrot.lane.b32.xlu0 %v850, 16
      %v940 = vpop.permute.xlu0 %939
      %941 = vrot.lane.b32.xlu0 %v858, 16
      %v942 = vpop.permute.xlu0 %941
      %943 = vrot.lane.b32.xlu0 %v866, 16
      %v944 = vpop.permute.xlu0 %943
      %945 = vrot.lane.b32.xlu0 %v874, 16
      %v946 = vpop.permute.xlu0 %945
      %947 = vrot.lane.b32.xlu0 %v882, 16
      %v948 = vpop.permute.xlu0 %947
      %949 = vrot.lane.b32.xlu0 %v890, 16
      %v950 = vpop.permute.xlu0 %949
      %951 = vrot.lane.b32.xlu0 %v898, 16
      %v952 = vpop.permute.xlu0 %951
      %953 = vrot.lane.b32.xlu0 %v906, 16
      %v954 = vpop.permute.xlu0 %953
      %955 = vrot.lane.b32.xlu0 %v914, 16
      %v956 = vpop.permute.xlu0 %955
      %957 = vrot.lane.b32.xlu0 %v922, 16
      %v958 = vpop.permute.xlu0 %957
      %959 = vrot.lane.b32.xlu0 %v930, 16
      %v960 = vpop.permute.xlu0 %959
      %v961 = vrot.slane %v759, 1
      %v962 = vrot.slane %v760, 1
      %v963 = vsel %vm693, %v961, %v962
      %v964 = vrot.slane %v761, 1
      %v965 = vsel %vm693, %v962, %v964
      %v966 = vrot.slane %v762, 1
      %v967 = vsel %vm693, %v964, %v966
      %v968 = vrot.slane %v763, 1
      %v969 = vsel %vm693, %v966, %v968
      %v970 = vrot.slane %v764, 1
      %v971 = vsel %vm693, %v968, %v970
      %v972 = vrot.slane %v765, 1
      %v973 = vsel %vm693, %v970, %v972
      %v974 = vrot.slane %v766, 1
      %v975 = vsel %vm693, %v972, %v974
      %v976 = vrot.slane %v767, 1
      %v977 = vsel %vm693, %v974, %v976
      %v978 = vrot.slane %v768, 1
      %v979 = vsel %vm693, %v976, %v978
      %v980 = vrot.slane %v769, 1
      %v981 = vsel %vm693, %v978, %v980
      %v982 = vrot.slane %v770, 1
      %v983 = vsel %vm693, %v980, %v982
      %v984 = vrot.slane %v771, 1
      %v985 = vsel %vm693, %v982, %v984
      %v986 = vrot.slane %v772, 1
      %v987 = vsel %vm693, %v984, %v986
      %v988 = vrot.slane %v773, 1
      %v989 = vsel %vm693, %v986, %v988
      %v990 = vrot.slane %v806, 1
      %v991 = vsel %vm693, %v988, %v990
      %992 = vrot.lane.b32.xlu0 %v963, 20
      %v993 = vpop.permute.xlu0 %992
      %994 = vrot.lane.b32.xlu0 %v965, 20
      %v995 = vpop.permute.xlu0 %994
      %996 = vrot.lane.b32.xlu0 %v967, 20
      %v997 = vpop.permute.xlu0 %996
      %998 = vrot.lane.b32.xlu0 %v969, 20
      %v999 = vpop.permute.xlu0 %998
      %1000 = vrot.lane.b32.xlu0 %v971, 20
      %v1001 = vpop.permute.xlu0 %1000
      %1002 = vrot.lane.b32.xlu0 %v973, 20
      %v1003 = vpop.permute.xlu0 %1002
      %1004 = vrot.lane.b32.xlu0 %v975, 20
      %v1005 = vpop.permute.xlu0 %1004
      %1006 = vrot.lane.b32.xlu0 %v977, 20
      %v1007 = vpop.permute.xlu0 %1006
      %1008 = vrot.lane.b32.xlu0 %v979, 20
      %v1009 = vpop.permute.xlu0 %1008
      %1010 = vrot.lane.b32.xlu0 %v981, 20
      %v1011 = vpop.permute.xlu0 %1010
      %1012 = vrot.lane.b32.xlu0 %v983, 20
      %v1013 = vpop.permute.xlu0 %1012
      %1014 = vrot.lane.b32.xlu0 %v985, 20
      %v1015 = vpop.permute.xlu0 %1014
      %1016 = vrot.lane.b32.xlu0 %v987, 20
      %v1017 = vpop.permute.xlu0 %1016
      %1018 = vrot.lane.b32.xlu0 %v989, 20
      %v1019 = vpop.permute.xlu0 %1018
      %1020 = vrot.lane.b32.xlu0 %v991, 20
      %v1021 = vpop.permute.xlu0 %1020
      %v1024 = vunpack.c.l.b16 %v457
      %v1025 = vunpack.c.l.b16 %v458
      %v1026 = vpack.c.b16 %v757, %v536
      %v1027 = vpack.c.b16 %v805, %v758
      %v1028 = vpack.c.b16 %v1025, %v1024
      %1029 = vrot.lane.b32.xlu0 %v523, 24
      %v1030 = vpop.permute.xlu0 %1029
      %1031 = vrot.lane.b32.xlu0 %v524, 24
      %v1032 = vpop.permute.xlu0 %1031
      %1033 = vrot.lane.b32.xlu0 %v525, 24
      %v1034 = vpop.permute.xlu0 %1033
      %1035 = vrot.lane.b32.xlu0 %v526, 24
      %v1036 = vpop.permute.xlu0 %1035
      %1037 = vrot.lane.b32.xlu0 %v527, 24
      %v1038 = vpop.permute.xlu0 %1037
      %1039 = vrot.lane.b32.xlu0 %v528, 24
      %v1040 = vpop.permute.xlu0 %1039
      %1041 = vrot.lane.b32.xlu0 %v529, 24
      %v1042 = vpop.permute.xlu0 %1041
      %1043 = vrot.lane.b32.xlu0 %v530, 24
      %v1044 = vpop.permute.xlu0 %1043
      %1045 = vrot.lane.b32.xlu0 %v531, 24
      %v1046 = vpop.permute.xlu0 %1045
      %1047 = vrot.lane.b32.xlu0 %v532, 24
      %v1048 = vpop.permute.xlu0 %1047
      %1049 = vrot.lane.b32.xlu0 %v533, 24
      %v1050 = vpop.permute.xlu0 %1049
      %1051 = vrot.lane.b32.xlu0 %v534, 24
      %v1052 = vpop.permute.xlu0 %1051
      %1053 = vrot.lane.b32.xlu0 %v1026, 24
      %v1054 = vpop.permute.xlu0 %1053
      %1055 = vrot.lane.b32.xlu0 %v1027, 24
      %v1056 = vpop.permute.xlu0 %1055
      %1057 = vrot.lane.b32.xlu0 %v1028, 24
      %v1058 = vpop.permute.xlu0 %1057
      %v1060 = vunpack.c.l.b16 %v459
      %v1061 = vpack.c.b16 %v1060, %v1060
      %v1063 = vshll.u32 %v1026, 16
      %v1065 = vrot.slane %v1063, 1
      %v1066 = vsel %vm538, %v657, %v1065
      %v1067 = vshrl.u32 %v1026, 16
      %v1069 = vor.u32 %v1067, %v1065
      %v1071 = vshll.u32 %v1027, 16
      %v1073 = vrot.slane %v1071, 1
      %v1074 = vsel %vm538, %v1069, %v1073
      %v1075 = vshrl.u32 %v1027, 16
      %v1077 = vor.u32 %v1075, %v1073
      %v1079 = vshll.u32 %v1028, 16
      %v1081 = vrot.slane %v1079, 1
      %v1082 = vsel %vm538, %v1077, %v1081
      %v1083 = vshrl.u32 %v1028, 16
      %v1085 = vor.u32 %v1083, %v1081
      %v1087 = vshll.u32 %v1061, 16
      %v1089 = vrot.slane %v1087, 1
      %v1090 = vsel %vm538, %v1085, %v1089
      %1091 = vrot.lane.b32.xlu0 %v574, 28
      %v1092 = vpop.permute.xlu0 %1091
      %1093 = vrot.lane.b32.xlu0 %v582, 28
      %v1094 = vpop.permute.xlu0 %1093
      %1095 = vrot.lane.b32.xlu0 %v590, 28
      %v1096 = vpop.permute.xlu0 %1095
      %1097 = vrot.lane.b32.xlu0 %v598, 28
      %v1098 = vpop.permute.xlu0 %1097
      %1099 = vrot.lane.b32.xlu0 %v606, 28
      %v1100 = vpop.permute.xlu0 %1099
      %1101 = vrot.lane.b32.xlu0 %v614, 28
      %v1102 = vpop.permute.xlu0 %1101
      %1103 = vrot.lane.b32.xlu0 %v622, 28
      %v1104 = vpop.permute.xlu0 %1103
      %1105 = vrot.lane.b32.xlu0 %v630, 28
      %v1106 = vpop.permute.xlu0 %1105
      %1107 = vrot.lane.b32.xlu0 %v638, 28
      %v1108 = vpop.permute.xlu0 %1107
      %1109 = vrot.lane.b32.xlu0 %v646, 28
      %v1110 = vpop.permute.xlu0 %1109
      %1111 = vrot.lane.b32.xlu0 %v654, 28
      %v1112 = vpop.permute.xlu0 %1111
      %1113 = vrot.lane.b32.xlu0 %v1066, 28
      %v1114 = vpop.permute.xlu0 %1113
      %1115 = vrot.lane.b32.xlu0 %v1074, 28
      %v1116 = vpop.permute.xlu0 %1115
      %1117 = vrot.lane.b32.xlu0 %v1082, 28
      %v1118 = vpop.permute.xlu0 %1117
      %1119 = vrot.lane.b32.xlu0 %v1090, 28
      %v1120 = vpop.permute.xlu0 %1119
      %v1121 = vrot.slane %v1026, 1
      %v1122 = vsel %vm693, %v721, %v1121
      %v1123 = vrot.slane %v1027, 1
      %v1124 = vsel %vm693, %v1121, %v1123
      %v1125 = vrot.slane %v1028, 1
      %v1126 = vsel %vm693, %v1123, %v1125
      %v1127 = vrot.slane %v1061, 1
      %v1128 = vsel %vm693, %v1125, %v1127
      %1129 = vrot.lane.b32.xlu0 %v702, 32
      %v1130 = vpop.permute.xlu0 %1129
      %1131 = vrot.lane.b32.xlu0 %v704, 32
      %v1132 = vpop.permute.xlu0 %1131
      %1133 = vrot.lane.b32.xlu0 %v706, 32
      %v1134 = vpop.permute.xlu0 %1133
      %1135 = vrot.lane.b32.xlu0 %v708, 32
      %v1136 = vpop.permute.xlu0 %1135
      %1137 = vrot.lane.b32.xlu0 %v710, 32
      %v1138 = vpop.permute.xlu0 %1137
      %1139 = vrot.lane.b32.xlu0 %v712, 32
      %v1140 = vpop.permute.xlu0 %1139
      %1141 = vrot.lane.b32.xlu0 %v714, 32
      %v1142 = vpop.permute.xlu0 %1141
      %1143 = vrot.lane.b32.xlu0 %v716, 32
      %v1144 = vpop.permute.xlu0 %1143
      %1145 = vrot.lane.b32.xlu0 %v718, 32
      %v1146 = vpop.permute.xlu0 %1145
      %1147 = vrot.lane.b32.xlu0 %v720, 32
      %v1148 = vpop.permute.xlu0 %1147
      %1149 = vrot.lane.b32.xlu0 %v722, 32
      %v1150 = vpop.permute.xlu0 %1149
      %1151 = vrot.lane.b32.xlu0 %v1122, 32
      %v1152 = vpop.permute.xlu0 %1151
      %1153 = vrot.lane.b32.xlu0 %v1124, 32
      %v1154 = vpop.permute.xlu0 %1153
      %1155 = vrot.lane.b32.xlu0 %v1126, 32
      %v1156 = vpop.permute.xlu0 %1155
      %1157 = vrot.lane.b32.xlu0 %v1128, 32
      %v1158 = vpop.permute.xlu0 %1157
      %vm1159 = vcmask 31744
      %v1161 = vsel %vm1159, %v520, %v664
      %v1163 = vsel %vm1159, %v521, %v666
      %v1165 = vsel %vm1159, %v522, %v668
      %v1167 = vsel %vm1159, %v523, %v670
      %v1169 = vsel %vm1159, %v524, %v672
      %v1171 = vsel %vm1159, %v525, %v674
      %v1173 = vsel %vm1159, %v526, %v676
      %v1175 = vsel %vm1159, %v527, %v678
      %v1177 = vsel %vm1159, %v528, %v680
      %v1179 = vsel %vm1159, %v529, %v682
      %v1181 = vsel %vm1159, %v530, %v684
      %v1183 = vsel %vm1159, %v531, %v686
      %v1185 = vsel %vm1159, %v532, %v688
      %v1187 = vsel %vm1159, %v533, %v690
      %v1189 = vsel %vm1159, %v534, %v692
      %vm1190 = vcmask 64512
      %v1192 = vsel %vm1190, %v1161, %v726
      %v1194 = vsel %vm1190, %v1163, %v728
      %v1196 = vsel %vm1190, %v1165, %v730
      %v1198 = vsel %vm1190, %v1167, %v732
      %v1200 = vsel %vm1190, %v1169, %v734
      %v1202 = vsel %vm1190, %v1171, %v736
      %v1204 = vsel %vm1190, %v1173, %v738
      %v1206 = vsel %vm1190, %v1175, %v740
      %v1208 = vsel %vm1190, %v1177, %v742
      %v1210 = vsel %vm1190, %v1179, %v744
      %v1212 = vsel %vm1190, %v1181, %v746
      %v1214 = vsel %vm1190, %v1183, %v748
      %v1216 = vsel %vm1190, %v1185, %v750
      %v1218 = vsel %vm1190, %v1187, %v752
      %v1220 = vsel %vm1190, %v1189, %v754
      %vm1221 = vcmask 97280
      %v1223 = vsel %vm1221, %v1192, %v775
      %v1225 = vsel %vm1221, %v1194, %v777
      %v1227 = vsel %vm1221, %v1196, %v779
      %v1229 = vsel %vm1221, %v1198, %v781
      %v1231 = vsel %vm1221, %v1200, %v783
      %v1233 = vsel %vm1221, %v1202, %v785
      %v1235 = vsel %vm1221, %v1204, %v787
      %v1237 = vsel %vm1221, %v1206, %v789
      %v1239 = vsel %vm1221, %v1208, %v791
      %v1241 = vsel %vm1221, %v1210, %v793
      %v1243 = vsel %vm1221, %v1212, %v795
      %v1245 = vsel %vm1221, %v1214, %v797
      %v1247 = vsel %vm1221, %v1216, %v799
      %v1249 = vsel %vm1221, %v1218, %v801
      %v1251 = vsel %vm1221, %v1220, %v803
      %vm1252 = vcmask 130048
      %v1254 = vsel %vm1252, %v1223, %v932
      %v1256 = vsel %vm1252, %v1225, %v934
      %v1258 = vsel %vm1252, %v1227, %v936
      %v1260 = vsel %vm1252, %v1229, %v938
      %v1262 = vsel %vm1252, %v1231, %v940
      %v1264 = vsel %vm1252, %v1233, %v942
      %v1266 = vsel %vm1252, %v1235, %v944
      %v1268 = vsel %vm1252, %v1237, %v946
      %v1270 = vsel %vm1252, %v1239, %v948
      %v1272 = vsel %vm1252, %v1241, %v950
      %v1274 = vsel %vm1252, %v1243, %v952
      %v1276 = vsel %vm1252, %v1245, %v954
      %v1278 = vsel %vm1252, %v1247, %v956
      %v1280 = vsel %vm1252, %v1249, %v958
      %v1282 = vsel %vm1252, %v1251, %v960
      %vm1283 = vcmask 162816
      %v1285 = vsel %vm1283, %v1254, %v993
      %v1287 = vsel %vm1283, %v1256, %v995
      %v1289 = vsel %vm1283, %v1258, %v997
      %v1291 = vsel %vm1283, %v1260, %v999
      %v1293 = vsel %vm1283, %v1262, %v1001
      %v1295 = vsel %vm1283, %v1264, %v1003
      %v1297 = vsel %vm1283, %v1266, %v1005
      %v1299 = vsel %vm1283, %v1268, %v1007
      %v1301 = vsel %vm1283, %v1270, %v1009
      %v1303 = vsel %vm1283, %v1272, %v1011
      %v1305 = vsel %vm1283, %v1274, %v1013
      %v1307 = vsel %vm1283, %v1276, %v1015
      %v1309 = vsel %vm1283, %v1278, %v1017
      %v1311 = vsel %vm1283, %v1280, %v1019
      %v1313 = vsel %vm1283, %v1282, %v1021
      %vm1314 = vcmask 195584
      %v1316 = vsel %vm1314, %v1285, %v1030
      %v1318 = vsel %vm1314, %v1287, %v1032
      %v1320 = vsel %vm1314, %v1289, %v1034
      %v1322 = vsel %vm1314, %v1291, %v1036
      %v1324 = vsel %vm1314, %v1293, %v1038
      %v1326 = vsel %vm1314, %v1295, %v1040
      %v1328 = vsel %vm1314, %v1297, %v1042
      %v1330 = vsel %vm1314, %v1299, %v1044
      %v1332 = vsel %vm1314, %v1301, %v1046
      %v1334 = vsel %vm1314, %v1303, %v1048
      %v1336 = vsel %vm1314, %v1305, %v1050
      %v1338 = vsel %vm1314, %v1307, %v1052
      %v1340 = vsel %vm1314, %v1309, %v1054
      %v1342 = vsel %vm1314, %v1311, %v1056
      %v1344 = vsel %vm1314, %v1313, %v1058
      %vm1345 = vcmask 228352
      %v1347 = vsel %vm1345, %v1316, %v1092
      %v1349 = vsel %vm1345, %v1318, %v1094
      %v1351 = vsel %vm1345, %v1320, %v1096
      %v1353 = vsel %vm1345, %v1322, %v1098
      %v1355 = vsel %vm1345, %v1324, %v1100
      %v1357 = vsel %vm1345, %v1326, %v1102
      %v1359 = vsel %vm1345, %v1328, %v1104
      %v1361 = vsel %vm1345, %v1330, %v1106
      %v1363 = vsel %vm1345, %v1332, %v1108
      %v1365 = vsel %vm1345, %v1334, %v1110
      %v1367 = vsel %vm1345, %v1336, %v1112
      %v1369 = vsel %vm1345, %v1338, %v1114
      %v1371 = vsel %vm1345, %v1340, %v1116
      %v1373 = vsel %vm1345, %v1342, %v1118
      %v1375 = vsel %vm1345, %v1344, %v1120
      %vm1376 = vcmask 261120
      %v1378 = vsel %vm1376, %v1347, %v1130
      %v1380 = vsel %vm1376, %v1349, %v1132
      %v1382 = vsel %vm1376, %v1351, %v1134
      %v1384 = vsel %vm1376, %v1353, %v1136
      %v1386 = vsel %vm1376, %v1355, %v1138
      %v1388 = vsel %vm1376, %v1357, %v1140
      %v1390 = vsel %vm1376, %v1359, %v1142
      %v1392 = vsel %vm1376, %v1361, %v1144
      %v1394 = vsel %vm1376, %v1363, %v1146
      %v1396 = vsel %vm1376, %v1365, %v1148
      %v1398 = vsel %vm1376, %v1367, %v1150
      %v1400 = vsel %vm1376, %v1369, %v1152
      %v1402 = vsel %vm1376, %v1371, %v1154
      %v1404 = vsel %vm1376, %v1373, %v1156
      %v1406 = vsel %vm1376, %v1375, %v1158
      %v1408 = vperm.slane %v385, 0
      %v1415 = vunpack.c.l.b16 %v380
      %v1416 = vunpack.c.l.b16 %v381
      %v1417 = vunpack.c.l.b16 %v382
      %v1418 = vunpack.c.l.b16 %v383
      %v1419 = vunpack.c.l.b16 %v384
      %v1420 = vpack.c.b16 %v1416, %v1415
      %v1421 = vpack.c.b16 %v1418, %v1417
      %v1422 = vpack.c.b16 %v1419, %v1419
      %vm1425 = vcmask 293888
      %v1426 = vsel %vm1425, %v1378, 0
      %v1428 = vsel %vm1425, %v1380, 0
      %v1430 = vsel %vm1425, %v1382, 0
      %v1432 = vsel %vm1425, %v1384, 0
      %v1434 = vsel %vm1425, %v1386, 0
      %v1436 = vsel %vm1425, %v1388, 0
      %v1438 = vsel %vm1425, %v1390, 0
      %v1440 = vsel %vm1425, %v1392, 0
      %v1442 = vsel %vm1425, %v1394, 0
      %v1444 = vsel %vm1425, %v1396, 0
      %v1446 = vsel %vm1425, %v1398, 0
      %v1448 = vsel %vm1425, %v1400, 0
      %v1450 = vsel %vm1425, %v1402, 0
      %v1452 = vsel %vm1425, %v1404, 0
      %v1454 = vsel %vm1425, %v1406, 0
      %vm1456 = vcmask 1041408
      %v1458 = vsel %vm1456, %v1422, 0
      %1460 = vmatpush.bf16.msra.mxu0 0
      %1461 = vmatpush.bf16.msra.mxu0 0
      %1462 = vmatpush.bf16.msra.mxu0 0
      %1463 = vmatpush.bf16.msra.mxu0 0
      %1464 = vmatpush.bf16.msra.mxu0 0
      %1465 = vmatpush.bf16.msra.mxu0 %v1458
      %1466 = vmatpush.bf16.msra.mxu0 %v1421
      %1467 = vmatpush.bf16.msra.mxu0 %v1420
      %1468 = vmatmul.bf16.gmra.mxu0 %v1426
      %v1469 = vpop.f32.mrf.mxu0
      %v1470 = vadd.f32 %v1408, %v1469
      %v1471 = vpop.f32.mrf.mxu0
      %v1472 = vadd.f32 %v1408, %v1471
      %1473 = vmatmul.bf16.gmra.mxu0 %v1428
      %v1474 = vpop.f32.mrf.mxu0
      %v1475 = vadd.f32 %v1408, %v1474
      %v1476 = vpop.f32.mrf.mxu0
      %v1477 = vadd.f32 %v1408, %v1476
      %1478 = vmatmul.bf16.gmra.mxu0 %v1430
      %v1479 = vpop.f32.mrf.mxu0
      %v1480 = vadd.f32 %v1408, %v1479
      %v1481 = vpop.f32.mrf.mxu0
      %v1482 = vadd.f32 %v1408, %v1481
      %1483 = vmatmul.bf16.gmra.mxu0 %v1432
      %v1484 = vpop.f32.mrf.mxu0
      %v1485 = vadd.f32 %v1408, %v1484
      %v1486 = vpop.f32.mrf.mxu0
      %v1487 = vadd.f32 %v1408, %v1486
      %1488 = vmatmul.bf16.gmra.mxu0 %v1434
      %v1489 = vpop.f32.mrf.mxu0
      %v1490 = vadd.f32 %v1408, %v1489
      %v1491 = vpop.f32.mrf.mxu0
      %v1492 = vadd.f32 %v1408, %v1491
      %1493 = vmatmul.bf16.gmra.mxu0 %v1436
      %v1494 = vpop.f32.mrf.mxu0
      %v1495 = vadd.f32 %v1408, %v1494
      %v1496 = vpop.f32.mrf.mxu0
      %v1497 = vadd.f32 %v1408, %v1496
      %1498 = vmatmul.bf16.gmra.mxu0 %v1438
      %v1499 = vpop.f32.mrf.mxu0
      %v1500 = vadd.f32 %v1408, %v1499
      %v1501 = vpop.f32.mrf.mxu0
      %v1502 = vadd.f32 %v1408, %v1501
      %1503 = vmatmul.bf16.gmra.mxu0 %v1440
      %v1504 = vpop.f32.mrf.mxu0
      %v1505 = vadd.f32 %v1408, %v1504
      %v1506 = vpop.f32.mrf.mxu0
      %v1507 = vadd.f32 %v1408, %v1506
      %1508 = vmatmul.bf16.gmra.mxu0 %v1442
      %v1509 = vpop.f32.mrf.mxu0
      %v1510 = vadd.f32 %v1408, %v1509
      %v1511 = vpop.f32.mrf.mxu0
      %v1512 = vadd.f32 %v1408, %v1511
      %1513 = vmatmul.bf16.gmra.mxu0 %v1444
      %v1514 = vpop.f32.mrf.mxu0
      %v1515 = vadd.f32 %v1408, %v1514
      %v1516 = vpop.f32.mrf.mxu0
      %v1517 = vadd.f32 %v1408, %v1516
      %1518 = vmatmul.bf16.gmra.mxu0 %v1446
      %v1519 = vpop.f32.mrf.mxu0
      %v1520 = vadd.f32 %v1408, %v1519
      %v1521 = vpop.f32.mrf.mxu0
      %v1522 = vadd.f32 %v1408, %v1521
      %1523 = vmatmul.bf16.gmra.mxu0 %v1448
      %v1524 = vpop.f32.mrf.mxu0
      %v1525 = vadd.f32 %v1408, %v1524
      %v1526 = vpop.f32.mrf.mxu0
      %v1527 = vadd.f32 %v1408, %v1526
      %1528 = vmatmul.bf16.gmra.mxu0 %v1450
      %v1529 = vpop.f32.mrf.mxu0
      %v1530 = vadd.f32 %v1408, %v1529
      %v1531 = vpop.f32.mrf.mxu0
      %v1532 = vadd.f32 %v1408, %v1531
      %1533 = vmatmul.bf16.gmra.mxu0 %v1452
      %v1534 = vpop.f32.mrf.mxu0
      %v1535 = vadd.f32 %v1408, %v1534
      %v1536 = vpop.f32.mrf.mxu0
      %v1537 = vadd.f32 %v1408, %v1536
      %1538 = vmatmul.bf16.gmra.mxu0 %v1454
      %v1539 = vpop.f32.mrf.mxu0
      %v1540 = vadd.f32 %v1408, %v1539
      %v1541 = vpop.f32.mrf.mxu0
      %v1542 = vadd.f32 %v1408, %v1541
      %1543 = vdwg.mxu0
      %v1544 = vmax.f32 %v1470, 0.0
      %v1545 = vmax.f32 %v1472, 0.0
      %v1546 = vmax.f32 %v1475, 0.0
      %v1547 = vmax.f32 %v1477, 0.0
      %v1548 = vmax.f32 %v1480, 0.0
      %v1549 = vmax.f32 %v1482, 0.0
      %v1550 = vmax.f32 %v1485, 0.0
      %v1551 = vmax.f32 %v1487, 0.0
      %v1552 = vmax.f32 %v1490, 0.0
      %v1553 = vmax.f32 %v1492, 0.0
      %v1554 = vmax.f32 %v1495, 0.0
      %v1555 = vmax.f32 %v1497, 0.0
      %v1556 = vmax.f32 %v1500, 0.0
      %v1557 = vmax.f32 %v1502, 0.0
      %v1558 = vmax.f32 %v1505, 0.0
      %v1559 = vmax.f32 %v1507, 0.0
      %v1560 = vmax.f32 %v1510, 0.0
      %v1561 = vmax.f32 %v1512, 0.0
      %v1562 = vmax.f32 %v1515, 0.0
      %v1563 = vmax.f32 %v1517, 0.0
      %v1564 = vmax.f32 %v1520, 0.0
      %v1565 = vmax.f32 %v1522, 0.0
      %v1566 = vmax.f32 %v1525, 0.0
      %v1567 = vmax.f32 %v1527, 0.0
      %v1568 = vmax.f32 %v1530, 0.0
      %v1569 = vmax.f32 %v1532, 0.0
      %v1570 = vmax.f32 %v1535, 0.0
      %v1571 = vmax.f32 %v1537, 0.0
      %v1572 = vmax.f32 %v1540, 0.0
      %v1573 = vmax.f32 %v1542, 0.0
      %v1574 = vsel %vm350, 1, 0
      %v1575 = vsel %vm351, 1, 0
      %v1576 = vsel %vm352, 1, 0
      %v1577 = vsel %vm353, 1, 0
      %v1578 = vsel %vm354, 1, 0
      %v1579 = vsel %vm355, 1, 0
      %v1580 = vsel %vm356, 1, 0
      %v1581 = vsel %vm357, 1, 0
      %v1582 = vsel %vm358, 1, 0
      %v1583 = vsel %vm359, 1, 0
      %v1584 = vsel %vm360, 1, 0
      %v1585 = vsel %vm361, 1, 0
      %v1586 = vsel %vm362, 1, 0
      %v1587 = vsel %vm363, 1, 0
      %v1588 = vsel %vm364, 1, 0
      %v1589 = vsel %vm365, 1, 0
      %v1590 = vsel %vm366, 1, 0
      %v1591 = vsel %vm367, 1, 0
      %v1592 = vsel %vm368, 1, 0
      %v1593 = vsel %vm369, 1, 0
      %v1594 = vsel %vm370, 1, 0
      %v1595 = vsel %vm371, 1, 0
      %v1596 = vsel %vm372, 1, 0
      %v1597 = vsel %vm373, 1, 0
      %v1598 = vsel %vm374, 1, 0
      %v1599 = vsel %vm375, 1, 0
      %v1600 = vsel %vm376, 1, 0
      %v1601 = vsel %vm377, 1, 0
      %v1602 = vsel %vm378, 1, 0
      %v1603 = vsel %vm379, 1, 0
      %vm1604 = vcmp.eq.s32.totalorder %v1574, 1
      %vm1605 = vcmp.eq.s32.totalorder %v1575, 1
      %vm1606 = vcmp.eq.s32.totalorder %v1576, 1
      %vm1607 = vcmp.eq.s32.totalorder %v1577, 1
      %vm1608 = vcmp.eq.s32.totalorder %v1578, 1
      %vm1609 = vcmp.eq.s32.totalorder %v1579, 1
      %vm1610 = vcmp.eq.s32.totalorder %v1580, 1
      %vm1611 = vcmp.eq.s32.totalorder %v1581, 1
      %vm1612 = vcmp.eq.s32.totalorder %v1582, 1
      %vm1613 = vcmp.eq.s32.totalorder %v1583, 1
      %vm1614 = vcmp.eq.s32.totalorder %v1584, 1
      %vm1615 = vcmp.eq.s32.totalorder %v1585, 1
      %vm1616 = vcmp.eq.s32.totalorder %v1586, 1
      %vm1617 = vcmp.eq.s32.totalorder %v1587, 1
      %vm1618 = vcmp.eq.s32.totalorder %v1588, 1
      %vm1619 = vcmp.eq.s32.totalorder %v1589, 1
      %vm1620 = vcmp.eq.s32.totalorder %v1590, 1
      %vm1621 = vcmp.eq.s32.totalorder %v1591, 1
      %vm1622 = vcmp.eq.s32.totalorder %v1592, 1
      %vm1623 = vcmp.eq.s32.totalorder %v1593, 1
      %vm1624 = vcmp.eq.s32.totalorder %v1594, 1
      %vm1625 = vcmp.eq.s32.totalorder %v1595, 1
      %vm1626 = vcmp.eq.s32.totalorder %v1596, 1
      %vm1627 = vcmp.eq.s32.totalorder %v1597, 1
      %vm1628 = vcmp.eq.s32.totalorder %v1598, 1
      %vm1629 = vcmp.eq.s32.totalorder %v1599, 1
      %vm1630 = vcmp.eq.s32.totalorder %v1600, 1
      %vm1631 = vcmp.eq.s32.totalorder %v1601, 1
      %vm1632 = vcmp.eq.s32.totalorder %v1602, 1
      %vm1633 = vcmp.eq.s32.totalorder %v1603, 1
      %v1634 = vsel %vm1604, %v1544, 0.0
      %v1635 = vsel %vm1605, %v1545, 0.0
      %v1636 = vsel %vm1606, %v1546, 0.0
      %v1637 = vsel %vm1607, %v1547, 0.0
      %v1638 = vsel %vm1608, %v1548, 0.0
      %v1639 = vsel %vm1609, %v1549, 0.0
      %v1640 = vsel %vm1610, %v1550, 0.0
      %v1641 = vsel %vm1611, %v1551, 0.0
      %v1642 = vsel %vm1612, %v1552, 0.0
      %v1643 = vsel %vm1613, %v1553, 0.0
      %v1644 = vsel %vm1614, %v1554, 0.0
      %v1645 = vsel %vm1615, %v1555, 0.0
      %v1646 = vsel %vm1616, %v1556, 0.0
      %v1647 = vsel %vm1617, %v1557, 0.0
      %v1648 = vsel %vm1618, %v1558, 0.0
      %v1649 = vsel %vm1619, %v1559, 0.0
      %v1650 = vsel %vm1620, %v1560, 0.0
      %v1651 = vsel %vm1621, %v1561, 0.0
      %v1652 = vsel %vm1622, %v1562, 0.0
      %v1653 = vsel %vm1623, %v1563, 0.0
      %v1654 = vsel %vm1624, %v1564, 0.0
      %v1655 = vsel %vm1625, %v1565, 0.0
      %v1656 = vsel %vm1626, %v1566, 0.0
      %v1657 = vsel %vm1627, %v1567, 0.0
      %v1658 = vsel %vm1628, %v1568, 0.0
      %v1659 = vsel %vm1629, %v1569, 0.0
      %v1660 = vsel %vm1630, %v1570, 0.0
      %v1661 = vsel %vm1631, %v1571, 0.0
      %v1662 = vsel %vm1632, %v1572, 0.0
      %v1663 = vsel %vm1633, %v1573, 0.0
      %v1664 = vpack.c.bf16 %v1634, %v1634
      %v1665 = vpack.c.bf16 %v1635, %v1635
      %v1666 = vpack.c.bf16 %v1636, %v1636
      %v1667 = vpack.c.bf16 %v1637, %v1637
      %v1668 = vpack.c.bf16 %v1638, %v1638
      %v1669 = vpack.c.bf16 %v1639, %v1639
      %v1670 = vpack.c.bf16 %v1640, %v1640
      %v1671 = vpack.c.bf16 %v1641, %v1641
      %v1672 = vpack.c.bf16 %v1642, %v1642
      %v1673 = vpack.c.bf16 %v1643, %v1643
      %v1674 = vpack.c.bf16 %v1644, %v1644
      %v1675 = vpack.c.bf16 %v1645, %v1645
      %v1676 = vpack.c.bf16 %v1646, %v1646
      %v1677 = vpack.c.bf16 %v1647, %v1647
      %v1678 = vpack.c.bf16 %v1648, %v1648
      %v1679 = vpack.c.bf16 %v1649, %v1649
      %v1680 = vpack.c.bf16 %v1650, %v1650
      %v1681 = vpack.c.bf16 %v1651, %v1651
      %v1682 = vpack.c.bf16 %v1652, %v1652
      %v1683 = vpack.c.bf16 %v1653, %v1653
      %v1684 = vpack.c.bf16 %v1654, %v1654
      %v1685 = vpack.c.bf16 %v1655, %v1655
      %v1686 = vpack.c.bf16 %v1656, %v1656
      %v1687 = vpack.c.bf16 %v1657, %v1657
      %v1688 = vpack.c.bf16 %v1658, %v1658
      %v1689 = vpack.c.bf16 %v1659, %v1659
      %v1690 = vpack.c.bf16 %v1660, %v1660
      %v1691 = vpack.c.bf16 %v1661, %v1661
      %v1692 = vpack.c.bf16 %v1662, %v1662
      %v1693 = vpack.c.bf16 %v1663, %v1663
      %v1718 = vunpack.c.l.b16 %v1664
      %v1719 = vunpack.c.l.b16 %v1665
      %v1720 = vunpack.c.l.b16 %v1666
      %v1721 = vunpack.c.l.b16 %v1667
      %v1722 = vunpack.c.l.b16 %v1668
      %v1723 = vunpack.c.l.b16 %v1669
      %v1724 = vunpack.c.l.b16 %v1670
      %v1725 = vunpack.c.l.b16 %v1671
      %v1726 = vunpack.c.l.b16 %v1672
      %v1727 = vunpack.c.l.b16 %v1673
      %v1728 = vunpack.c.l.b16 %v1674
      %v1729 = vunpack.c.l.b16 %v1675
      %v1730 = vunpack.c.l.b16 %v1676
      %v1731 = vunpack.c.l.b16 %v1677
      %v1732 = vunpack.c.l.b16 %v1678
      %v1733 = vunpack.c.l.b16 %v1679
      %v1734 = vunpack.c.l.b16 %v1680
      %v1735 = vunpack.c.l.b16 %v1681
      %v1736 = vunpack.c.l.b16 %v1682
      %v1737 = vunpack.c.l.b16 %v1683
      %v1738 = vunpack.c.l.b16 %v1684
      %v1739 = vunpack.c.l.b16 %v1685
      %v1740 = vunpack.c.l.b16 %v1686
      %v1741 = vunpack.c.l.b16 %v1687
      %v1742 = vpack.c.b16 %v1719, %v1718
      %v1743 = vpack.c.b16 %v1721, %v1720
      %v1744 = vpack.c.b16 %v1723, %v1722
      %v1745 = vpack.c.b16 %v1725, %v1724
      %v1746 = vpack.c.b16 %v1727, %v1726
      %v1747 = vpack.c.b16 %v1729, %v1728
      %v1748 = vpack.c.b16 %v1731, %v1730
      %v1749 = vpack.c.b16 %v1733, %v1732
      %v1750 = vpack.c.b16 %v1735, %v1734
      %v1751 = vpack.c.b16 %v1737, %v1736
      %v1752 = vpack.c.b16 %v1739, %v1738
      %v1753 = vpack.c.b16 %v1741, %v1740
      %v1755 = vshrl.u32 %v1742, 16
      %v1757 = vshll.u32 %v1742, 16
      %v1759 = vrot.slane %v1757, 1
      %v1760 = vor.u32 %v1755, %v1759
      %v1762 = vshll.u32 %v1743, 16
      %v1764 = vrot.slane %v1762, 1
      %v1765 = vsel %vm538, %v1760, %v1764
      %v1766 = vshrl.u32 %v1743, 16
      %v1768 = vor.u32 %v1766, %v1764
      %v1770 = vshll.u32 %v1744, 16
      %v1772 = vrot.slane %v1770, 1
      %v1773 = vsel %vm538, %v1768, %v1772
      %v1774 = vshrl.u32 %v1744, 16
      %v1776 = vor.u32 %v1774, %v1772
      %v1778 = vshll.u32 %v1745, 16
      %v1780 = vrot.slane %v1778, 1
      %v1781 = vsel %vm538, %v1776, %v1780
      %v1782 = vshrl.u32 %v1745, 16
      %v1784 = vor.u32 %v1782, %v1780
      %v1786 = vshll.u32 %v1746, 16
      %v1788 = vrot.slane %v1786, 1
      %v1789 = vsel %vm538, %v1784, %v1788
      %v1790 = vshrl.u32 %v1746, 16
      %v1792 = vor.u32 %v1790, %v1788
      %v1794 = vshll.u32 %v1747, 16
      %v1796 = vrot.slane %v1794, 1
      %v1797 = vsel %vm538, %v1792, %v1796
      %v1798 = vshrl.u32 %v1747, 16
      %v1800 = vor.u32 %v1798, %v1796
      %v1802 = vshll.u32 %v1748, 16
      %v1804 = vrot.slane %v1802, 1
      %v1805 = vsel %vm538, %v1800, %v1804
      %v1806 = vshrl.u32 %v1748, 16
      %v1808 = vor.u32 %v1806, %v1804
      %v1810 = vshll.u32 %v1749, 16
      %v1812 = vrot.slane %v1810, 1
      %v1813 = vsel %vm538, %v1808, %v1812
      %v1814 = vshrl.u32 %v1749, 16
      %v1816 = vor.u32 %v1814, %v1812
      %v1818 = vshll.u32 %v1750, 16
      %v1820 = vrot.slane %v1818, 1
      %v1821 = vsel %vm538, %v1816, %v1820
      %v1822 = vshrl.u32 %v1750, 16
      %v1824 = vor.u32 %v1822, %v1820
      %v1826 = vshll.u32 %v1751, 16
      %v1828 = vrot.slane %v1826, 1
      %v1829 = vsel %vm538, %v1824, %v1828
      %v1830 = vshrl.u32 %v1751, 16
      %v1832 = vor.u32 %v1830, %v1828
      %v1834 = vshll.u32 %v1752, 16
      %v1836 = vrot.slane %v1834, 1
      %v1837 = vsel %vm538, %v1832, %v1836
      %v1838 = vshrl.u32 %v1752, 16
      %v1840 = vor.u32 %v1838, %v1836
      %v1842 = vshll.u32 %v1753, 16
      %v1844 = vrot.slane %v1842, 1
      %v1845 = vsel %vm538, %v1840, %v1844
      %v1846 = vshrl.u32 %v1753, 16
      %v1848 = vor.u32 %v1846, %v1844
      %1849 = vrot.lane.b32.xlu0 %v1765, 32
      %v1850 = vpop.permute.xlu0 %1849
      %1851 = vrot.lane.b32.xlu0 %v1773, 32
      %v1852 = vpop.permute.xlu0 %1851
      %1853 = vrot.lane.b32.xlu0 %v1781, 32
      %v1854 = vpop.permute.xlu0 %1853
      %1855 = vrot.lane.b32.xlu0 %v1789, 32
      %v1856 = vpop.permute.xlu0 %1855
      %1857 = vrot.lane.b32.xlu0 %v1797, 32
      %v1858 = vpop.permute.xlu0 %1857
      %1859 = vrot.lane.b32.xlu0 %v1805, 32
      %v1860 = vpop.permute.xlu0 %1859
      %1861 = vrot.lane.b32.xlu0 %v1813, 32
      %v1862 = vpop.permute.xlu0 %1861
      %1863 = vrot.lane.b32.xlu0 %v1821, 32
      %v1864 = vpop.permute.xlu0 %1863
      %1865 = vrot.lane.b32.xlu0 %v1829, 32
      %v1866 = vpop.permute.xlu0 %1865
      %1867 = vrot.lane.b32.xlu0 %v1837, 32
      %v1868 = vpop.permute.xlu0 %1867
      %1869 = vrot.lane.b32.xlu0 %v1845, 32
      %v1870 = vpop.permute.xlu0 %1869
      %1871 = vrot.lane.b32.xlu0 %v1848, 32
      %v1872 = vpop.permute.xlu0 %1871
      %v1873 = vrot.slane %v1742, 1
      %v1874 = vrot.slane %v1743, 1
      %v1875 = vsel %vm693, %v1873, %v1874
      %v1876 = vrot.slane %v1744, 1
      %v1877 = vsel %vm693, %v1874, %v1876
      %v1878 = vrot.slane %v1745, 1
      %v1879 = vsel %vm693, %v1876, %v1878
      %v1880 = vrot.slane %v1746, 1
      %v1881 = vsel %vm693, %v1878, %v1880
      %v1882 = vrot.slane %v1747, 1
      %v1883 = vsel %vm693, %v1880, %v1882
      %v1884 = vrot.slane %v1748, 1
      %v1885 = vsel %vm693, %v1882, %v1884
      %v1886 = vrot.slane %v1749, 1
      %v1887 = vsel %vm693, %v1884, %v1886
      %v1888 = vrot.slane %v1750, 1
      %v1889 = vsel %vm693, %v1886, %v1888
      %v1890 = vrot.slane %v1751, 1
      %v1891 = vsel %vm693, %v1888, %v1890
      %v1892 = vrot.slane %v1752, 1
      %v1893 = vsel %vm693, %v1890, %v1892
      %v1894 = vrot.slane %v1753, 1
      %v1895 = vsel %vm693, %v1892, %v1894
      %1896 = vrot.lane.b32.xlu0 %v1875, 64
      %v1897 = vpop.permute.xlu0 %1896
      %1898 = vrot.lane.b32.xlu0 %v1877, 64
      %v1899 = vpop.permute.xlu0 %1898
      %1900 = vrot.lane.b32.xlu0 %v1879, 64
      %v1901 = vpop.permute.xlu0 %1900
      %1902 = vrot.lane.b32.xlu0 %v1881, 64
      %v1903 = vpop.permute.xlu0 %1902
      %1904 = vrot.lane.b32.xlu0 %v1883, 64
      %v1905 = vpop.permute.xlu0 %1904
      %1906 = vrot.lane.b32.xlu0 %v1885, 64
      %v1907 = vpop.permute.xlu0 %1906
      %1908 = vrot.lane.b32.xlu0 %v1887, 64
      %v1909 = vpop.permute.xlu0 %1908
      %1910 = vrot.lane.b32.xlu0 %v1889, 64
      %v1911 = vpop.permute.xlu0 %1910
      %1912 = vrot.lane.b32.xlu0 %v1891, 64
      %v1913 = vpop.permute.xlu0 %1912
      %1914 = vrot.lane.b32.xlu0 %v1893, 64
      %v1915 = vpop.permute.xlu0 %1914
      %1916 = vrot.lane.b32.xlu0 %v1895, 64
      %v1917 = vpop.permute.xlu0 %1916
      %1918 = vrot.lane.b32.xlu0 %v1894, 64
      %v1919 = vpop.permute.xlu0 %1918
      %v1923 = vunpack.c.l.b16 %v1688
      %v1924 = vunpack.c.l.b16 %v1689
      %v1925 = vunpack.c.l.b16 %v1690
      %v1926 = vpack.c.b16 %v1722, %v1721
      %v1927 = vpack.c.b16 %v1724, %v1723
      %v1928 = vpack.c.b16 %v1726, %v1725
      %v1929 = vpack.c.b16 %v1728, %v1727
      %v1930 = vpack.c.b16 %v1730, %v1729
      %v1931 = vpack.c.b16 %v1732, %v1731
      %v1932 = vpack.c.b16 %v1734, %v1733
      %v1933 = vpack.c.b16 %v1736, %v1735
      %v1934 = vpack.c.b16 %v1738, %v1737
      %v1935 = vpack.c.b16 %v1740, %v1739
      %v1936 = vpack.c.b16 %v1923, %v1741
      %v1937 = vpack.c.b16 %v1925, %v1924
      %1938 = vrot.lane.b32.xlu0 %v1926, 96
      %v1939 = vpop.permute.xlu0 %1938
      %1940 = vrot.lane.b32.xlu0 %v1927, 96
      %v1941 = vpop.permute.xlu0 %1940
      %1942 = vrot.lane.b32.xlu0 %v1928, 96
      %v1943 = vpop.permute.xlu0 %1942
      %1944 = vrot.lane.b32.xlu0 %v1929, 96
      %v1945 = vpop.permute.xlu0 %1944
      %1946 = vrot.lane.b32.xlu0 %v1930, 96
      %v1947 = vpop.permute.xlu0 %1946
      %1948 = vrot.lane.b32.xlu0 %v1931, 96
      %v1949 = vpop.permute.xlu0 %1948
      %1950 = vrot.lane.b32.xlu0 %v1932, 96
      %v1951 = vpop.permute.xlu0 %1950
      %1952 = vrot.lane.b32.xlu0 %v1933, 96
      %v1953 = vpop.permute.xlu0 %1952
      %1954 = vrot.lane.b32.xlu0 %v1934, 96
      %v1955 = vpop.permute.xlu0 %1954
      %1956 = vrot.lane.b32.xlu0 %v1935, 96
      %v1957 = vpop.permute.xlu0 %1956
      %1958 = vrot.lane.b32.xlu0 %v1936, 96
      %v1959 = vpop.permute.xlu0 %1958
      %1960 = vrot.lane.b32.xlu0 %v1937, 96
      %v1961 = vpop.permute.xlu0 %1960
      %v1963 = vshrl.u32 %v1926, 16
      %v1965 = vshll.u32 %v1926, 16
      %v1967 = vrot.slane %v1965, 1
      %v1968 = vor.u32 %v1963, %v1967
      %v1970 = vshll.u32 %v1927, 16
      %v1972 = vrot.slane %v1970, 1
      %v1973 = vsel %vm538, %v1968, %v1972
      %v1974 = vshrl.u32 %v1927, 16
      %v1976 = vor.u32 %v1974, %v1972
      %v1978 = vshll.u32 %v1928, 16
      %v1980 = vrot.slane %v1978, 1
      %v1981 = vsel %vm538, %v1976, %v1980
      %v1982 = vshrl.u32 %v1928, 16
      %v1984 = vor.u32 %v1982, %v1980
      %v1986 = vshll.u32 %v1929, 16
      %v1988 = vrot.slane %v1986, 1
      %v1989 = vsel %vm538, %v1984, %v1988
      %v1990 = vshrl.u32 %v1929, 16
      %v1992 = vor.u32 %v1990, %v1988
      %v1994 = vshll.u32 %v1930, 16
      %v1996 = vrot.slane %v1994, 1
      %v1997 = vsel %vm538, %v1992, %v1996
      %v1998 = vshrl.u32 %v1930, 16
      %v2000 = vor.u32 %v1998, %v1996
      %v2002 = vshll.u32 %v1931, 16
      %v2004 = vrot.slane %v2002, 1
      %v2005 = vsel %vm538, %v2000, %v2004
      %v2006 = vshrl.u32 %v1931, 16
      %v2008 = vor.u32 %v2006, %v2004
      %v2010 = vshll.u32 %v1932, 16
      %v2012 = vrot.slane %v2010, 1
      %v2013 = vsel %vm538, %v2008, %v2012
      %v2014 = vshrl.u32 %v1932, 16
      %v2016 = vor.u32 %v2014, %v2012
      %v2018 = vshll.u32 %v1933, 16
      %v2020 = vrot.slane %v2018, 1
      %v2021 = vsel %vm538, %v2016, %v2020
      %v2022 = vshrl.u32 %v1933, 16
      %v2024 = vor.u32 %v2022, %v2020
      %v2026 = vshll.u32 %v1934, 16
      %v2028 = vrot.slane %v2026, 1
      %v2029 = vsel %vm538, %v2024, %v2028
      %v2030 = vshrl.u32 %v1934, 16
      %v2032 = vor.u32 %v2030, %v2028
      %v2034 = vshll.u32 %v1935, 16
      %v2036 = vrot.slane %v2034, 1
      %v2037 = vsel %vm538, %v2032, %v2036
      %v2038 = vshrl.u32 %v1935, 16
      %v2040 = vor.u32 %v2038, %v2036
      %v2042 = vshll.u32 %v1936, 16
      %v2044 = vrot.slane %v2042, 1
      %v2045 = vsel %vm538, %v2040, %v2044
      %v2046 = vshrl.u32 %v1936, 16
      %v2048 = vor.u32 %v2046, %v2044
      %v2050 = vshll.u32 %v1937, 16
      %v2052 = vrot.slane %v2050, 1
      %v2053 = vsel %vm538, %v2048, %v2052
      %v2054 = vshrl.u32 %v1937, 16
      %v2056 = vor.u32 %v2054, %v2052
      %v2057 = vrot.slane %v1926, 1
      %v2058 = vrot.slane %v1927, 1
      %v2059 = vsel %vm693, %v2057, %v2058
      %v2060 = vrot.slane %v1928, 1
      %v2061 = vsel %vm693, %v2058, %v2060
      %v2062 = vrot.slane %v1929, 1
      %v2063 = vsel %vm693, %v2060, %v2062
      %v2064 = vrot.slane %v1930, 1
      %v2065 = vsel %vm693, %v2062, %v2064
      %v2066 = vrot.slane %v1931, 1
      %v2067 = vsel %vm693, %v2064, %v2066
      %v2068 = vrot.slane %v1932, 1
      %v2069 = vsel %vm693, %v2066, %v2068
      %v2070 = vrot.slane %v1933, 1
      %v2071 = vsel %vm693, %v2068, %v2070
      %v2072 = vrot.slane %v1934, 1
      %v2073 = vsel %vm693, %v2070, %v2072
      %v2074 = vrot.slane %v1935, 1
      %v2075 = vsel %vm693, %v2072, %v2074
      %v2076 = vrot.slane %v1936, 1
      %v2077 = vsel %vm693, %v2074, %v2076
      %v2078 = vrot.slane %v1937, 1
      %v2079 = vsel %vm693, %v2076, %v2078
      %2080 = vrot.lane.b32.xlu0 %v2059, 32
      %v2081 = vpop.permute.xlu0 %2080
      %2082 = vrot.lane.b32.xlu0 %v2061, 32
      %v2083 = vpop.permute.xlu0 %2082
      %2084 = vrot.lane.b32.xlu0 %v2063, 32
      %v2085 = vpop.permute.xlu0 %2084
      %2086 = vrot.lane.b32.xlu0 %v2065, 32
      %v2087 = vpop.permute.xlu0 %2086
      %2088 = vrot.lane.b32.xlu0 %v2067, 32
      %v2089 = vpop.permute.xlu0 %2088
      %2090 = vrot.lane.b32.xlu0 %v2069, 32
      %v2091 = vpop.permute.xlu0 %2090
      %2092 = vrot.lane.b32.xlu0 %v2071, 32
      %v2093 = vpop.permute.xlu0 %2092
      %2094 = vrot.lane.b32.xlu0 %v2073, 32
      %v2095 = vpop.permute.xlu0 %2094
      %2096 = vrot.lane.b32.xlu0 %v2075, 32
      %v2097 = vpop.permute.xlu0 %2096
      %2098 = vrot.lane.b32.xlu0 %v2077, 32
      %v2099 = vpop.permute.xlu0 %2098
      %2100 = vrot.lane.b32.xlu0 %v2079, 32
      %v2101 = vpop.permute.xlu0 %2100
      %2102 = vrot.lane.b32.xlu0 %v2078, 32
      %v2103 = vpop.permute.xlu0 %2102
      %v2107 = vunpack.c.l.b16 %v1691
      %v2108 = vunpack.c.l.b16 %v1692
      %v2109 = vunpack.c.l.b16 %v1693
      %v2110 = vpack.c.b16 %v1924, %v1923
      %v2111 = vpack.c.b16 %v2107, %v1925
      %v2112 = vpack.c.b16 %v2109, %v2108
      %2113 = vrot.lane.b32.xlu0 %v1745, 64
      %v2114 = vpop.permute.xlu0 %2113
      %2115 = vrot.lane.b32.xlu0 %v1746, 64
      %v2116 = vpop.permute.xlu0 %2115
      %2117 = vrot.lane.b32.xlu0 %v1747, 64
      %v2118 = vpop.permute.xlu0 %2117
      %2119 = vrot.lane.b32.xlu0 %v1748, 64
      %v2120 = vpop.permute.xlu0 %2119
      %2121 = vrot.lane.b32.xlu0 %v1749, 64
      %v2122 = vpop.permute.xlu0 %2121
      %2123 = vrot.lane.b32.xlu0 %v1750, 64
      %v2124 = vpop.permute.xlu0 %2123
      %2125 = vrot.lane.b32.xlu0 %v1751, 64
      %v2126 = vpop.permute.xlu0 %2125
      %2127 = vrot.lane.b32.xlu0 %v1752, 64
      %v2128 = vpop.permute.xlu0 %2127
      %2129 = vrot.lane.b32.xlu0 %v1753, 64
      %v2130 = vpop.permute.xlu0 %2129
      %2131 = vrot.lane.b32.xlu0 %v2110, 64
      %v2132 = vpop.permute.xlu0 %2131
      %2133 = vrot.lane.b32.xlu0 %v2111, 64
      %v2134 = vpop.permute.xlu0 %2133
      %2135 = vrot.lane.b32.xlu0 %v2112, 64
      %v2136 = vpop.permute.xlu0 %2135
      %v2138 = vshll.u32 %v2110, 16
      %v2140 = vrot.slane %v2138, 1
      %v2141 = vsel %vm538, %v1848, %v2140
      %v2142 = vshrl.u32 %v2110, 16
      %v2144 = vor.u32 %v2142, %v2140
      %v2146 = vshll.u32 %v2111, 16
      %v2148 = vrot.slane %v2146, 1
      %v2149 = vsel %vm538, %v2144, %v2148
      %v2150 = vshrl.u32 %v2111, 16
      %v2152 = vor.u32 %v2150, %v2148
      %v2154 = vshll.u32 %v2112, 16
      %v2156 = vrot.slane %v2154, 1
      %v2157 = vsel %vm538, %v2152, %v2156
      %v2158 = vshrl.u32 %v2112, 16
      %v2160 = vor.u32 %v2158, %v2156
      %2161 = vrot.lane.b32.xlu0 %v1789, 96
      %v2162 = vpop.permute.xlu0 %2161
      %2163 = vrot.lane.b32.xlu0 %v1797, 96
      %v2164 = vpop.permute.xlu0 %2163
      %2165 = vrot.lane.b32.xlu0 %v1805, 96
      %v2166 = vpop.permute.xlu0 %2165
      %2167 = vrot.lane.b32.xlu0 %v1813, 96
      %v2168 = vpop.permute.xlu0 %2167
      %2169 = vrot.lane.b32.xlu0 %v1821, 96
      %v2170 = vpop.permute.xlu0 %2169
      %2171 = vrot.lane.b32.xlu0 %v1829, 96
      %v2172 = vpop.permute.xlu0 %2171
      %2173 = vrot.lane.b32.xlu0 %v1837, 96
      %v2174 = vpop.permute.xlu0 %2173
      %2175 = vrot.lane.b32.xlu0 %v1845, 96
      %v2176 = vpop.permute.xlu0 %2175
      %2177 = vrot.lane.b32.xlu0 %v2141, 96
      %v2178 = vpop.permute.xlu0 %2177
      %2179 = vrot.lane.b32.xlu0 %v2149, 96
      %v2180 = vpop.permute.xlu0 %2179
      %2181 = vrot.lane.b32.xlu0 %v2157, 96
      %v2182 = vpop.permute.xlu0 %2181
      %2183 = vrot.lane.b32.xlu0 %v2160, 96
      %v2184 = vpop.permute.xlu0 %2183
      %v2185 = vrot.slane %v2110, 1
      %v2186 = vsel %vm693, %v1894, %v2185
      %v2187 = vrot.slane %v2111, 1
      %v2188 = vsel %vm693, %v2185, %v2187
      %v2189 = vrot.slane %v2112, 1
      %v2190 = vsel %vm693, %v2187, %v2189
      %v2192 = vsel %vm1376, %v1742, %v1850
      %v2194 = vsel %vm1376, %v1743, %v1852
      %v2196 = vsel %vm1376, %v1744, %v1854
      %v2198 = vsel %vm1376, %v1745, %v1856
      %v2200 = vsel %vm1376, %v1746, %v1858
      %v2202 = vsel %vm1376, %v1747, %v1860
      %v2204 = vsel %vm1376, %v1748, %v1862
      %v2206 = vsel %vm1376, %v1749, %v1864
      %v2208 = vsel %vm1376, %v1750, %v1866
      %v2210 = vsel %vm1376, %v1751, %v1868
      %v2212 = vsel %vm1376, %v1752, %v1870
      %v2214 = vsel %vm1376, %v1753, %v1872
      %vm2215 = vcmask 523264
      %v2217 = vsel %vm2215, %v2192, %v1897
      %v2219 = vsel %vm2215, %v2194, %v1899
      %v2221 = vsel %vm2215, %v2196, %v1901
      %v2223 = vsel %vm2215, %v2198, %v1903
      %v2225 = vsel %vm2215, %v2200, %v1905
      %v2227 = vsel %vm2215, %v2202, %v1907
      %v2229 = vsel %vm2215, %v2204, %v1909
      %v2231 = vsel %vm2215, %v2206, %v1911
      %v2233 = vsel %vm2215, %v2208, %v1913
      %v2235 = vsel %vm2215, %v2210, %v1915
      %v2237 = vsel %vm2215, %v2212, %v1917
      %v2239 = vsel %vm2215, %v2214, %v1919
      %vm2240 = vcmask 785408
      %v2242 = vsel %vm2240, %v2217, %v1939
      %v2245 = vsel %vm2240, %v2219, %v1941
      %v2248 = vsel %vm2240, %v2221, %v1943
      %v2251 = vsel %vm2240, %v2223, %v1945
      %v2254 = vsel %vm2240, %v2225, %v1947
      %v2257 = vsel %vm2240, %v2227, %v1949
      %v2260 = vsel %vm2240, %v2229, %v1951
      %v2263 = vsel %vm2240, %v2231, %v1953
      %v2266 = vsel %vm2240, %v2233, %v1955
      %v2269 = vsel %vm2240, %v2235, %v1957
      %v2272 = vsel %vm2240, %v2237, %v1959
      %v2275 = vsel %vm2240, %v2239, %v1961
      %v2279 = vsel %vm1376, %v1973, %v2081
      %v2282 = vsel %vm1376, %v1981, %v2083
      %v2285 = vsel %vm1376, %v1989, %v2085
      %v2288 = vsel %vm1376, %v1997, %v2087
      %v2291 = vsel %vm1376, %v2005, %v2089
      %v2294 = vsel %vm1376, %v2013, %v2091
      %v2297 = vsel %vm1376, %v2021, %v2093
      %v2300 = vsel %vm1376, %v2029, %v2095
      %v2303 = vsel %vm1376, %v2037, %v2097
      %v2306 = vsel %vm1376, %v2045, %v2099
      %v2309 = vsel %vm1376, %v2053, %v2101
      %v2312 = vsel %vm1376, %v2056, %v2103
      %v2314 = vsel %vm2215, %v2279, %v2114
      %v2316 = vsel %vm2215, %v2282, %v2116
      %v2318 = vsel %vm2215, %v2285, %v2118
      %v2320 = vsel %vm2215, %v2288, %v2120
      %v2322 = vsel %vm2215, %v2291, %v2122
      %v2324 = vsel %vm2215, %v2294, %v2124
      %v2326 = vsel %vm2215, %v2297, %v2126
      %v2328 = vsel %vm2215, %v2300, %v2128
      %v2330 = vsel %vm2215, %v2303, %v2130
      %v2332 = vsel %vm2215, %v2306, %v2132
      %v2334 = vsel %vm2215, %v2309, %v2134
      %v2336 = vsel %vm2215, %v2312, %v2136
      %v2338 = vsel %vm2240, %v2314, %v2162
      %v2341 = vsel %vm2240, %v2316, %v2164
      %v2344 = vsel %vm2240, %v2318, %v2166
      %v2347 = vsel %vm2240, %v2320, %v2168
      %v2350 = vsel %vm2240, %v2322, %v2170
      %v2353 = vsel %vm2240, %v2324, %v2172
      %v2356 = vsel %vm2240, %v2326, %v2174
      %v2359 = vsel %vm2240, %v2328, %v2176
      %v2362 = vsel %vm2240, %v2330, %v2178
      %v2365 = vsel %vm2240, %v2332, %v2180
      %v2368 = vsel %vm2240, %v2334, %v2182
      %v2371 = vsel %vm2240, %v2336, %v2184
      %v2374 = vperm.slane %v422, 0
      %v2412 = vunpack.c.l.b16 %v386
      %v2413 = vunpack.c.l.b16 %v387
      %v2414 = vunpack.c.l.b16 %v388
      %v2415 = vunpack.c.l.b16 %v389
      %v2416 = vunpack.c.l.b16 %v390
      %v2417 = vunpack.c.l.b16 %v391
      %v2418 = vunpack.c.l.b16 %v392
      %v2419 = vunpack.c.l.b16 %v393
      %v2420 = vunpack.c.l.b16 %v394
      %v2421 = vunpack.c.l.b16 %v395
      %v2422 = vunpack.c.l.b16 %v396
      %v2423 = vunpack.c.l.b16 %v397
      %v2424 = vunpack.c.l.b16 %v398
      %v2425 = vunpack.c.l.b16 %v399
      %v2426 = vunpack.c.l.b16 %v400
      %v2427 = vunpack.c.l.b16 %v401
      %v2428 = vunpack.c.l.b16 %v402
      %v2429 = vunpack.c.l.b16 %v403
      %v2430 = vunpack.c.l.b16 %v404
      %v2431 = vunpack.c.l.b16 %v405
      %v2432 = vunpack.c.l.b16 %v406
      %v2433 = vunpack.c.l.b16 %v407
      %v2434 = vunpack.c.l.b16 %v408
      %v2435 = vunpack.c.l.b16 %v409
      %v2436 = vunpack.c.l.b16 %v410
      %v2437 = vunpack.c.l.b16 %v411
      %v2438 = vunpack.c.l.b16 %v412
      %v2439 = vunpack.c.l.b16 %v413
      %v2440 = vunpack.c.l.b16 %v414
      %v2441 = vunpack.c.l.b16 %v415
      %v2442 = vunpack.c.l.b16 %v416
      %v2443 = vunpack.c.l.b16 %v417
      %v2444 = vunpack.c.l.b16 %v418
      %v2445 = vunpack.c.l.b16 %v419
      %v2446 = vunpack.c.l.b16 %v420
      %v2447 = vunpack.c.l.b16 %v421
      %v2448 = vpack.c.b16 %v2413, %v2412
      %v2449 = vpack.c.b16 %v2415, %v2414
      %v2450 = vpack.c.b16 %v2417, %v2416
      %v2451 = vpack.c.b16 %v2419, %v2418
      %v2452 = vpack.c.b16 %v2421, %v2420
      %v2453 = vpack.c.b16 %v2423, %v2422
      %v2454 = vpack.c.b16 %v2425, %v2424
      %v2455 = vpack.c.b16 %v2427, %v2426
      %v2456 = vpack.c.b16 %v2429, %v2428
      %v2457 = vpack.c.b16 %v2431, %v2430
      %v2458 = vpack.c.b16 %v2433, %v2432
      %v2459 = vpack.c.b16 %v2435, %v2434
      %v2460 = vpack.c.b16 %v2437, %v2436
      %v2461 = vpack.c.b16 %v2439, %v2438
      %v2462 = vpack.c.b16 %v2441, %v2440
      %v2463 = vpack.c.b16 %v2443, %v2442
      %v2464 = vpack.c.b16 %v2445, %v2444
      %v2465 = vpack.c.b16 %v2447, %v2446
      %v2485 = vsel %vm1376, %v1881, 0
      %v2488 = vsel %vm1376, %v1883, 0
      %v2491 = vsel %vm1376, %v1885, 0
      %v2494 = vsel %vm1376, %v1887, 0
      %v2497 = vsel %vm1376, %v1889, 0
      %v2500 = vsel %vm1376, %v1891, 0
      %v2503 = vsel %vm1376, %v1893, 0
      %v2506 = vsel %vm1376, %v1895, 0
      %v2509 = vsel %vm1376, %v2186, 0
      %v2512 = vsel %vm1376, %v2188, 0
      %v2515 = vsel %vm1376, %v2190, 0
      %v2518 = vsel %vm1376, %v2189, 0
      %2520 = vmatpush.bf16.msra.mxu0 %v2455
      %2521 = vmatpush.bf16.msra.mxu0 %v2454
      %2522 = vmatpush.bf16.msra.mxu0 %v2453
      %2523 = vmatpush.bf16.msra.mxu0 %v2452
      %2524 = vmatpush.bf16.msra.mxu0 %v2451
      %2525 = vmatpush.bf16.msra.mxu0 %v2450
      %2526 = vmatpush.bf16.msra.mxu0 %v2449
      %2527 = vmatpush.bf16.msra.mxu0 %v2448
      %2528 = vmatmul.bf16.gmra.mxu0 %v2242
      %v2529 = vpop.f32.mrf.mxu0
      %v2530 = vadd.f32 %v2374, %v2529
      %v2531 = vpop.f32.mrf.mxu0
      %v2532 = vadd.f32 %v2374, %v2531
      %2533 = vmatmul.bf16.gmra.mxu0 %v2245
      %v2534 = vpop.f32.mrf.mxu0
      %v2535 = vadd.f32 %v2374, %v2534
      %v2536 = vpop.f32.mrf.mxu0
      %v2537 = vadd.f32 %v2374, %v2536
      %2538 = vmatmul.bf16.gmra.mxu0 %v2248
      %v2539 = vpop.f32.mrf.mxu0
      %v2540 = vadd.f32 %v2374, %v2539
      %v2541 = vpop.f32.mrf.mxu0
      %v2542 = vadd.f32 %v2374, %v2541
      %2543 = vmatmul.bf16.gmra.mxu0 %v2251
      %v2544 = vpop.f32.mrf.mxu0
      %v2545 = vadd.f32 %v2374, %v2544
      %v2546 = vpop.f32.mrf.mxu0
      %v2547 = vadd.f32 %v2374, %v2546
      %2548 = vmatmul.bf16.gmra.mxu0 %v2254
      %v2549 = vpop.f32.mrf.mxu0
      %v2550 = vadd.f32 %v2374, %v2549
      %v2551 = vpop.f32.mrf.mxu0
      %v2552 = vadd.f32 %v2374, %v2551
      %2553 = vmatmul.bf16.gmra.mxu0 %v2257
      %v2554 = vpop.f32.mrf.mxu0
      %v2555 = vadd.f32 %v2374, %v2554
      %v2556 = vpop.f32.mrf.mxu0
      %v2557 = vadd.f32 %v2374, %v2556
      %2558 = vmatmul.bf16.gmra.mxu0 %v2260
      %v2559 = vpop.f32.mrf.mxu0
      %v2560 = vadd.f32 %v2374, %v2559
      %v2561 = vpop.f32.mrf.mxu0
      %v2562 = vadd.f32 %v2374, %v2561
      %2563 = vmatmul.bf16.gmra.mxu0 %v2263
      %v2564 = vpop.f32.mrf.mxu0
      %v2565 = vadd.f32 %v2374, %v2564
      %v2566 = vpop.f32.mrf.mxu0
      %v2567 = vadd.f32 %v2374, %v2566
      %2568 = vmatmul.bf16.gmra.mxu0 %v2266
      %v2569 = vpop.f32.mrf.mxu0
      %v2570 = vadd.f32 %v2374, %v2569
      %v2571 = vpop.f32.mrf.mxu0
      %v2572 = vadd.f32 %v2374, %v2571
      %2573 = vmatmul.bf16.gmra.mxu0 %v2269
      %v2574 = vpop.f32.mrf.mxu0
      %v2575 = vadd.f32 %v2374, %v2574
      %v2576 = vpop.f32.mrf.mxu0
      %v2577 = vadd.f32 %v2374, %v2576
      %2578 = vmatmul.bf16.gmra.mxu0 %v2272
      %v2579 = vpop.f32.mrf.mxu0
      %v2580 = vadd.f32 %v2374, %v2579
      %v2581 = vpop.f32.mrf.mxu0
      %v2582 = vadd.f32 %v2374, %v2581
      %2583 = vmatmul.bf16.gmra.mxu0 %v2275
      %v2584 = vpop.f32.mrf.mxu0
      %v2585 = vadd.f32 %v2374, %v2584
      %v2586 = vpop.f32.mrf.mxu0
      %v2587 = vadd.f32 %v2374, %v2586
      %2588 = vdwg.mxu0
      %2589 = vmatpush.bf16.msra.mxu0 %v2463
      %2590 = vmatpush.bf16.msra.mxu0 %v2462
      %2591 = vmatpush.bf16.msra.mxu0 %v2461
      %2592 = vmatpush.bf16.msra.mxu0 %v2460
      %2593 = vmatpush.bf16.msra.mxu0 %v2459
      %2594 = vmatpush.bf16.msra.mxu0 %v2458
      %2595 = vmatpush.bf16.msra.mxu0 %v2457
      %2596 = vmatpush.bf16.msra.mxu0 %v2456
      %2597 = vmatmul.bf16.gmra.mxu0 %v2338
      %v2598 = vpop.f32.mrf.mxu0
      %v2599 = vadd.f32 %v2530, %v2598
      %v2600 = vpop.f32.mrf.mxu0
      %v2601 = vadd.f32 %v2532, %v2600
      %2602 = vmatmul.bf16.gmra.mxu0 %v2341
      %v2603 = vpop.f32.mrf.mxu0
      %v2604 = vadd.f32 %v2535, %v2603
      %v2605 = vpop.f32.mrf.mxu0
      %v2606 = vadd.f32 %v2537, %v2605
      %2607 = vmatmul.bf16.gmra.mxu0 %v2344
      %v2608 = vpop.f32.mrf.mxu0
      %v2609 = vadd.f32 %v2540, %v2608
      %v2610 = vpop.f32.mrf.mxu0
      %v2611 = vadd.f32 %v2542, %v2610
      %2612 = vmatmul.bf16.gmra.mxu0 %v2347
      %v2613 = vpop.f32.mrf.mxu0
      %v2614 = vadd.f32 %v2545, %v2613
      %v2615 = vpop.f32.mrf.mxu0
      %v2616 = vadd.f32 %v2547, %v2615
      %2617 = vmatmul.bf16.gmra.mxu0 %v2350
      %v2618 = vpop.f32.mrf.mxu0
      %v2619 = vadd.f32 %v2550, %v2618
      %v2620 = vpop.f32.mrf.mxu0
      %v2621 = vadd.f32 %v2552, %v2620
      %2622 = vmatmul.bf16.gmra.mxu0 %v2353
      %v2623 = vpop.f32.mrf.mxu0
      %v2624 = vadd.f32 %v2555, %v2623
      %v2625 = vpop.f32.mrf.mxu0
      %v2626 = vadd.f32 %v2557, %v2625
      %2627 = vmatmul.bf16.gmra.mxu0 %v2356
      %v2628 = vpop.f32.mrf.mxu0
      %v2629 = vadd.f32 %v2560, %v2628
      %v2630 = vpop.f32.mrf.mxu0
      %v2631 = vadd.f32 %v2562, %v2630
      %2632 = vmatmul.bf16.gmra.mxu0 %v2359
      %v2633 = vpop.f32.mrf.mxu0
      %v2634 = vadd.f32 %v2565, %v2633
      %v2635 = vpop.f32.mrf.mxu0
      %v2636 = vadd.f32 %v2567, %v2635
      %2637 = vmatmul.bf16.gmra.mxu0 %v2362
      %v2638 = vpop.f32.mrf.mxu0
      %v2639 = vadd.f32 %v2570, %v2638
      %v2640 = vpop.f32.mrf.mxu0
      %v2641 = vadd.f32 %v2572, %v2640
      %2642 = vmatmul.bf16.gmra.mxu0 %v2365
      %v2643 = vpop.f32.mrf.mxu0
      %v2644 = vadd.f32 %v2575, %v2643
      %v2645 = vpop.f32.mrf.mxu0
      %v2646 = vadd.f32 %v2577, %v2645
      %2647 = vmatmul.bf16.gmra.mxu0 %v2368
      %v2648 = vpop.f32.mrf.mxu0
      %v2649 = vadd.f32 %v2580, %v2648
      %v2650 = vpop.f32.mrf.mxu0
      %v2651 = vadd.f32 %v2582, %v2650
      %2652 = vmatmul.bf16.gmra.mxu0 %v2371
      %v2653 = vpop.f32.mrf.mxu0
      %v2654 = vadd.f32 %v2585, %v2653
      %v2655 = vpop.f32.mrf.mxu0
      %v2656 = vadd.f32 %v2587, %v2655
      %2657 = vdwg.mxu0
      %2658 = vmatpush.bf16.msra.mxu0 0
      %2659 = vmatpush.bf16.msra.mxu0 0
      %2660 = vmatpush.bf16.msra.mxu0 0
      %2661 = vmatpush.bf16.msra.mxu0 0
      %2662 = vmatpush.bf16.msra.mxu0 0
      %2663 = vmatpush.bf16.msra.mxu0 0
      %2664 = vmatpush.bf16.msra.mxu0 %v2465
      %2665 = vmatpush.bf16.msra.mxu0 %v2464
      %2666 = vmatmul.bf16.gmra.mxu0 %v2485
      %v2667 = vpop.f32.mrf.mxu0
      %v2668 = vadd.f32 %v2599, %v2667
      %v2669 = vpop.f32.mrf.mxu0
      %v2670 = vadd.f32 %v2601, %v2669
      %2671 = vmatmul.bf16.gmra.mxu0 %v2488
      %v2672 = vpop.f32.mrf.mxu0
      %v2673 = vadd.f32 %v2604, %v2672
      %v2674 = vpop.f32.mrf.mxu0
      %v2675 = vadd.f32 %v2606, %v2674
      %2676 = vmatmul.bf16.gmra.mxu0 %v2491
      %v2677 = vpop.f32.mrf.mxu0
      %v2678 = vadd.f32 %v2609, %v2677
      %v2679 = vpop.f32.mrf.mxu0
      %v2680 = vadd.f32 %v2611, %v2679
      %2681 = vmatmul.bf16.gmra.mxu0 %v2494
      %v2682 = vpop.f32.mrf.mxu0
      %v2683 = vadd.f32 %v2614, %v2682
      %v2684 = vpop.f32.mrf.mxu0
      %v2685 = vadd.f32 %v2616, %v2684
      %2686 = vmatmul.bf16.gmra.mxu0 %v2497
      %v2687 = vpop.f32.mrf.mxu0
      %v2688 = vadd.f32 %v2619, %v2687
      %v2689 = vpop.f32.mrf.mxu0
      %v2690 = vadd.f32 %v2621, %v2689
      %2691 = vmatmul.bf16.gmra.mxu0 %v2500
      %v2692 = vpop.f32.mrf.mxu0
      %v2693 = vadd.f32 %v2624, %v2692
      %v2694 = vpop.f32.mrf.mxu0
      %v2695 = vadd.f32 %v2626, %v2694
      %2696 = vmatmul.bf16.gmra.mxu0 %v2503
      %v2697 = vpop.f32.mrf.mxu0
      %v2698 = vadd.f32 %v2629, %v2697
      %v2699 = vpop.f32.mrf.mxu0
      %v2700 = vadd.f32 %v2631, %v2699
      %2701 = vmatmul.bf16.gmra.mxu0 %v2506
      %v2702 = vpop.f32.mrf.mxu0
      %v2703 = vadd.f32 %v2634, %v2702
      %v2704 = vpop.f32.mrf.mxu0
      %v2705 = vadd.f32 %v2636, %v2704
      %2706 = vmatmul.bf16.gmra.mxu0 %v2509
      %v2707 = vpop.f32.mrf.mxu0
      %v2708 = vadd.f32 %v2639, %v2707
      %v2709 = vpop.f32.mrf.mxu0
      %v2710 = vadd.f32 %v2641, %v2709
      %2711 = vmatmul.bf16.gmra.mxu0 %v2512
      %v2712 = vpop.f32.mrf.mxu0
      %v2713 = vadd.f32 %v2644, %v2712
      %v2714 = vpop.f32.mrf.mxu0
      %v2715 = vadd.f32 %v2646, %v2714
      %2716 = vmatmul.bf16.gmra.mxu0 %v2515
      %v2717 = vpop.f32.mrf.mxu0
      %v2718 = vadd.f32 %v2649, %v2717
      %v2719 = vpop.f32.mrf.mxu0
      %v2720 = vadd.f32 %v2651, %v2719
      %2721 = vmatmul.bf16.gmra.mxu0 %v2518
      %v2722 = vpop.f32.mrf.mxu0
      %v2723 = vadd.f32 %v2654, %v2722
      %v2724 = vpop.f32.mrf.mxu0
      %v2725 = vadd.f32 %v2656, %v2724
      %2726 = vdwg.mxu0
      %v2727 = vmax.f32 %v2668, 0.0
      %v2728 = vmax.f32 %v2670, 0.0
      %v2729 = vmax.f32 %v2673, 0.0
      %v2730 = vmax.f32 %v2675, 0.0
      %v2731 = vmax.f32 %v2678, 0.0
      %v2732 = vmax.f32 %v2680, 0.0
      %v2733 = vmax.f32 %v2683, 0.0
      %v2734 = vmax.f32 %v2685, 0.0
      %v2735 = vmax.f32 %v2688, 0.0
      %v2736 = vmax.f32 %v2690, 0.0
      %v2737 = vmax.f32 %v2693, 0.0
      %v2738 = vmax.f32 %v2695, 0.0
      %v2739 = vmax.f32 %v2698, 0.0
      %v2740 = vmax.f32 %v2700, 0.0
      %v2741 = vmax.f32 %v2703, 0.0
      %v2742 = vmax.f32 %v2705, 0.0
      %v2743 = vmax.f32 %v2708, 0.0
      %v2744 = vmax.f32 %v2710, 0.0
      %v2745 = vmax.f32 %v2713, 0.0
      %v2746 = vmax.f32 %v2715, 0.0
      %v2747 = vmax.f32 %v2718, 0.0
      %v2748 = vmax.f32 %v2720, 0.0
      %v2749 = vmax.f32 %v2723, 0.0
      %v2750 = vmax.f32 %v2725, 0.0
      %vm2751 = vcmask 1043456
      %v2752 = vsel %vm2751, %v2750, 0.0
      %2753 = vst.msk [vmem:[%s262] sm:$0xff] %vm1376, %v2727
      %2754 = vst.msk [vmem:[%s262 + $0x8] sm:$0xff] %vm1376, %v2728
      %2755 = vst.msk [vmem:[%s262 + $0x10] sm:$0xff] %vm1376, %v2729
      %2756 = vst.msk [vmem:[%s262 + $0x18] sm:$0xff] %vm1376, %v2730
      %2757 = vst.msk [vmem:[%s262 + $0x20] sm:$0xff] %vm1376, %v2731
      %2758 = vst.msk [vmem:[%s262 + $0x28] sm:$0xff] %vm1376, %v2732
      %2759 = vst.msk [vmem:[%s262 + $0x30] sm:$0xff] %vm1376, %v2733
      %2760 = vst.msk [vmem:[%s262 + $0x38] sm:$0xff] %vm1376, %v2734
      %2761 = vst.msk [vmem:[%s262 + $0x40] sm:$0xff] %vm1376, %v2735
      %2762 = vst.msk [vmem:[%s262 + $0x48] sm:$0xff] %vm1376, %v2736
      %2763 = vst.msk [vmem:[%s262 + $0x50] sm:$0xff] %vm1376, %v2737
      %2764 = vst.msk [vmem:[%s262 + $0x58] sm:$0xff] %vm1376, %v2738
      %2765 = vst.msk [vmem:[%s262 + $0x60] sm:$0xff] %vm1376, %v2739
      %2766 = vst.msk [vmem:[%s262 + $0x68] sm:$0xff] %vm1376, %v2740
      %2767 = vst.msk [vmem:[%s262 + $0x70] sm:$0xff] %vm1376, %v2741
      %2768 = vst.msk [vmem:[%s262 + $0x78] sm:$0xff] %vm1376, %v2742
      %2769 = vst.msk [vmem:[%s262 + $0x80] sm:$0xff] %vm1376, %v2743
      %2770 = vst.msk [vmem:[%s262 + $0x88] sm:$0xff] %vm1376, %v2744
      %2771 = vst.msk [vmem:[%s262 + $0x90] sm:$0xff] %vm1376, %v2745
      %2772 = vst.msk [vmem:[%s262 + $0x98] sm:$0xff] %vm1376, %v2746
      %2773 = vst.msk [vmem:[%s262 + $0xa0] sm:$0xff] %vm1376, %v2747
      %2774 = vst.msk [vmem:[%s262 + $0xa8] sm:$0xff] %vm1376, %v2748
      %2775 = vst.msk [vmem:[%s262 + $0xb0] sm:$0xff] %vm1376, %v2749
      %2776 = vst.msk [vmem:[%s262 + $0xb8] sm:$0xff] %vm1376, %v2752
      %s2777 = smul.u32 8, %s21
      %p2778 = scmp.lt.s32.totalorder %s20, 1
      %s2779 = scalar_select %p2778, %s20, 1
      %p2780 = scmp.lt.s32.totalorder %s2777, 15
      %s2781 = scalar_select %p2780, %s2777, 15
      %s2782 = smul.addr %s2781, 3
      %s2783 = smul.addr %s2779, 48
      %s2784 = sadd.s32 %s2782, %s2783
      %s2785 = smul.addr %s2784, 8
      %s2786 = scalar_lea.vmem %s5, %s2785
      // Predicated region
      $region41: #{conv_block_forward.1} parent=39 // pred_check
        %p2787 = pneg %p160
      $region42: #{conv_block_forward.1} parent=39 // pred_check_branch
        %2789 = sbr.rel (%p2787) target = $region44
      $region43: #{conv_block_forward.1} parent=39 // pred_region
        %s2790 = smul.u32 8, %s21
      $region44: #{conv_block_forward.1} parent=39 // pred_fallthru
        _
    $region40: #{conv_block_forward.1} parent=5 // pred_fallthru
      _
    %p2791 = scmp.le.s32.totalorder 2, %s11
    // Predicated region
    $region45: #{conv_block_forward.1} parent=5 // pred_check
      %p2792 = pneg %p2791
    $region46: #{conv_block_forward.1} parent=5 // pred_check_branch
      %2794 = sbr.rel (%p2792) target = $region48
    $region47: #{conv_block_forward.1} parent=5 // pred_region
      %s2795 = ssub.s32 %s11, 2
      // Predicated region
      $region49: #{conv_block_forward.1} parent=47 // pred_check
        %p2796 = pneg %p166
      $region50: #{conv_block_forward.1} parent=47 // pred_check_branch
        %2798 = sbr.rel (%p2796) target = $region52
      $region51: #{conv_block_forward.1} parent=47 // pred_region
        %s2799 = smul.u32 8, %s23
        %p2800 = scmp.lt.s32.totalorder %s22, 1
        %s2801 = scalar_select %p2800, %s22, 1
        %p2802 = scmp.lt.s32.totalorder %s2799, 15
        %s2803 = scalar_select %p2802, %s2799, 15
        %s2804 = smul.addr %s2803, 3
        %s2805 = smul.addr %s2801, 48
        %s2806 = sadd.s32 %s2804, %s2805
        %s2807 = smul.addr %s2806, 8
        %s2808 = scalar_lea.vmem %s5, %s2807
      $region52: #{conv_block_forward.1} parent=47 // pred_fallthru
        _
    $region48: #{conv_block_forward.1} parent=5 // pred_fallthru
      _
  $region6: #{conv_block_forward.1} parent=0 // loop_footer
    %s15 = sadd.s32 1, %s11
  $region7: #{conv_block_forward.1} parent=0 // loop_footer_branch
    %10 = sbr.rel target = $region3
  $region8: #{conv_block_forward.1} parent=0 // loop_exit
    _

// kernel: conv_block_forward.1
$region0: #{conv_block_forward.1}
  #allocation0 [shape = 'u32[]', space=smem, size = 0x4, offset = 0x4, fixed_abs, tag = 'smem constant byte address 0x4 - core index']
  #allocation1 [shape = 'u32[72,128]{1,0:T(1,128)}', space=vmem, size = 0x9000, scoped, tag = 'internal scratch']
  %s0 = inlined_call_operand.vmem [shape: bf16[2,2,312,4], index: 0, kind: input, shape index: {}]
  %s1 = inlined_call_operand.vmem [shape: bf16[36,32], index: 1, kind: input, shape index: {}]
  %s2 = inlined_call_operand.vmem [shape: f32[1,32], index: 2, kind: input, shape index: {}]
  %s3 = inlined_call_operand.vmem [shape: bf16[288,32], index: 3, kind: input, shape index: {}]
  %s4 = inlined_call_operand.vmem [shape: f32[1,32], index: 4, kind: input, shape index: {}]
  %s5 = inlined_call_operand.vmem [shape: f32[2,16,24,32], index: 5, kind: output, shape index: {}]
  %s6 = sld [smem:[#allocation0]]
  $region53: #{conv_block_forward.1} parent=0
    _
  %s8 = ssub.s32 1, %s6
  %s9 = scalar_select 0, %s8, %s6
  loop: start=0, step=1, limit=6
  $region2: #{conv_block_forward.1} parent=0 // loop_pre_header
    _
  $region3: #{conv_block_forward.1} parent=0 // loop_header
    %s11 = sphi 0, %s15
    %p12 = scmp.ge.s32.totalorder %s11, 6
    %s18 = sphi 0, %s30
    %s19 = sphi 0, %s26
    %s20 = sphi 0, %s18
    %s21 = sphi 0, %s19
    %s22 = sphi 0, %s20
    %s23 = sphi 0, %s21
    %s35 = sphi 0, %s37
    %s38 = sphi 0, %s35
    %s39 = sphi 0, %s38
    %s55 = sphi 0, %s39
    %s59 = sphi 0, %s59
    %s61 = sphi 0, %s59
    %s62 = sphi 0, %s61
    %s76 = sphi 0, %s62
    %s80 = sphi 0, %s80
    %s82 = sphi 0, %s80
    %s83 = sphi 0, %s82
    %s97 = sphi 0, %s83
    %s101 = sphi 0, %s101
    %s103 = sphi 0, %s101
    %s104 = sphi 0, %s103
    %s118 = sphi 0, %s104
    %s122 = sphi 0, %s122
    %s124 = sphi 0, %s122
    %s125 = sphi 0, %s124
    %s139 = sphi 0, %s125
    %s147 = sphi 0, %s149
    %s150 = sphi 0, %s147
    %s151 = sphi 0, %s150
    %s167 = sphi 0, %s151
  $region4: #{conv_block_forward.1} parent=0 // loop_header_branch
    %14 = sbr.rel (%p12) target = $region8
  $region5: #{conv_block_forward.1} parent=0 // loop_body
    %s16 = ssub.s32 %s11, 1
    %s17 = ssub.s32 %s11, 2
    %s24 = sadd.s32 1, %s19
    %p25 = scmp.ge.s32.totalorder %s24, 2
    %s26 = scalar_select %p25, 0, %s24
    %s27 = sadd.s32 1, %s18
    %s28 = scalar_select %p25, %s27, %s18
    %p29 = scmp.ge.s32.totalorder %s28, 2
    %s30 = scalar_select %p29, 0, %s28
    %s31 = ssub.s32 %s18, %s30
    %s32 = ssub.s32 %s19, %s26
    %s33 = sor.u32 %s31, %s32
    %p34 = scmp.eq.s32.totalorder %s33, 0
    %s36 = sadd.s32 %s35, 1
    %s37 = scalar_select %p34, %s35, %s36
    %p40 = pneg %p34
    %p41 = scmp.eq.s32.totalorder %s11, 3
    %p42 = por %p40, %p41
    %p43 = scmp.ne.s32.totalorder %s35, %s38
    %p44 = scmp.eq.s32.totalorder %s11, 0
    %p45 = por %p43, %p44
    %p46 = scmp.ne.s32.totalorder %s35, %s38
    %p47 = scmp.eq.s32.totalorder %s16, 3
    %p48 = por %p46, %p47
    %p49 = scmp.ne.s32.totalorder %s38, %s39
    %p50 = scmp.eq.s32.totalorder %s16, 0
    %p51 = por %p49, %p50
    %p52 = scmp.ne.s32.totalorder %s38, %s39
    %p53 = scmp.eq.s32.totalorder %s17, 3
    %p54 = por %p52, %p53
    %p56 = scmp.ne.s32.totalorder %s39, %s55
    %p57 = scmp.eq.s32.totalorder %s17, 0
    %p58 = por %p56, %p57
    %s60 = sadd.s32 %s59, 1
    %p63 = scmp.eq.s32.totalorder %s11, 3
    %p64 = scmp.ne.s32.totalorder %s59, %s61
    %p65 = scmp.eq.s32.totalorder %s11, 0
    %p66 = por %p64, %p65
    %p67 = scmp.ne.s32.totalorder %s59, %s61
    %p68 = scmp.eq.s32.totalorder %s16, 3
    %p69 = por %p67, %p68
    %p70 = scmp.ne.s32.totalorder %s61, %s62
    %p71 = scmp.eq.s32.totalorder %s16, 0
    %p72 = por %p70, %p71
    %p73 = scmp.ne.s32.totalorder %s61, %s62
    %p74 = scmp.eq.s32.totalorder %s17, 3
    %p75 = por %p73, %p74
    %p77 = scmp.ne.s32.totalorder %s62, %s76
    %p78 = scmp.eq.s32.totalorder %s17, 0
    %p79 = por %p77, %p78
    %s81 = sadd.s32 %s80, 1
    %p84 = scmp.eq.s32.totalorder %s11, 3
    %p85 = scmp.ne.s32.totalorder %s80, %s82
    %p86 = scmp.eq.s32.totalorder %s11, 0
    %p87 = por %p85, %p86
    %p88 = scmp.ne.s32.totalorder %s80, %s82
    %p89 = scmp.eq.s32.totalorder %s16, 3
    %p90 = por %p88, %p89
    %p91 = scmp.ne.s32.totalorder %s82, %s83
    %p92 = scmp.eq.s32.totalorder %s16, 0
    %p93 = por %p91, %p92
    %p94 = scmp.ne.s32.totalorder %s82, %s83
    %p95 = scmp.eq.s32.totalorder %s17, 3
    %p96 = por %p94, %p95
    %p98 = scmp.ne.s32.totalorder %s83, %s97
    %p99 = scmp.eq.s32.totalorder %s17, 0
    %p100 = por %p98, %p99
    %s102 = sadd.s32 %s101, 1
    %p105 = scmp.eq.s32.totalorder %s11, 3
    %p106 = scmp.ne.s32.totalorder %s101, %s103
    %p107 = scmp.eq.s32.totalorder %s11, 0
    %p108 = por %p106, %p107
    %p109 = scmp.ne.s32.totalorder %s101, %s103
    %p110 = scmp.eq.s32.totalorder %s16, 3
    %p111 = por %p109, %p110
    %p112 = scmp.ne.s32.totalorder %s103, %s104
    %p113 = scmp.eq.s32.totalorder %s16, 0
    %p114 = por %p112, %p113
    %p115 = scmp.ne.s32.totalorder %s103, %s104
    %p116 = scmp.eq.s32.totalorder %s17, 3
    %p117 = por %p115, %p116
    %p119 = scmp.ne.s32.totalorder %s104, %s118
    %p120 = scmp.eq.s32.totalorder %s17, 0
    %p121 = por %p119, %p120
    %s123 = sadd.s32 %s122, 1
    %p126 = scmp.eq.s32.totalorder %s11, 3
    %p127 = scmp.ne.s32.totalorder %s122, %s124
    %p128 = scmp.eq.s32.totalorder %s11, 0
    %p129 = por %p127, %p128
    %p130 = scmp.ne.s32.totalorder %s122, %s124
    %p131 = scmp.eq.s32.totalorder %s16, 3
    %p132 = por %p130, %p131
    %p133 = scmp.ne.s32.totalorder %s124, %s125
    %p134 = scmp.eq.s32.totalorder %s16, 0
    %p135 = por %p133, %p134
    %p136 = scmp.ne.s32.totalorder %s124, %s125
    %p137 = scmp.eq.s32.totalorder %s17, 3
    %p138 = por %p136, %p137
    %p140 = scmp.ne.s32.totalorder %s125, %s139
    %p141 = scmp.eq.s32.totalorder %s17, 0
    %p142 = por %p140, %p141
    %s143 = ssub.s32 %s18, %s30
    %s144 = ssub.s32 %s19, %s26
    %s145 = sor.u32 %s143, %s144
    %p146 = scmp.eq.s32.totalorder %s145, 0
    %s148 = sadd.s32 %s147, 1
    %s149 = scalar_select %p146, %s147, %s148
    %p152 = pneg %p146
    %p153 = scmp.eq.s32.totalorder %s11, 3
    %p154 = por %p152, %p153
    %p155 = scmp.ne.s32.totalorder %s147, %s150
    %p156 = scmp.eq.s32.totalorder %s11, 0
    %p157 = por %p155, %p156
    %p158 = scmp.ne.s32.totalorder %s147, %s150
    %p159 = scmp.eq.s32.totalorder %s16, 3
    %p160 = por %p158, %p159
    %p161 = scmp.ne.s32.totalorder %s150, %s151
    %p162 = scmp.eq.s32.totalorder %s16, 0
    %p163 = por %p161, %p162
    %p164 = scmp.ne.s32.totalorder %s150, %s151
    %p165 = scmp.eq.s32.totalorder %s17, 3
    %p166 = por %p164, %p165
    %p168 = scmp.ne.s32.totalorder %s151, %s167
    %p169 = scmp.eq.s32.totalorder %s17, 0
    %p170 = por %p168, %p169
    %p171 = scmp.le.s32.totalorder 1, %s11
    %p172 = scmp.lt.s32.totalorder %s11, 5
    %p173 = pnand %p171, %p172
    %p174 = pneg %p173
    // Predicated region
    $region9: #{conv_block_forward.1} parent=5 // pred_check
      _
    $region10: #{conv_block_forward.1} parent=5 // pred_check_branch
      %176 = sbr.rel (%p173) target = $region12
    $region11: #{conv_block_forward.1} parent=5 // pred_region
      %s177 = ssub.s32 %s11, 1
      // Predicated region
      $region13: #{conv_block_forward.1} parent=11 // pred_check
        %p178 = pneg %p72
      $region14: #{conv_block_forward.1} parent=11 // pred_check_branch
        %180 = sbr.rel (%p178) target = $region16
      $region15: #{conv_block_forward.1} parent=11 // pred_region
        _
      $region16: #{conv_block_forward.1} parent=11 // pred_fallthru
        _
      // Predicated region
      $region17: #{conv_block_forward.1} parent=11 // pred_check
        %p181 = pneg %p93
      $region18: #{conv_block_forward.1} parent=11 // pred_check_branch
        %183 = sbr.rel (%p181) target = $region20
      $region19: #{conv_block_forward.1} parent=11 // pred_region
        _
      $region20: #{conv_block_forward.1} parent=11 // pred_fallthru
        _
      // Predicated region
      $region21: #{conv_block_forward.1} parent=11 // pred_check
        %p184 = pneg %p114
      $region22: #{conv_block_forward.1} parent=11 // pred_check_branch
        %186 = sbr.rel (%p184) target = $region24
      $region23: #{conv_block_forward.1} parent=11 // pred_region
        _
      $region24: #{conv_block_forward.1} parent=11 // pred_fallthru
        _
      // Predicated region
      $region25: #{conv_block_forward.1} parent=11 // pred_check
        %p187 = pneg %p135
      $region26: #{conv_block_forward.1} parent=11 // pred_check_branch
        %189 = sbr.rel (%p187) target = $region28
      $region27: #{conv_block_forward.1} parent=11 // pred_region
        _
      $region28: #{conv_block_forward.1} parent=11 // pred_fallthru
        _
    $region12: #{conv_block_forward.1} parent=5 // pred_fallthru
      _
    %p190 = scmp.lt.s32.totalorder %s11, 4
    // Predicated region
    $region29: #{conv_block_forward.1} parent=5 // pred_check
      %p191 = pneg %p190
    $region30: #{conv_block_forward.1} parent=5 // pred_check_branch
      %193 = sbr.rel (%p191) target = $region32
    $region31: #{conv_block_forward.1} parent=5 // pred_region
      // Predicated region
      $region33: #{conv_block_forward.1} parent=31 // pred_check
        %p194 = pneg %p45
      $region34: #{conv_block_forward.1} parent=31 // pred_check_branch
        %196 = sbr.rel (%p194) target = $region36
      $region35: #{conv_block_forward.1} parent=31 // pred_region
        %p197 = scmp.lt.s32.totalorder %s18, 1
        %s198 = scalar_select %p197, %s18, 1
        %p199 = scmp.lt.s32.totalorder %s19, 1
        %s200 = scalar_select %p199, %s19, 1
        %s201 = smul.addr %s200, 39
        %s202 = smul.addr %s198, 78
        %s203 = sadd.s32 %s201, %s202
        %s204 = smul.addr %s203, 4
        %s205 = scalar_lea.vmem %s0, %s204
      $region36: #{conv_block_forward.1} parent=31 // pred_fallthru
        _
    $region32: #{conv_block_forward.1} parent=5 // pred_fallthru
      _
    %p206 = scmp.le.s32.totalorder 1, %s11
    %p207 = scmp.lt.s32.totalorder %s11, 5
    %p208 = pnand %p206, %p207
    %p209 = pneg %p208
    // Predicated region
    $region37: #{conv_block_forward.1} parent=5 // pred_check
      _
    $region38: #{conv_block_forward.1} parent=5 // pred_check_branch
      %211 = sbr.rel (%p208) target = $region40
    $region39: #{conv_block_forward.1} parent=5 // pred_region
      %s212 = ssub.s32 %s11, 1
      %p213 = scmp.lt.s32.totalorder %s20, 1
      %s214 = scalar_select %p213, %s20, 1
      %p215 = scmp.lt.s32.totalorder %s21, 1
      %s216 = scalar_select %p215, %s21, 1
      %s217 = smul.addr %s216, 39
      %s218 = smul.addr %s214, 78
      %s219 = sadd.s32 %s217, %s218
      %s220 = smul.addr %s219, 4
      %s221 = scalar_lea.vmem %s0, %s220
      %p222 = pneg %p51
      %p223 = pneg %p48
      %p224 = pneg %p72
      %p225 = pneg %p69
      %p226 = pneg %p93
      %p227 = pneg %p90
      %p228 = pneg %p114
      %p229 = pneg %p111
      %p230 = pneg %p135
      %p231 = pneg %p132
      %p232 = pneg %p163
      %p233 = pneg %p160
      %s234 = smul.u32 8, %s21
      %p235 = scmp.lt.s32.totalorder %s20, 1
      %s236 = scalar_select %p235, %s20, 1
      %p237 = scmp.lt.s32.totalorder %s234, 15
      %s238 = scalar_select %p237, %s234, 15
      %s239 = smul.addr %s238, 3
      %s240 = smul.addr %s236, 48
      %s241 = sadd.s32 %s239, %s240
      %s242 = smul.addr %s241, 8
      %s243 = scalar_lea.vmem %s5, %s242
      %p244 = scmp.lt.s32.totalorder %s20, 1
      %s245 = scalar_select %p244, %s20, 1
      %p246 = scmp.lt.s32.totalorder %s21, 1
      %s247 = scalar_select %p246, %s21, 1
      %s248 = smul.addr %s247, 39
      %s249 = smul.addr %s245, 78
      %s250 = sadd.s32 %s248, %s249
      %s251 = smul.addr %s250, 4
      %s252 = scalar_lea.vmem %s0, %s251
      %s253 = smul.u32 8, %s21
      %p254 = scmp.lt.s32.totalorder %s20, 1
      %s255 = scalar_select %p254, %s20, 1
      %p256 = scmp.lt.s32.totalorder %s253, 15
      %s257 = scalar_select %p256, %s253, 15
      %s258 = smul.addr %s257, 3
      %s259 = smul.addr %s255, 48
      %s260 = sadd.s32 %s258, %s259
      %s261 = smul.addr %s260, 8
      %s262 = scalar_lea.vmem %s5, %s261
      %s263 = smul.u32 8, %s21
      %v265 = vlaneseq
      %v266 = vshrl.u32 %v265, 7
      %v267 = vadd.s32 %v266, 8
      %v268 = vadd.s32 %v266, 16
      %s269 = smul.u32 %s21, 8
      %s270 = ssub.s32 %s269, 1
      %v271 = vstv %s270
      %v272 = vadd.s32 %v271, 1
      %v273 = vadd.s32 %v271, 2
      %v274 = vadd.s32 %v271, 3
      %v275 = vadd.s32 %v271, 4
      %v276 = vadd.s32 %v271, 5
      %v277 = vadd.s32 %v271, 6
      %v278 = vadd.s32 %v271, 7
      %v279 = vadd.s32 %v271, 8
      %v280 = vadd.s32 %v271, 9
      %v281 = vsub.s32 %v266, 1
      %v282 = vsub.s32 %v267, 1
      %v283 = vsub.s32 %v268, 1
      %vm284 = vcmp.ge.s32.totalorder %v271, 0
      %vm285 = vcmp.ge.s32.totalorder %v272, 0
      %vm286 = vcmp.ge.s32.totalorder %v273, 0
      %vm287 = vcmp.ge.s32.totalorder %v274, 0
      %vm288 = vcmp.ge.s32.totalorder %v275, 0
      %vm289 = vcmp.ge.s32.totalorder %v276, 0
      %vm290 = vcmp.ge.s32.totalorder %v277, 0
      %vm291 = vcmp.ge.s32.totalorder %v278, 0
      %vm292 = vcmp.ge.s32.totalorder %v279, 0
      %vm293 = vcmp.ge.s32.totalorder %v280, 0
      %vm294 = vcmp.lt.s32.totalorder %v271, 16
      %vm295 = vcmp.lt.s32.totalorder %v272, 16
      %vm296 = vcmp.lt.s32.totalorder %v273, 16
      %vm297 = vcmp.lt.s32.totalorder %v274, 16
      %vm298 = vcmp.lt.s32.totalorder %v275, 16
      %vm299 = vcmp.lt.s32.totalorder %v276, 16
      %vm300 = vcmp.lt.s32.totalorder %v277, 16
      %vm301 = vcmp.lt.s32.totalorder %v278, 16
      %vm302 = vcmp.lt.s32.totalorder %v279, 16
      %vm303 = vcmp.lt.s32.totalorder %v280, 16
      %vm304 = vmand %vm284, %vm294
      %vm305 = vmand %vm285, %vm295
      %vm306 = vmand %vm286, %vm296
      %vm307 = vmand %vm287, %vm297
      %vm308 = vmand %vm288, %vm298
      %vm309 = vmand %vm289, %vm299
      %vm310 = vmand %vm290, %vm300
      %vm311 = vmand %vm291, %vm301
      %vm312 = vmand %vm292, %vm302
      %vm313 = vmand %vm293, %vm303
      %vm314 = vcmp.ge.s32.totalorder %v281, 0
      %vm315 = vcmp.ge.s32.totalorder %v282, 0
      %vm316 = vcmp.ge.s32.totalorder %v283, 0
      %vm317 = vmand %vm304, %vm314
      %vm318 = vmand %vm304, %vm315
      %vm319 = vmand %vm304, %vm316
      %vm320 = vmand %vm305, %vm314
      %vm321 = vmand %vm305, %vm315
      %vm322 = vmand %vm305, %vm316
      %vm323 = vmand %vm306, %vm314
      %vm324 = vmand %vm306, %vm315
      %vm325 = vmand %vm306, %vm316
      %vm326 = vmand %vm307, %vm314
      %vm327 = vmand %vm307, %vm315
      %vm328 = vmand %vm307, %vm316
      %vm329 = vmand %vm308, %vm314
      %vm330 = vmand %vm308, %vm315
      %vm331 = vmand %vm308, %vm316
      %vm332 = vmand %vm309, %vm314
      %vm333 = vmand %vm309, %vm315
      %vm334 = vmand %vm309, %vm316
      %vm335 = vmand %vm310, %vm314
      %vm336 = vmand %vm310, %vm315
      %vm337 = vmand %vm310, %vm316
      %vm338 = vmand %vm311, %vm314
      %vm339 = vmand %vm311, %vm315
      %vm340 = vmand %vm311, %vm316
      %vm341 = vmand %vm312, %vm314
      %vm342 = vmand %vm312, %vm315
      %vm343 = vmand %vm312, %vm316
      %vm344 = vmand %vm313, %vm314
      %vm345 = vmand %vm313, %vm315
      %vm346 = vmand %vm313, %vm316
      %vm347 = vcmp.lt.s32.totalorder %v281, 16
      %vm348 = vcmp.lt.s32.totalorder %v282, 16
      %vm349 = vcmp.lt.s32.totalorder %v283, 16
      %vm350 = vmand %vm317, %vm347
      %vm351 = vmand %vm318, %vm348
      %vm352 = vmand %vm319, %vm349
      %vm353 = vmand %vm320, %vm347
      %vm354 = vmand %vm321, %vm348
      %vm355 = vmand %vm322, %vm349
      %vm356 = vmand %vm323, %vm347
      %vm357 = vmand %vm324, %vm348
      %vm358 = vmand %vm325, %vm349
      %vm359 = vmand %vm326, %vm347
      %vm360 = vmand %vm327, %vm348
      %vm361 = vmand %vm328, %vm349
      %vm362 = vmand %vm329, %vm347
      %vm363 = vmand %vm330, %vm348
      %vm364 = vmand %vm331, %vm349
      %vm365 = vmand %vm332, %vm347
      %vm366 = vmand %vm333, %vm348
      %vm367 = vmand %vm334, %vm349
      %vm368 = vmand %vm335, %vm347
      %vm369 = vmand %vm336, %vm348
      %vm370 = vmand %vm337, %vm349
      %vm371 = vmand %vm338, %vm347
      %vm372 = vmand %vm339, %vm348
      %vm373 = vmand %vm340, %vm349
      %vm374 = vmand %vm341, %vm347
      %vm375 = vmand %vm342, %vm348
      %vm376 = vmand %vm343, %vm349
      %vm377 = vmand %vm344, %vm347
      %vm378 = vmand %vm345, %vm348
      %vm379 = vmand %vm346, %vm349
      %v380 = vld [vmem:[%s1] sm:$0xf]
      %v381 = vld [vmem:[%s1 + $0x4] sm:$0xf]
      %v382 = vld [vmem:[%s1 + $0x8] sm:$0xf]
      %v383 = vld [vmem:[%s1 + $0xc] sm:$0xf]
      %v384 = vld [vmem:[%s1 + $0x10] sm:$0x3]
      %v385 = vld [vmem:[%s2] sm:$0x1]
      %v386 = vld [vmem:[%s3] sm:$0xf]
      %v387 = vld [vmem:[%s3 + $0x4] sm:$0xf]
      %v388 = vld [vmem:[%s3 + $0x8] sm:$0xf]
      %v389 = vld [vmem:[%s3 + $0xc] sm:$0xf]
      %v390 = vld [vmem:[%s3 + $0x10] sm:$0xf]
      %v391 = vld [vmem:[%s3 + $0x14] sm:$0xf]
      %v392 = vld [vmem:[%s3 + $0x18] sm:$0xf]
      %v393 = vld [vmem:[%s3 + $0x1c] sm:$0xf]
      %v394 = vld [vmem:[%s3 + $0x20] sm:$0xf]
      %v395 = vld [vmem:[%s3 + $0x24] sm:$0xf]
      %v396 = vld [vmem:[%s3 + $0x28] sm:$0xf]
      %v397 = vld [vmem:[%s3 + $0x2c] sm:$0xf]
      %v398 = vld [vmem:[%s3 + $0x30] sm:$0xf]
      %v399 = vld [vmem:[%s3 + $0x34] sm:$0xf]
      %v400 = vld [vmem:[%s3 + $0x38] sm:$0xf]
      %v401 = vld [vmem:[%s3 + $0x3c] sm:$0xf]
      %v402 = vld [vmem:[%s3 + $0x40] sm:$0xf]
      %v403 = vld [vmem:[%s3 + $0x44] sm:$0xf]
      %v404 = vld [vmem:[%s3 + $0x48] sm:$0xf]
      %v405 = vld [vmem:[%s3 + $0x4c] sm:$0xf]
      %v406 = vld [vmem:[%s3 + $0x50] sm:$0xf]
      %v407 = vld [vmem:[%s3 + $0x54] sm:$0xf]
      %v408 = vld [vmem:[%s3 + $0x58] sm:$0xf]
      %v409 = vld [vmem:[%s3 + $0x5c] sm:$0xf]
      %v410 = vld [vmem:[%s3 + $0x60] sm:$0xf]
      %v411 = vld [vmem:[%s3 + $0x64] sm:$0xf]
      %v412 = vld [vmem:[%s3 + $0x68] sm:$0xf]
      %v413 = vld [vmem:[%s3 + $0x6c] sm:$0xf]
      %v414 = vld [vmem:[%s3 + $0x70] sm:$0xf]
      %v415 = vld [vmem:[%s3 + $0x74] sm:$0xf]
      %v416 = vld [vmem:[%s3 + $0x78] sm:$0xf]
      %v417 = vld [vmem:[%s3 + $0x7c] sm:$0xf]
      %v418 = vld [vmem:[%s3 + $0x80] sm:$0xf]
      %v419 = vld [vmem:[%s3 + $0x84] sm:$0xf]
      %v420 = vld [vmem:[%s3 + $0x88] sm:$0xf]
      %v421 = vld [vmem:[%s3 + $0x8c] sm:$0xf]
      %v422 = vld [vmem:[%s4] sm:$0x1]
      %v423 = vld [vmem:[%s252] sm:$0xf]
      %v424 = vld [vmem:[%s252 + $0x4] sm:$0xf]
      %v425 = vld [vmem:[%s252 + $0x8] sm:$0xf]
      %v426 = vld [vmem:[%s252 + $0xc] sm:$0xf]
      %v427 = vld [vmem:[%s252 + $0x10] sm:$0xf]
      %v428 = vld [vmem:[%s252 + $0x14] sm:$0xf]
      %v429 = vld [vmem:[%s252 + $0x18] sm:$0xf]
      %v430 = vld [vmem:[%s252 + $0x1c] sm:$0xf]
      %v431 = vld [vmem:[%s252 + $0x20] sm:$0xf]
      %v432 = vld [vmem:[%s252 + $0x24] sm:$0xf]
      %v433 = vld [vmem:[%s252 + $0x28] sm:$0xf]
      %v434 = vld [vmem:[%s252 + $0x2c] sm:$0xf]
      %v435 = vld [vmem:[%s252 + $0x30] sm:$0xf]
      %v436 = vld [vmem:[%s252 + $0x34] sm:$0xf]
      %v437 = vld [vmem:[%s252 + $0x38] sm:$0xf]
      %v438 = vld [vmem:[%s252 + $0x3c] sm:$0xf]
      %v439 = vld [vmem:[%s252 + $0x40] sm:$0xf]
      %v440 = vld [vmem:[%s252 + $0x44] sm:$0xf]
      %v441 = vld [vmem:[%s252 + $0x48] sm:$0xf]
      %v442 = vld [vmem:[%s252 + $0x4c] sm:$0xf]
      %v443 = vld [vmem:[%s252 + $0x50] sm:$0xf]
      %v444 = vld [vmem:[%s252 + $0x54] sm:$0xf]
      %v445 = vld [vmem:[%s252 + $0x58] sm:$0xf]
      %v446 = vld [vmem:[%s252 + $0x5c] sm:$0xf]
      %v447 = vld [vmem:[%s252 + $0x60] sm:$0xf]
      %v448 = vld [vmem:[%s252 + $0x64] sm:$0xf]
      %v449 = vld [vmem:[%s252 + $0x68] sm:$0xf]
      %v450 = vld [vmem:[%s252 + $0x6c] sm:$0xf]
      %v451 = vld [vmem:[%s252 + $0x70] sm:$0xf]
      %v452 = vld [vmem:[%s252 + $0x74] sm:$0xf]
      %v453 = vld [vmem:[%s252 + $0x78] sm:$0xf]
      %v454 = vld [vmem:[%s252 + $0x7c] sm:$0xf]
      %v455 = vld [vmem:[%s252 + $0x80] sm:$0xf]
      %v456 = vld [vmem:[%s252 + $0x84] sm:$0xf]
      %v457 = vld [vmem:[%s252 + $0x88] sm:$0xf]
      %v458 = vld [vmem:[%s252 + $0x8c] sm:$0xf]
      %v459 = vld [vmem:[%s252 + $0x90] sm:$0xf]
      %v490 = vunpack.c.l.b16 %v423
      %v491 = vunpack.c.l.b16 %v424
      %v492 = vunpack.c.l.b16 %v425
      %v493 = vunpack.c.l.b16 %v426
      %v494 = vunpack.c.l.b16 %v427
      %v495 = vunpack.c.l.b16 %v428
      %v496 = vunpack.c.l.b16 %v429
      %v497 = vunpack.c.l.b16 %v430
      %v498 = vunpack.c.l.b16 %v431
      %v499 = vunpack.c.l.b16 %v432
      %v500 = vunpack.c.l.b16 %v433
      %v501 = vunpack.c.l.b16 %v434
      %v502 = vunpack.c.l.b16 %v435
      %v503 = vunpack.c.l.b16 %v436
      %v504 = vunpack.c.l.b16 %v437
      %v505 = vunpack.c.l.b16 %v438
      %v506 = vunpack.c.l.b16 %v439
      %v507 = vunpack.c.l.b16 %v440
      %v508 = vunpack.c.l.b16 %v441
      %v509 = vunpack.c.l.b16 %v442
      %v510 = vunpack.c.l.b16 %v443
      %v511 = vunpack.c.l.b16 %v444
      %v512 = vunpack.c.l.b16 %v445
      %v513 = vunpack.c.l.b16 %v446
      %v514 = vunpack.c.l.b16 %v447
      %v515 = vunpack.c.l.b16 %v448
      %v516 = vunpack.c.l.b16 %v449
      %v517 = vunpack.c.l.b16 %v450
      %v518 = vunpack.c.l.b16 %v451
      %v519 = vunpack.c.l.b16 %v452
      %v520 = vpack.c.b16 %v491, %v490
      %v521 = vpack.c.b16 %v493, %v492
      %v522 = vpack.c.b16 %v495, %v494
      %v523 = vpack.c.b16 %v497, %v496
      %v524 = vpack.c.b16 %v499, %v498
      %v525 = vpack.c.b16 %v501, %v500
      %v526 = vpack.c.b16 %v503, %v502
      %v527 = vpack.c.b16 %v505, %v504
      %v528 = vpack.c.b16 %v507, %v506
      %v529 = vpack.c.b16 %v509, %v508
      %v530 = vpack.c.b16 %v511, %v510
      %v531 = vpack.c.b16 %v513, %v512
      %v532 = vpack.c.b16 %v515, %v514
      %v533 = vpack.c.b16 %v517, %v516
      %v534 = vpack.c.b16 %v519, %v518
      %v536 = vunpack.c.l.b16 %v453
      %v537 = vpack.c.b16 %v536, %v536
      %vm538 = vsmask.f32 7424
      %v540 = vshrl.u32 %v520, 16
      %v542 = vshll.u32 %v520, 16
      %v544 = vrot.slane %v542, 1
      %v545 = vor.u32 %v540, %v544
      %v547 = vshll.u32 %v521, 16
      %v549 = vrot.slane %v547, 1
      %v550 = vsel %vm538, %v545, %v549
      %v551 = vshrl.u32 %v521, 16
      %v553 = vor.u32 %v551, %v549
      %v555 = vshll.u32 %v522, 16
      %v557 = vrot.slane %v555, 1
      %v558 = vsel %vm538, %v553, %v557
      %v559 = vshrl.u32 %v522, 16
      %v561 = vor.u32 %v559, %v557
      %v563 = vshll.u32 %v523, 16
      %v565 = vrot.slane %v563, 1
      %v566 = vsel %vm538, %v561, %v565
      %v567 = vshrl.u32 %v523, 16
      %v569 = vor.u32 %v567, %v565
      %v571 = vshll.u32 %v524, 16
      %v573 = vrot.slane %v571, 1
      %v574 = vsel %vm538, %v569, %v573
      %v575 = vshrl.u32 %v524, 16
      %v577 = vor.u32 %v575, %v573
      %v579 = vshll.u32 %v525, 16
      %v581 = vrot.slane %v579, 1
      %v582 = vsel %vm538, %v577, %v581
      %v583 = vshrl.u32 %v525, 16
      %v585 = vor.u32 %v583, %v581
      %v587 = vshll.u32 %v526, 16
      %v589 = vrot.slane %v587, 1
      %v590 = vsel %vm538, %v585, %v589
      %v591 = vshrl.u32 %v526, 16
      %v593 = vor.u32 %v591, %v589
      %v595 = vshll.u32 %v527, 16
      %v597 = vrot.slane %v595, 1
      %v598 = vsel %vm538, %v593, %v597
      %v599 = vshrl.u32 %v527, 16
      %v601 = vor.u32 %v599, %v597
      %v603 = vshll.u32 %v528, 16
      %v605 = vrot.slane %v603, 1
      %v606 = vsel %vm538, %v601, %v605
      %v607 = vshrl.u32 %v528, 16
      %v609 = vor.u32 %v607, %v605
      %v611 = vshll.u32 %v529, 16
      %v613 = vrot.slane %v611, 1
      %v614 = vsel %vm538, %v609, %v613
      %v615 = vshrl.u32 %v529, 16
      %v617 = vor.u32 %v615, %v613
      %v619 = vshll.u32 %v530, 16
      %v621 = vrot.slane %v619, 1
      %v622 = vsel %vm538, %v617, %v621
      %v623 = vshrl.u32 %v530, 16
      %v625 = vor.u32 %v623, %v621
      %v627 = vshll.u32 %v531, 16
      %v629 = vrot.slane %v627, 1
      %v630 = vsel %vm538, %v625, %v629
      %v631 = vshrl.u32 %v531, 16
      %v633 = vor.u32 %v631, %v629
      %v635 = vshll.u32 %v532, 16
      %v637 = vrot.slane %v635, 1
      %v638 = vsel %vm538, %v633, %v637
      %v639 = vshrl.u32 %v532, 16
      %v641 = vor.u32 %v639, %v637
      %v643 = vshll.u32 %v533, 16
      %v645 = vrot.slane %v643, 1
      %v646 = vsel %vm538, %v641, %v645
      %v647 = vshrl.u32 %v533, 16
      %v649 = vor.u32 %v647, %v645
      %v651 = vshll.u32 %v534, 16
      %v653 = vrot.slane %v651, 1
      %v654 = vsel %vm538, %v649, %v653
      %v655 = vshrl.u32 %v534, 16
      %v657 = vor.u32 %v655, %v653
      %v659 = vshll.u32 %v537, 16
      %v661 = vrot.slane %v659, 1
      %v662 = vsel %vm538, %v657, %v661
      %663 = vrot.lane.b32.xlu0 %v550, 4
      %v664 = vpop.permute.xlu0 %663
      %665 = vrot.lane.b32.xlu0 %v558, 4
      %v666 = vpop.permute.xlu0 %665
      %667 = vrot.lane.b32.xlu0 %v566, 4
      %v668 = vpop.permute.xlu0 %667
      %669 = vrot.lane.b32.xlu0 %v574, 4
      %v670 = vpop.permute.xlu0 %669
      %671 = vrot.lane.b32.xlu0 %v582, 4
      %v672 = vpop.permute.xlu0 %671
      %673 = vrot.lane.b32.xlu0 %v590, 4
      %v674 = vpop.permute.xlu0 %673
      %675 = vrot.lane.b32.xlu0 %v598, 4
      %v676 = vpop.permute.xlu0 %675
      %677 = vrot.lane.b32.xlu0 %v606, 4
      %v678 = vpop.permute.xlu0 %677
      %679 = vrot.lane.b32.xlu0 %v614, 4
      %v680 = vpop.permute.xlu0 %679
      %681 = vrot.lane.b32.xlu0 %v622, 4
      %v682 = vpop.permute.xlu0 %681
      %683 = vrot.lane.b32.xlu0 %v630, 4
      %v684 = vpop.permute.xlu0 %683
      %685 = vrot.lane.b32.xlu0 %v638, 4
      %v686 = vpop.permute.xlu0 %685
      %687 = vrot.lane.b32.xlu0 %v646, 4
      %v688 = vpop.permute.xlu0 %687
      %689 = vrot.lane.b32.xlu0 %v654, 4
      %v690 = vpop.permute.xlu0 %689
      %691 = vrot.lane.b32.xlu0 %v662, 4
      %v692 = vpop.permute.xlu0 %691
      %vm693 = vcmask 1046528
      %v694 = vrot.slane %v520, 1
      %v695 = vrot.slane %v521, 1
      %v696 = vsel %vm693, %v694, %v695
      %v697 = vrot.slane %v522, 1
      %v698 = vsel %vm693, %v695, %v697
      %v699 = vrot.slane %v523, 1
      %v700 = vsel %vm693, %v697, %v699
      %v701 = vrot.slane %v524, 1
      %v702 = vsel %vm693, %v699, %v701
      %v703 = vrot.slane %v525, 1
      %v704 = vsel %vm693, %v701, %v703
      %v705 = vrot.slane %v526, 1
      %v706 = vsel %vm693, %v703, %v705
      %v707 = vrot.slane %v527, 1
      %v708 = vsel %vm693, %v705, %v707
      %v709 = vrot.slane %v528, 1
      %v710 = vsel %vm693, %v707, %v709
      %v711 = vrot.slane %v529, 1
      %v712 = vsel %vm693, %v709, %v711
      %v713 = vrot.slane %v530, 1
      %v714 = vsel %vm693, %v711, %v713
      %v715 = vrot.slane %v531, 1
      %v716 = vsel %vm693, %v713, %v715
      %v717 = vrot.slane %v532, 1
      %v718 = vsel %vm693, %v715, %v717
      %v719 = vrot.slane %v533, 1
      %v720 = vsel %vm693, %v717, %v719
      %v721 = vrot.slane %v534, 1
      %v722 = vsel %vm693, %v719, %v721
      %v723 = vrot.slane %v537, 1
      %v724 = vsel %vm693, %v721, %v723
      %725 = vrot.lane.b32.xlu0 %v696, 8
      %v726 = vpop.permute.xlu0 %725
      %727 = vrot.lane.b32.xlu0 %v698, 8
      %v728 = vpop.permute.xlu0 %727
      %729 = vrot.lane.b32.xlu0 %v700, 8
      %v730 = vpop.permute.xlu0 %729
      %731 = vrot.lane.b32.xlu0 %v702, 8
      %v732 = vpop.permute.xlu0 %731
      %733 = vrot.lane.b32.xlu0 %v704, 8
      %v734 = vpop.permute.xlu0 %733
      %735 = vrot.lane.b32.xlu0 %v706, 8
      %v736 = vpop.permute.xlu0 %735
      %737 = vrot.lane.b32.xlu0 %v708, 8
      %v738 = vpop.permute.xlu0 %737
      %739 = vrot.lane.b32.xlu0 %v710, 8
      %v740 = vpop.permute.xlu0 %739
      %741 = vrot.lane.b32.xlu0 %v712, 8
      %v742 = vpop.permute.xlu0 %741
      %743 = vrot.lane.b32.xlu0 %v714, 8
      %v744 = vpop.permute.xlu0 %743
      %745 = vrot.lane.b32.xlu0 %v716, 8
      %v746 = vpop.permute.xlu0 %745
      %747 = vrot.lane.b32.xlu0 %v718, 8
      %v748 = vpop.permute.xlu0 %747
      %749 = vrot.lane.b32.xlu0 %v720, 8
      %v750 = vpop.permute.xlu0 %749
      %751 = vrot.lane.b32.xlu0 %v722, 8
      %v752 = vpop.permute.xlu0 %751
      %753 = vrot.lane.b32.xlu0 %v724, 8
      %v754 = vpop.permute.xlu0 %753
      %v757 = vunpack.c.l.b16 %v454
      %v758 = vunpack.c.l.b16 %v455
      %v759 = vpack.c.b16 %v494, %v493
      %v760 = vpack.c.b16 %v496, %v495
      %v761 = vpack.c.b16 %v498, %v497
      %v762 = vpack.c.b16 %v500, %v499
      %v763 = vpack.c.b16 %v502, %v501
      %v764 = vpack.c.b16 %v504, %v503
      %v765 = vpack.c.b16 %v506, %v505
      %v766 = vpack.c.b16 %v508, %v507
      %v767 = vpack.c.b16 %v510, %v509
      %v768 = vpack.c.b16 %v512, %v511
      %v769 = vpack.c.b16 %v514, %v513
      %v770 = vpack.c.b16 %v516, %v515
      %v771 = vpack.c.b16 %v518, %v517
      %v772 = vpack.c.b16 %v536, %v519
      %v773 = vpack.c.b16 %v758, %v757
      %774 = vrot.lane.b32.xlu0 %v759, 12
      %v775 = vpop.permute.xlu0 %774
      %776 = vrot.lane.b32.xlu0 %v760, 12
      %v777 = vpop.permute.xlu0 %776
      %778 = vrot.lane.b32.xlu0 %v761, 12
      %v779 = vpop.permute.xlu0 %778
      %780 = vrot.lane.b32.xlu0 %v762, 12
      %v781 = vpop.permute.xlu0 %780
      %782 = vrot.lane.b32.xlu0 %v763, 12
      %v783 = vpop.permute.xlu0 %782
      %784 = vrot.lane.b32.xlu0 %v764, 12
      %v785 = vpop.permute.xlu0 %784
      %786 = vrot.lane.b32.xlu0 %v765, 12
      %v787 = vpop.permute.xlu0 %786
      %788 = vrot.lane.b32.xlu0 %v766, 12
      %v789 = vpop.permute.xlu0 %788
      %790 = vrot.lane.b32.xlu0 %v767, 12
      %v791 = vpop.permute.xlu0 %790
      %792 = vrot.lane.b32.xlu0 %v768, 12
      %v793 = vpop.permute.xlu0 %792
      %794 = vrot.lane.b32.xlu0 %v769, 12
      %v795 = vpop.permute.xlu0 %794
      %796 = vrot.lane.b32.xlu0 %v770, 12
      %v797 = vpop.permute.xlu0 %796
      %798 = vrot.lane.b32.xlu0 %v771, 12
      %v799 = vpop.permute.xlu0 %798
      %800 = vrot.lane.b32.xlu0 %v772, 12
      %v801 = vpop.permute.xlu0 %800
      %802 = vrot.lane.b32.xlu0 %v773, 12
      %v803 = vpop.permute.xlu0 %802
      %v805 = vunpack.c.l.b16 %v456
      %v806 = vpack.c.b16 %v805, %v805
      %v808 = vshrl.u32 %v759, 16
      %v810 = vshll.u32 %v759, 16
      %v812 = vrot.slane %v810, 1
      %v813 = vor.u32 %v808, %v812
      %v815 = vshll.u32 %v760, 16
      %v817 = vrot.slane %v815, 1
      %v818 = vsel %vm538, %v813, %v817
      %v819 = vshrl.u32 %v760, 16
      %v821 = vor.u32 %v819, %v817
      %v823 = vshll.u32 %v761, 16
      %v825 = vrot.slane %v823, 1
      %v826 = vsel %vm538, %v821, %v825
      %v827 = vshrl.u32 %v761, 16
      %v829 = vor.u32 %v827, %v825
      %v831 = vshll.u32 %v762, 16
      %v833 = vrot.slane %v831, 1
      %v834 = vsel %vm538, %v829, %v833
      %v835 = vshrl.u32 %v762, 16
      %v837 = vor.u32 %v835, %v833
      %v839 = vshll.u32 %v763, 16
      %v841 = vrot.slane %v839, 1
      %v842 = vsel %vm538, %v837, %v841
      %v843 = vshrl.u32 %v763, 16
      %v845 = vor.u32 %v843, %v841
      %v847 = vshll.u32 %v764, 16
      %v849 = vrot.slane %v847, 1
      %v850 = vsel %vm538, %v845, %v849
      %v851 = vshrl.u32 %v764, 16
      %v853 = vor.u32 %v851, %v849
      %v855 = vshll.u32 %v765, 16
      %v857 = vrot.slane %v855, 1
      %v858 = vsel %vm538, %v853, %v857
      %v859 = vshrl.u32 %v765, 16
      %v861 = vor.u32 %v859, %v857
      %v863 = vshll.u32 %v766, 16
      %v865 = vrot.slane %v863, 1
      %v866 = vsel %vm538, %v861, %v865
      %v867 = vshrl.u32 %v766, 16
      %v869 = vor.u32 %v867, %v865
      %v871 = vshll.u32 %v767, 16
      %v873 = vrot.slane %v871, 1
      %v874 = vsel %vm538, %v869, %v873
      %v875 = vshrl.u32 %v767, 16
      %v877 = vor.u32 %v875, %v873
      %v879 = vshll.u32 %v768, 16
      %v881 = vrot.slane %v879, 1
      %v882 = vsel %vm538, %v877, %v881
      %v883 = vshrl.u32 %v768, 16
      %v885 = vor.u32 %v883, %v881
      %v887 = vshll.u32 %v769, 16
      %v889 = vrot.slane %v887, 1
      %v890 = vsel %vm538, %v885, %v889
      %v891 = vshrl.u32 %v769, 16
      %v893 = vor.u32 %v891, %v889
      %v895 = vshll.u32 %v770, 16
      %v897 = vrot.slane %v895, 1
      %v898 = vsel %vm538, %v893, %v897
      %v899 = vshrl.u32 %v770, 16
      %v901 = vor.u32 %v899, %v897
      %v903 = vshll.u32 %v771, 16
      %v905 = vrot.slane %v903, 1
      %v906 = vsel %vm538, %v901, %v905
      %v907 = vshrl.u32 %v771, 16
      %v909 = vor.u32 %v907, %v905
      %v911 = vshll.u32 %v772, 16
      %v913 = vrot.slane %v911, 1
      %v914 = vsel %vm538, %v909, %v913
      %v915 = vshrl.u32 %v772, 16
      %v917 = vor.u32 %v915, %v913
      %v919 = vshll.u32 %v773, 16
      %v921 = vrot.slane %v919, 1
      %v922 = vsel %vm538, %v917, %v921
      %v923 = vshrl.u32 %v773, 16
      %v925 = vor.u32 %v923, %v921
      %v927 = vshll.u32 %v806, 16
      %v929 = vrot.slane %v927, 1
      %v930 = vsel %vm538, %v925, %v929
      %931 = vrot.lane.b32.xlu0 %v818, 16
      %v932 = vpop.permute.xlu0 %931
      %933 = vrot.lane.b32.xlu0 %v826, 16
      %v934 = vpop.permute.xlu0 %933
      %935 = vrot.lane.b32.xlu0 %v834, 16
      %v936 = vpop.permute.xlu0 %935
      %937 = vrot.lane.b32.xlu0 %v842, 16
      %v938 = vpop.permute.xlu0 %937
      %939 = vrot.lane.b32.xlu0 %v850, 16
      %v940 = vpop.permute.xlu0 %939
      %941 = vrot.lane.b32.xlu0 %v858, 16
      %v942 = vpop.permute.xlu0 %941
      %943 = vrot.lane.b32.xlu0 %v866, 16
      %v944 = vpop.permute.xlu0 %943
      %945 = vrot.lane.b32.xlu0 %v874, 16
      %v946 = vpop.permute.xlu0 %945
      %947 = vrot.lane.b32.xlu0 %v882, 16
      %v948 = vpop.permute.xlu0 %947
      %949 = vrot.lane.b32.xlu0 %v890, 16
      %v950 = vpop.permute.xlu0 %949
      %951 = vrot.lane.b32.xlu0 %v898, 16
      %v952 = vpop.permute.xlu0 %951
      %953 = vrot.lane.b32.xlu0 %v906, 16
      %v954 = vpop.permute.xlu0 %953
      %955 = vrot.lane.b32.xlu0 %v914, 16
      %v956 = vpop.permute.xlu0 %955
      %957 = vrot.lane.b32.xlu0 %v922, 16
      %v958 = vpop.permute.xlu0 %957
      %959 = vrot.lane.b32.xlu0 %v930, 16
      %v960 = vpop.permute.xlu0 %959
      %v961 = vrot.slane %v759, 1
      %v962 = vrot.slane %v760, 1
      %v963 = vsel %vm693, %v961, %v962
      %v964 = vrot.slane %v761, 1
      %v965 = vsel %vm693, %v962, %v964
      %v966 = vrot.slane %v762, 1
      %v967 = vsel %vm693, %v964, %v966
      %v968 = vrot.slane %v763, 1
      %v969 = vsel %vm693, %v966, %v968
      %v970 = vrot.slane %v764, 1
      %v971 = vsel %vm693, %v968, %v970
      %v972 = vrot.slane %v765, 1
      %v973 = vsel %vm693, %v970, %v972
      %v974 = vrot.slane %v766, 1
      %v975 = vsel %vm693, %v972, %v974
      %v976 = vrot.slane %v767, 1
      %v977 = vsel %vm693, %v974, %v976
      %v978 = vrot.slane %v768, 1
      %v979 = vsel %vm693, %v976, %v978
      %v980 = vrot.slane %v769, 1
      %v981 = vsel %vm693, %v978, %v980
      %v982 = vrot.slane %v770, 1
      %v983 = vsel %vm693, %v980, %v982
      %v984 = vrot.slane %v771, 1
      %v985 = vsel %vm693, %v982, %v984
      %v986 = vrot.slane %v772, 1
      %v987 = vsel %vm693, %v984, %v986
      %v988 = vrot.slane %v773, 1
      %v989 = vsel %vm693, %v986, %v988
      %v990 = vrot.slane %v806, 1
      %v991 = vsel %vm693, %v988, %v990
      %992 = vrot.lane.b32.xlu0 %v963, 20
      %v993 = vpop.permute.xlu0 %992
      %994 = vrot.lane.b32.xlu0 %v965, 20
      %v995 = vpop.permute.xlu0 %994
      %996 = vrot.lane.b32.xlu0 %v967, 20
      %v997 = vpop.permute.xlu0 %996
      %998 = vrot.lane.b32.xlu0 %v969, 20
      %v999 = vpop.permute.xlu0 %998
      %1000 = vrot.lane.b32.xlu0 %v971, 20
      %v1001 = vpop.permute.xlu0 %1000
      %1002 = vrot.lane.b32.xlu0 %v973, 20
      %v1003 = vpop.permute.xlu0 %1002
      %1004 = vrot.lane.b32.xlu0 %v975, 20
      %v1005 = vpop.permute.xlu0 %1004
      %1006 = vrot.lane.b32.xlu0 %v977, 20
      %v1007 = vpop.permute.xlu0 %1006
      %1008 = vrot.lane.b32.xlu0 %v979, 20
      %v1009 = vpop.permute.xlu0 %1008
      %1010 = vrot.lane.b32.xlu0 %v981, 20
      %v1011 = vpop.permute.xlu0 %1010
      %1012 = vrot.lane.b32.xlu0 %v983, 20
      %v1013 = vpop.permute.xlu0 %1012
      %1014 = vrot.lane.b32.xlu0 %v985, 20
      %v1015 = vpop.permute.xlu0 %1014
      %1016 = vrot.lane.b32.xlu0 %v987, 20
      %v1017 = vpop.permute.xlu0 %1016
      %1018 = vrot.lane.b32.xlu0 %v989, 20
      %v1019 = vpop.permute.xlu0 %1018
      %1020 = vrot.lane.b32.xlu0 %v991, 20
      %v1021 = vpop.permute.xlu0 %1020
      %v1024 = vunpack.c.l.b16 %v457
      %v1025 = vunpack.c.l.b16 %v458
      %v1026 = vpack.c.b16 %v757, %v536
      %v1027 = vpack.c.b16 %v805, %v758
      %v1028 = vpack.c.b16 %v1025, %v1024
      %1029 = vrot.lane.b32.xlu0 %v523, 24
      %v1030 = vpop.permute.xlu0 %1029
      %1031 = vrot.lane.b32.xlu0 %v524, 24
      %v1032 = vpop.permute.xlu0 %1031
      %1033 = vrot.lane.b32.xlu0 %v525, 24
      %v1034 = vpop.permute.xlu0 %1033
      %1035 = vrot.lane.b32.xlu0 %v526, 24
      %v1036 = vpop.permute.xlu0 %1035
      %1037 = vrot.lane.b32.xlu0 %v527, 24
      %v1038 = vpop.permute.xlu0 %1037
      %1039 = vrot.lane.b32.xlu0 %v528, 24
      %v1040 = vpop.permute.xlu0 %1039
      %1041 = vrot.lane.b32.xlu0 %v529, 24
      %v1042 = vpop.permute.xlu0 %1041
      %1043 = vrot.lane.b32.xlu0 %v530, 24
      %v1044 = vpop.permute.xlu0 %1043
      %1045 = vrot.lane.b32.xlu0 %v531, 24
      %v1046 = vpop.permute.xlu0 %1045
      %1047 = vrot.lane.b32.xlu0 %v532, 24
      %v1048 = vpop.permute.xlu0 %1047
      %1049 = vrot.lane.b32.xlu0 %v533, 24
      %v1050 = vpop.permute.xlu0 %1049
      %1051 = vrot.lane.b32.xlu0 %v534, 24
      %v1052 = vpop.permute.xlu0 %1051
      %1053 = vrot.lane.b32.xlu0 %v1026, 24
      %v1054 = vpop.permute.xlu0 %1053
      %1055 = vrot.lane.b32.xlu0 %v1027, 24
      %v1056 = vpop.permute.xlu0 %1055
      %1057 = vrot.lane.b32.xlu0 %v1028, 24
      %v1058 = vpop.permute.xlu0 %1057
      %v1060 = vunpack.c.l.b16 %v459
      %v1061 = vpack.c.b16 %v1060, %v1060
      %v1063 = vshll.u32 %v1026, 16
      %v1065 = vrot.slane %v1063, 1
      %v1066 = vsel %vm538, %v657, %v1065
      %v1067 = vshrl.u32 %v1026, 16
      %v1069 = vor.u32 %v1067, %v1065
      %v1071 = vshll.u32 %v1027, 16
      %v1073 = vrot.slane %v1071, 1
      %v1074 = vsel %vm538, %v1069, %v1073
      %v1075 = vshrl.u32 %v1027, 16
      %v1077 = vor.u32 %v1075, %v1073
      %v1079 = vshll.u32 %v1028, 16
      %v1081 = vrot.slane %v1079, 1
      %v1082 = vsel %vm538, %v1077, %v1081
      %v1083 = vshrl.u32 %v1028, 16
      %v1085 = vor.u32 %v1083, %v1081
      %v1087 = vshll.u32 %v1061, 16
      %v1089 = vrot.slane %v1087, 1
      %v1090 = vsel %vm538, %v1085, %v1089
      %1091 = vrot.lane.b32.xlu0 %v574, 28
      %v1092 = vpop.permute.xlu0 %1091
      %1093 = vrot.lane.b32.xlu0 %v582, 28
      %v1094 = vpop.permute.xlu0 %1093
      %1095 = vrot.lane.b32.xlu0 %v590, 28
      %v1096 = vpop.permute.xlu0 %1095
      %1097 = vrot.lane.b32.xlu0 %v598, 28
      %v1098 = vpop.permute.xlu0 %1097
      %1099 = vrot.lane.b32.xlu0 %v606, 28
      %v1100 = vpop.permute.xlu0 %1099
      %1101 = vrot.lane.b32.xlu0 %v614, 28
      %v1102 = vpop.permute.xlu0 %1101
      %1103 = vrot.lane.b32.xlu0 %v622, 28
      %v1104 = vpop.permute.xlu0 %1103
      %1105 = vrot.lane.b32.xlu0 %v630, 28
      %v1106 = vpop.permute.xlu0 %1105
      %1107 = vrot.lane.b32.xlu0 %v638, 28
      %v1108 = vpop.permute.xlu0 %1107
      %1109 = vrot.lane.b32.xlu0 %v646, 28
      %v1110 = vpop.permute.xlu0 %1109
      %1111 = vrot.lane.b32.xlu0 %v654, 28
      %v1112 = vpop.permute.xlu0 %1111
      %1113 = vrot.lane.b32.xlu0 %v1066, 28
      %v1114 = vpop.permute.xlu0 %1113
      %1115 = vrot.lane.b32.xlu0 %v1074, 28
      %v1116 = vpop.permute.xlu0 %1115
      %1117 = vrot.lane.b32.xlu0 %v1082, 28
      %v1118 = vpop.permute.xlu0 %1117
      %1119 = vrot.lane.b32.xlu0 %v1090, 28
      %v1120 = vpop.permute.xlu0 %1119
      %v1121 = vrot.slane %v1026, 1
      %v1122 = vsel %vm693, %v721, %v1121
      %v1123 = vrot.slane %v1027, 1
      %v1124 = vsel %vm693, %v1121, %v1123
      %v1125 = vrot.slane %v1028, 1
      %v1126 = vsel %vm693, %v1123, %v1125
      %v1127 = vrot.slane %v1061, 1
      %v1128 = vsel %vm693, %v1125, %v1127
      %1129 = vrot.lane.b32.xlu0 %v702, 32
      %v1130 = vpop.permute.xlu0 %1129
      %1131 = vrot.lane.b32.xlu0 %v704, 32
      %v1132 = vpop.permute.xlu0 %1131
      %1133 = vrot.lane.b32.xlu0 %v706, 32
      %v1134 = vpop.permute.xlu0 %1133
      %1135 = vrot.lane.b32.xlu0 %v708, 32
      %v1136 = vpop.permute.xlu0 %1135
      %1137 = vrot.lane.b32.xlu0 %v710, 32
      %v1138 = vpop.permute.xlu0 %1137
      %1139 = vrot.lane.b32.xlu0 %v712, 32
      %v1140 = vpop.permute.xlu0 %1139
      %1141 = vrot.lane.b32.xlu0 %v714, 32
      %v1142 = vpop.permute.xlu0 %1141
      %1143 = vrot.lane.b32.xlu0 %v716, 32
      %v1144 = vpop.permute.xlu0 %1143
      %1145 = vrot.lane.b32.xlu0 %v718, 32
      %v1146 = vpop.permute.xlu0 %1145
      %1147 = vrot.lane.b32.xlu0 %v720, 32
      %v1148 = vpop.permute.xlu0 %1147
      %1149 = vrot.lane.b32.xlu0 %v722, 32
      %v1150 = vpop.permute.xlu0 %1149
      %1151 = vrot.lane.b32.xlu0 %v1122, 32
      %v1152 = vpop.permute.xlu0 %1151
      %1153 = vrot.lane.b32.xlu0 %v1124, 32
      %v1154 = vpop.permute.xlu0 %1153
      %1155 = vrot.lane.b32.xlu0 %v1126, 32
      %v1156 = vpop.permute.xlu0 %1155
      %1157 = vrot.lane.b32.xlu0 %v1128, 32
      %v1158 = vpop.permute.xlu0 %1157
      %vm1159 = vcmask 31744
      %v1161 = vsel %vm1159, %v520, %v664
      %v1163 = vsel %vm1159, %v521, %v666
      %v1165 = vsel %vm1159, %v522, %v668
      %v1167 = vsel %vm1159, %v523, %v670
      %v1169 = vsel %vm1159, %v524, %v672
      %v1171 = vsel %vm1159, %v525, %v674
      %v1173 = vsel %vm1159, %v526, %v676
      %v1175 = vsel %vm1159, %v527, %v678
      %v1177 = vsel %vm1159, %v528, %v680
      %v1179 = vsel %vm1159, %v529, %v682
      %v1181 = vsel %vm1159, %v530, %v684
      %v1183 = vsel %vm1159, %v531, %v686
      %v1185 = vsel %vm1159, %v532, %v688
      %v1187 = vsel %vm1159, %v533, %v690
      %v1189 = vsel %vm1159, %v534, %v692
      %vm1190 = vcmask 64512
      %v1192 = vsel %vm1190, %v1161, %v726
      %v1194 = vsel %vm1190, %v1163, %v728
      %v1196 = vsel %vm1190, %v1165, %v730
      %v1198 = vsel %vm1190, %v1167, %v732
      %v1200 = vsel %vm1190, %v1169, %v734
      %v1202 = vsel %vm1190, %v1171, %v736
      %v1204 = vsel %vm1190, %v1173, %v738
      %v1206 = vsel %vm1190, %v1175, %v740
      %v1208 = vsel %vm1190, %v1177, %v742
      %v1210 = vsel %vm1190, %v1179, %v744
      %v1212 = vsel %vm1190, %v1181, %v746
      %v1214 = vsel %vm1190, %v1183, %v748
      %v1216 = vsel %vm1190, %v1185, %v750
      %v1218 = vsel %vm1190, %v1187, %v752
      %v1220 = vsel %vm1190, %v1189, %v754
      %vm1221 = vcmask 97280
      %v1223 = vsel %vm1221, %v1192, %v775
      %v1225 = vsel %vm1221, %v1194, %v777
      %v1227 = vsel %vm1221, %v1196, %v779
      %v1229 = vsel %vm1221, %v1198, %v781
      %v1231 = vsel %vm1221, %v1200, %v783
      %v1233 = vsel %vm1221, %v1202, %v785
      %v1235 = vsel %vm1221, %v1204, %v787
      %v1237 = vsel %vm1221, %v1206, %v789
      %v1239 = vsel %vm1221, %v1208, %v791
      %v1241 = vsel %vm1221, %v1210, %v793
      %v1243 = vsel %vm1221, %v1212, %v795
      %v1245 = vsel %vm1221, %v1214, %v797
      %v1247 = vsel %vm1221, %v1216, %v799
      %v1249 = vsel %vm1221, %v1218, %v801
      %v1251 = vsel %vm1221, %v1220, %v803
      %vm1252 = vcmask 130048
      %v1254 = vsel %vm1252, %v1223, %v932
      %v1256 = vsel %vm1252, %v1225, %v934
      %v1258 = vsel %vm1252, %v1227, %v936
      %v1260 = vsel %vm1252, %v1229, %v938
      %v1262 = vsel %vm1252, %v1231, %v940
      %v1264 = vsel %vm1252, %v1233, %v942
      %v1266 = vsel %vm1252, %v1235, %v944
      %v1268 = vsel %vm1252, %v1237, %v946
      %v1270 = vsel %vm1252, %v1239, %v948
      %v1272 = vsel %vm1252, %v1241, %v950
      %v1274 = vsel %vm1252, %v1243, %v952
      %v1276 = vsel %vm1252, %v1245, %v954
      %v1278 = vsel %vm1252, %v1247, %v956
      %v1280 = vsel %vm1252, %v1249, %v958
      %v1282 = vsel %vm1252, %v1251, %v960
      %vm1283 = vcmask 162816
      %v1285 = vsel %vm1283, %v1254, %v993
      %v1287 = vsel %vm1283, %v1256, %v995
      %v1289 = vsel %vm1283, %v1258, %v997
      %v1291 = vsel %vm1283, %v1260, %v999
      %v1293 = vsel %vm1283, %v1262, %v1001
      %v1295 = vsel %vm1283, %v1264, %v1003
      %v1297 = vsel %vm1283, %v1266, %v1005
      %v1299 = vsel %vm1283, %v1268, %v1007
      %v1301 = vsel %vm1283, %v1270, %v1009
      %v1303 = vsel %vm1283, %v1272, %v1011
      %v1305 = vsel %vm1283, %v1274, %v1013
      %v1307 = vsel %vm1283, %v1276, %v1015
      %v1309 = vsel %vm1283, %v1278, %v1017
      %v1311 = vsel %vm1283, %v1280, %v1019
      %v1313 = vsel %vm1283, %v1282, %v1021
      %vm1314 = vcmask 195584
      %v1316 = vsel %vm1314, %v1285, %v1030
      %v1318 = vsel %vm1314, %v1287, %v1032
      %v1320 = vsel %vm1314, %v1289, %v1034
      %v1322 = vsel %vm1314, %v1291, %v1036
      %v1324 = vsel %vm1314, %v1293, %v1038
      %v1326 = vsel %vm1314, %v1295, %v1040
      %v1328 = vsel %vm1314, %v1297, %v1042
      %v1330 = vsel %vm1314, %v1299, %v1044
      %v1332 = vsel %vm1314, %v1301, %v1046
      %v1334 = vsel %vm1314, %v1303, %v1048
      %v1336 = vsel %vm1314, %v1305, %v1050
      %v1338 = vsel %vm1314, %v1307, %v1052
      %v1340 = vsel %vm1314, %v1309, %v1054
      %v1342 = vsel %vm1314, %v1311, %v1056
      %v1344 = vsel %vm1314, %v1313, %v1058
      %vm1345 = vcmask 228352
      %v1347 = vsel %vm1345, %v1316, %v1092
      %v1349 = vsel %vm1345, %v1318, %v1094
      %v1351 = vsel %vm1345, %v1320, %v1096
      %v1353 = vsel %vm1345, %v1322, %v1098
      %v1355 = vsel %vm1345, %v1324, %v1100
      %v1357 = vsel %vm1345, %v1326, %v1102
      %v1359 = vsel %vm1345, %v1328, %v1104
      %v1361 = vsel %vm1345, %v1330, %v1106
      %v1363 = vsel %vm1345, %v1332, %v1108
      %v1365 = vsel %vm1345, %v1334, %v1110
      %v1367 = vsel %vm1345, %v1336, %v1112
      %v1369 = vsel %vm1345, %v1338, %v1114
      %v1371 = vsel %vm1345, %v1340, %v1116
      %v1373 = vsel %vm1345, %v1342, %v1118
      %v1375 = vsel %vm1345, %v1344, %v1120
      %vm1376 = vcmask 261120
      %v1378 = vsel %vm1376, %v1347, %v1130
      %v1380 = vsel %vm1376, %v1349, %v1132
      %v1382 = vsel %vm1376, %v1351, %v1134
      %v1384 = vsel %vm1376, %v1353, %v1136
      %v1386 = vsel %vm1376, %v1355, %v1138
      %v1388 = vsel %vm1376, %v1357, %v1140
      %v1390 = vsel %vm1376, %v1359, %v1142
      %v1392 = vsel %vm1376, %v1361, %v1144
      %v1394 = vsel %vm1376, %v1363, %v1146
      %v1396 = vsel %vm1376, %v1365, %v1148
      %v1398 = vsel %vm1376, %v1367, %v1150
      %v1400 = vsel %vm1376, %v1369, %v1152
      %v1402 = vsel %vm1376, %v1371, %v1154
      %v1404 = vsel %vm1376, %v1373, %v1156
      %v1406 = vsel %vm1376, %v1375, %v1158
      %v1408 = vperm.slane %v385, 0
      %v1415 = vunpack.c.l.b16 %v380
      %v1416 = vunpack.c.l.b16 %v381
      %v1417 = vunpack.c.l.b16 %v382
      %v1418 = vunpack.c.l.b16 %v383
      %v1419 = vunpack.c.l.b16 %v384
      %v1420 = vpack.c.b16 %v1416, %v1415
      %v1421 = vpack.c.b16 %v1418, %v1417
      %v1422 = vpack.c.b16 %v1419, %v1419
      %vm1425 = vcmask 293888
      %v1426 = vsel %vm1425, %v1378, 0
      %v1428 = vsel %vm1425, %v1380, 0
      %v1430 = vsel %vm1425, %v1382, 0
      %v1432 = vsel %vm1425, %v1384, 0
      %v1434 = vsel %vm1425, %v1386, 0
      %v1436 = vsel %vm1425, %v1388, 0
      %v1438 = vsel %vm1425, %v1390, 0
      %v1440 = vsel %vm1425, %v1392, 0
      %v1442 = vsel %vm1425, %v1394, 0
      %v1444 = vsel %vm1425, %v1396, 0
      %v1446 = vsel %vm1425, %v1398, 0
      %v1448 = vsel %vm1425, %v1400, 0
      %v1450 = vsel %vm1425, %v1402, 0
      %v1452 = vsel %vm1425, %v1404, 0
      %v1454 = vsel %vm1425, %v1406, 0
      %vm1456 = vcmask 1041408
      %v1458 = vsel %vm1456, %v1422, 0
      %1460 = vmatpush.bf16.msra.mxu0 0
      %1461 = vmatpush.bf16.msra.mxu0 0
      %1462 = vmatpush.bf16.msra.mxu0 0
      %1463 = vmatpush.bf16.msra.mxu0 0
      %1464 = vmatpush.bf16.msra.mxu0 0
      %1465 = vmatpush.bf16.msra.mxu0 %v1458
      %1466 = vmatpush.bf16.msra.mxu0 %v1421
      %1467 = vmatpush.bf16.msra.mxu0 %v1420
      %1468 = vmatmul.bf16.gmra.mxu0 %v1426
      %v1469 = vpop.f32.mrf.mxu0
      %v1470 = vadd.f32 %v1408, %v1469
      %v1471 = vpop.f32.mrf.mxu0
      %v1472 = vadd.f32 %v1408, %v1471
      %1473 = vmatmul.bf16.gmra.mxu0 %v1428
      %v1474 = vpop.f32.mrf.mxu0
      %v1475 = vadd.f32 %v1408, %v1474
      %v1476 = vpop.f32.mrf.mxu0
      %v1477 = vadd.f32 %v1408, %v1476
      %1478 = vmatmul.bf16.gmra.mxu0 %v1430
      %v1479 = vpop.f32.mrf.mxu0
      %v1480 = vadd.f32 %v1408, %v1479
      %v1481 = vpop.f32.mrf.mxu0
      %v1482 = vadd.f32 %v1408, %v1481
      %1483 = vmatmul.bf16.gmra.mxu0 %v1432
      %v1484 = vpop.f32.mrf.mxu0
      %v1485 = vadd.f32 %v1408, %v1484
      %v1486 = vpop.f32.mrf.mxu0
      %v1487 = vadd.f32 %v1408, %v1486
      %1488 = vmatmul.bf16.gmra.mxu0 %v1434
      %v1489 = vpop.f32.mrf.mxu0
      %v1490 = vadd.f32 %v1408, %v1489
      %v1491 = vpop.f32.mrf.mxu0
      %v1492 = vadd.f32 %v1408, %v1491
      %1493 = vmatmul.bf16.gmra.mxu0 %v1436
      %v1494 = vpop.f32.mrf.mxu0
      %v1495 = vadd.f32 %v1408, %v1494
      %v1496 = vpop.f32.mrf.mxu0
      %v1497 = vadd.f32 %v1408, %v1496
      %1498 = vmatmul.bf16.gmra.mxu0 %v1438
      %v1499 = vpop.f32.mrf.mxu0
      %v1500 = vadd.f32 %v1408, %v1499
      %v1501 = vpop.f32.mrf.mxu0
      %v1502 = vadd.f32 %v1408, %v1501
      %1503 = vmatmul.bf16.gmra.mxu0 %v1440
      %v1504 = vpop.f32.mrf.mxu0
      %v1505 = vadd.f32 %v1408, %v1504
      %v1506 = vpop.f32.mrf.mxu0
      %v1507 = vadd.f32 %v1408, %v1506
      %1508 = vmatmul.bf16.gmra.mxu0 %v1442
      %v1509 = vpop.f32.mrf.mxu0
      %v1510 = vadd.f32 %v1408, %v1509
      %v1511 = vpop.f32.mrf.mxu0
      %v1512 = vadd.f32 %v1408, %v1511
      %1513 = vmatmul.bf16.gmra.mxu0 %v1444
      %v1514 = vpop.f32.mrf.mxu0
      %v1515 = vadd.f32 %v1408, %v1514
      %v1516 = vpop.f32.mrf.mxu0
      %v1517 = vadd.f32 %v1408, %v1516
      %1518 = vmatmul.bf16.gmra.mxu0 %v1446
      %v1519 = vpop.f32.mrf.mxu0
      %v1520 = vadd.f32 %v1408, %v1519
      %v1521 = vpop.f32.mrf.mxu0
      %v1522 = vadd.f32 %v1408, %v1521
      %1523 = vmatmul.bf16.gmra.mxu0 %v1448
      %v1524 = vpop.f32.mrf.mxu0
      %v1525 = vadd.f32 %v1408, %v1524
      %v1526 = vpop.f32.mrf.mxu0
      %v1527 = vadd.f32 %v1408, %v1526
      %1528 = vmatmul.bf16.gmra.mxu0 %v1450
      %v1529 = vpop.f32.mrf.mxu0
      %v1530 = vadd.f32 %v1408, %v1529
      %v1531 = vpop.f32.mrf.mxu0
      %v1532 = vadd.f32 %v1408, %v1531
      %1533 = vmatmul.bf16.gmra.mxu0 %v1452
      %v1534 = vpop.f32.mrf.mxu0
      %v1535 = vadd.f32 %v1408, %v1534
      %v1536 = vpop.f32.mrf.mxu0
      %v1537 = vadd.f32 %v1408, %v1536
      %1538 = vmatmul.bf16.gmra.mxu0 %v1454
      %v1539 = vpop.f32.mrf.mxu0
      %v1540 = vadd.f32 %v1408, %v1539
      %v1541 = vpop.f32.mrf.mxu0
      %v1542 = vadd.f32 %v1408, %v1541
      %1543 = vdwg.mxu0
      %v1544 = vmax.f32 %v1470, 0.0
      %v1545 = vmax.f32 %v1472, 0.0
      %v1546 = vmax.f32 %v1475, 0.0
      %v1547 = vmax.f32 %v1477, 0.0
      %v1548 = vmax.f32 %v1480, 0.0
      %v1549 = vmax.f32 %v1482, 0.0
      %v1550 = vmax.f32 %v1485, 0.0
      %v1551 = vmax.f32 %v1487, 0.0
      %v1552 = vmax.f32 %v1490, 0.0
      %v1553 = vmax.f32 %v1492, 0.0
      %v1554 = vmax.f32 %v1495, 0.0
      %v1555 = vmax.f32 %v1497, 0.0
      %v1556 = vmax.f32 %v1500, 0.0
      %v1557 = vmax.f32 %v1502, 0.0
      %v1558 = vmax.f32 %v1505, 0.0
      %v1559 = vmax.f32 %v1507, 0.0
      %v1560 = vmax.f32 %v1510, 0.0
      %v1561 = vmax.f32 %v1512, 0.0
      %v1562 = vmax.f32 %v1515, 0.0
      %v1563 = vmax.f32 %v1517, 0.0
      %v1564 = vmax.f32 %v1520, 0.0
      %v1565 = vmax.f32 %v1522, 0.0
      %v1566 = vmax.f32 %v1525, 0.0
      %v1567 = vmax.f32 %v1527, 0.0
      %v1568 = vmax.f32 %v1530, 0.0
      %v1569 = vmax.f32 %v1532, 0.0
      %v1570 = vmax.f32 %v1535, 0.0
      %v1571 = vmax.f32 %v1537, 0.0
      %v1572 = vmax.f32 %v1540, 0.0
      %v1573 = vmax.f32 %v1542, 0.0
      %v1574 = vsel %vm350, 1, 0
      %v1575 = vsel %vm351, 1, 0
      %v1576 = vsel %vm352, 1, 0
      %v1577 = vsel %vm353, 1, 0
      %v1578 = vsel %vm354, 1, 0
      %v1579 = vsel %vm355, 1, 0
      %v1580 = vsel %vm356, 1, 0
      %v1581 = vsel %vm357, 1, 0
      %v1582 = vsel %vm358, 1, 0
      %v1583 = vsel %vm359, 1, 0
      %v1584 = vsel %vm360, 1, 0
      %v1585 = vsel %vm361, 1, 0
      %v1586 = vsel %vm362, 1, 0
      %v1587 = vsel %vm363, 1, 0
      %v1588 = vsel %vm364, 1, 0
      %v1589 = vsel %vm365, 1, 0
      %v1590 = vsel %vm366, 1, 0
      %v1591 = vsel %vm367, 1, 0
      %v1592 = vsel %vm368, 1, 0
      %v1593 = vsel %vm369, 1, 0
      %v1594 = vsel %vm370, 1, 0
      %v1595 = vsel %vm371, 1, 0
      %v1596 = vsel %vm372, 1, 0
      %v1597 = vsel %vm373, 1, 0
      %v1598 = vsel %vm374, 1, 0
      %v1599 = vsel %vm375, 1, 0
      %v1600 = vsel %vm376, 1, 0
      %v1601 = vsel %vm377, 1, 0
      %v1602 = vsel %vm378, 1, 0
      %v1603 = vsel %vm379, 1, 0
      %vm1604 = vcmp.eq.s32.totalorder %v1574, 1
      %vm1605 = vcmp.eq.s32.totalorder %v1575, 1
      %vm1606 = vcmp.eq.s32.totalorder %v1576, 1
      %vm1607 = vcmp.eq.s32.totalorder %v1577, 1
      %vm1608 = vcmp.eq.s32.totalorder %v1578, 1
      %vm1609 = vcmp.eq.s32.totalorder %v1579, 1
      %vm1610 = vcmp.eq.s32.totalorder %v1580, 1
      %vm1611 = vcmp.eq.s32.totalorder %v1581, 1
      %vm1612 = vcmp.eq.s32.totalorder %v1582, 1
      %vm1613 = vcmp.eq.s32.totalorder %v1583, 1
      %vm1614 = vcmp.eq.s32.totalorder %v1584, 1
      %vm1615 = vcmp.eq.s32.totalorder %v1585, 1
      %vm1616 = vcmp.eq.s32.totalorder %v1586, 1
      %vm1617 = vcmp.eq.s32.totalorder %v1587, 1
      %vm1618 = vcmp.eq.s32.totalorder %v1588, 1
      %vm1619 = vcmp.eq.s32.totalorder %v1589, 1
      %vm1620 = vcmp.eq.s32.totalorder %v1590, 1
      %vm1621 = vcmp.eq.s32.totalorder %v1591, 1
      %vm1622 = vcmp.eq.s32.totalorder %v1592, 1
      %vm1623 = vcmp.eq.s32.totalorder %v1593, 1
      %vm1624 = vcmp.eq.s32.totalorder %v1594, 1
      %vm1625 = vcmp.eq.s32.totalorder %v1595, 1
      %vm1626 = vcmp.eq.s32.totalorder %v1596, 1
      %vm1627 = vcmp.eq.s32.totalorder %v1597, 1
      %vm1628 = vcmp.eq.s32.totalorder %v1598, 1
      %vm1629 = vcmp.eq.s32.totalorder %v1599, 1
      %vm1630 = vcmp.eq.s32.totalorder %v1600, 1
      %vm1631 = vcmp.eq.s32.totalorder %v1601, 1
      %vm1632 = vcmp.eq.s32.totalorder %v1602, 1
      %vm1633 = vcmp.eq.s32.totalorder %v1603, 1
      %v1634 = vsel %vm1604, %v1544, 0.0
      %v1635 = vsel %vm1605, %v1545, 0.0
      %v1636 = vsel %vm1606, %v1546, 0.0
      %v1637 = vsel %vm1607, %v1547, 0.0
      %v1638 = vsel %vm1608, %v1548, 0.0
      %v1639 = vsel %vm1609, %v1549, 0.0
      %v1640 = vsel %vm1610, %v1550, 0.0
      %v1641 = vsel %vm1611, %v1551, 0.0
      %v1642 = vsel %vm1612, %v1552, 0.0
      %v1643 = vsel %vm1613, %v1553, 0.0
      %v1644 = vsel %vm1614, %v1554, 0.0
      %v1645 = vsel %vm1615, %v1555, 0.0
      %v1646 = vsel %vm1616, %v1556, 0.0
      %v1647 = vsel %vm1617, %v1557, 0.0
      %v1648 = vsel %vm1618, %v1558, 0.0
      %v1649 = vsel %vm1619, %v1559, 0.0
      %v1650 = vsel %vm1620, %v1560, 0.0
      %v1651 = vsel %vm1621, %v1561, 0.0
      %v1652 = vsel %vm1622, %v1562, 0.0
      %v1653 = vsel %vm1623, %v1563, 0.0
      %v1654 = vsel %vm1624, %v1564, 0.0
      %v1655 = vsel %vm1625, %v1565, 0.0
      %v1656 = vsel %vm1626, %v1566, 0.0
      %v1657 = vsel %vm1627, %v1567, 0.0
      %v1658 = vsel %vm1628, %v1568, 0.0
      %v1659 = vsel %vm1629, %v1569, 0.0
      %v1660 = vsel %vm1630, %v1570, 0.0
      %v1661 = vsel %vm1631, %v1571, 0.0
      %v1662 = vsel %vm1632, %v1572, 0.0
      %v1663 = vsel %vm1633, %v1573, 0.0
      %v1664 = vpack.c.bf16 %v1634, %v1634
      %v1665 = vpack.c.bf16 %v1635, %v1635
      %v1666 = vpack.c.bf16 %v1636, %v1636
      %v1667 = vpack.c.bf16 %v1637, %v1637
      %v1668 = vpack.c.bf16 %v1638, %v1638
      %v1669 = vpack.c.bf16 %v1639, %v1639
      %v1670 = vpack.c.bf16 %v1640, %v1640
      %v1671 = vpack.c.bf16 %v1641, %v1641
      %v1672 = vpack.c.bf16 %v1642, %v1642
      %v1673 = vpack.c.bf16 %v1643, %v1643
      %v1674 = vpack.c.bf16 %v1644, %v1644
      %v1675 = vpack.c.bf16 %v1645, %v1645
      %v1676 = vpack.c.bf16 %v1646, %v1646
      %v1677 = vpack.c.bf16 %v1647, %v1647
      %v1678 = vpack.c.bf16 %v1648, %v1648
      %v1679 = vpack.c.bf16 %v1649, %v1649
      %v1680 = vpack.c.bf16 %v1650, %v1650
      %v1681 = vpack.c.bf16 %v1651, %v1651
      %v1682 = vpack.c.bf16 %v1652, %v1652
      %v1683 = vpack.c.bf16 %v1653, %v1653
      %v1684 = vpack.c.bf16 %v1654, %v1654
      %v1685 = vpack.c.bf16 %v1655, %v1655
      %v1686 = vpack.c.bf16 %v1656, %v1656
      %v1687 = vpack.c.bf16 %v1657, %v1657
      %v1688 = vpack.c.bf16 %v1658, %v1658
      %v1689 = vpack.c.bf16 %v1659, %v1659
      %v1690 = vpack.c.bf16 %v1660, %v1660
      %v1691 = vpack.c.bf16 %v1661, %v1661
      %v1692 = vpack.c.bf16 %v1662, %v1662
      %v1693 = vpack.c.bf16 %v1663, %v1663
      %v1718 = vunpack.c.l.b16 %v1664
      %v1719 = vunpack.c.l.b16 %v1665
      %v1720 = vunpack.c.l.b16 %v1666
      %v1721 = vunpack.c.l.b16 %v1667
      %v1722 = vunpack.c.l.b16 %v1668
      %v1723 = vunpack.c.l.b16 %v1669
      %v1724 = vunpack.c.l.b16 %v1670
      %v1725 = vunpack.c.l.b16 %v1671
      %v1726 = vunpack.c.l.b16 %v1672
      %v1727 = vunpack.c.l.b16 %v1673
      %v1728 = vunpack.c.l.b16 %v1674
      %v1729 = vunpack.c.l.b16 %v1675
      %v1730 = vunpack.c.l.b16 %v1676
      %v1731 = vunpack.c.l.b16 %v1677
      %v1732 = vunpack.c.l.b16 %v1678
      %v1733 = vunpack.c.l.b16 %v1679
      %v1734 = vunpack.c.l.b16 %v1680
      %v1735 = vunpack.c.l.b16 %v1681
      %v1736 = vunpack.c.l.b16 %v1682
      %v1737 = vunpack.c.l.b16 %v1683
      %v1738 = vunpack.c.l.b16 %v1684
      %v1739 = vunpack.c.l.b16 %v1685
      %v1740 = vunpack.c.l.b16 %v1686
      %v1741 = vunpack.c.l.b16 %v1687
      %v1742 = vpack.c.b16 %v1719, %v1718
      %v1743 = vpack.c.b16 %v1721, %v1720
      %v1744 = vpack.c.b16 %v1723, %v1722
      %v1745 = vpack.c.b16 %v1725, %v1724
      %v1746 = vpack.c.b16 %v1727, %v1726
      %v1747 = vpack.c.b16 %v1729, %v1728
      %v1748 = vpack.c.b16 %v1731, %v1730
      %v1749 = vpack.c.b16 %v1733, %v1732
      %v1750 = vpack.c.b16 %v1735, %v1734
      %v1751 = vpack.c.b16 %v1737, %v1736
      %v1752 = vpack.c.b16 %v1739, %v1738
      %v1753 = vpack.c.b16 %v1741, %v1740
      %v1755 = vshrl.u32 %v1742, 16
      %v1757 = vshll.u32 %v1742, 16
      %v1759 = vrot.slane %v1757, 1
      %v1760 = vor.u32 %v1755, %v1759
      %v1762 = vshll.u32 %v1743, 16
      %v1764 = vrot.slane %v1762, 1
      %v1765 = vsel %vm538, %v1760, %v1764
      %v1766 = vshrl.u32 %v1743, 16
      %v1768 = vor.u32 %v1766, %v1764
      %v1770 = vshll.u32 %v1744, 16
      %v1772 = vrot.slane %v1770, 1
      %v1773 = vsel %vm538, %v1768, %v1772
      %v1774 = vshrl.u32 %v1744, 16
      %v1776 = vor.u32 %v1774, %v1772
      %v1778 = vshll.u32 %v1745, 16
      %v1780 = vrot.slane %v1778, 1
      %v1781 = vsel %vm538, %v1776, %v1780
      %v1782 = vshrl.u32 %v1745, 16
      %v1784 = vor.u32 %v1782, %v1780
      %v1786 = vshll.u32 %v1746, 16
      %v1788 = vrot.slane %v1786, 1
      %v1789 = vsel %vm538, %v1784, %v1788
      %v1790 = vshrl.u32 %v1746, 16
      %v1792 = vor.u32 %v1790, %v1788
      %v1794 = vshll.u32 %v1747, 16
      %v1796 = vrot.slane %v1794, 1
      %v1797 = vsel %vm538, %v1792, %v1796
      %v1798 = vshrl.u32 %v1747, 16
      %v1800 = vor.u32 %v1798, %v1796
      %v1802 = vshll.u32 %v1748, 16
      %v1804 = vrot.slane %v1802, 1
      %v1805 = vsel %vm538, %v1800, %v1804
      %v1806 = vshrl.u32 %v1748, 16
      %v1808 = vor.u32 %v1806, %v1804
      %v1810 = vshll.u32 %v1749, 16
      %v1812 = vrot.slane %v1810, 1
      %v1813 = vsel %vm538, %v1808, %v1812
      %v1814 = vshrl.u32 %v1749, 16
      %v1816 = vor.u32 %v1814, %v1812
      %v1818 = vshll.u32 %v1750, 16
      %v1820 = vrot.slane %v1818, 1
      %v1821 = vsel %vm538, %v1816, %v1820
      %v1822 = vshrl.u32 %v1750, 16
      %v1824 = vor.u32 %v1822, %v1820
      %v1826 = vshll.u32 %v1751, 16
      %v1828 = vrot.slane %v1826, 1
      %v1829 = vsel %vm538, %v1824, %v1828
      %v1830 = vshrl.u32 %v1751, 16
      %v1832 = vor.u32 %v1830, %v1828
      %v1834 = vshll.u32 %v1752, 16
      %v1836 = vrot.slane %v1834, 1
      %v1837 = vsel %vm538, %v1832, %v1836
      %v1838 = vshrl.u32 %v1752, 16
      %v1840 = vor.u32 %v1838, %v1836
      %v1842 = vshll.u32 %v1753, 16
      %v1844 = vrot.slane %v1842, 1
      %v1845 = vsel %vm538, %v1840, %v1844
      %v1846 = vshrl.u32 %v1753, 16
      %v1848 = vor.u32 %v1846, %v1844
      %1849 = vrot.lane.b32.xlu0 %v1765, 32
      %v1850 = vpop.permute.xlu0 %1849
      %1851 = vrot.lane.b32.xlu0 %v1773, 32
      %v1852 = vpop.permute.xlu0 %1851
      %1853 = vrot.lane.b32.xlu0 %v1781, 32
      %v1854 = vpop.permute.xlu0 %1853
      %1855 = vrot.lane.b32.xlu0 %v1789, 32
      %v1856 = vpop.permute.xlu0 %1855
      %1857 = vrot.lane.b32.xlu0 %v1797, 32
      %v1858 = vpop.permute.xlu0 %1857
      %1859 = vrot.lane.b32.xlu0 %v1805, 32
      %v1860 = vpop.permute.xlu0 %1859
      %1861 = vrot.lane.b32.xlu0 %v1813, 32
      %v1862 = vpop.permute.xlu0 %1861
      %1863 = vrot.lane.b32.xlu0 %v1821, 32
      %v1864 = vpop.permute.xlu0 %1863
      %1865 = vrot.lane.b32.xlu0 %v1829, 32
      %v1866 = vpop.permute.xlu0 %1865
      %1867 = vrot.lane.b32.xlu0 %v1837, 32
      %v1868 = vpop.permute.xlu0 %1867
      %1869 = vrot.lane.b32.xlu0 %v1845, 32
      %v1870 = vpop.permute.xlu0 %1869
      %1871 = vrot.lane.b32.xlu0 %v1848, 32
      %v1872 = vpop.permute.xlu0 %1871
      %v1873 = vrot.slane %v1742, 1
      %v1874 = vrot.slane %v1743, 1
      %v1875 = vsel %vm693, %v1873, %v1874
      %v1876 = vrot.slane %v1744, 1
      %v1877 = vsel %vm693, %v1874, %v1876
      %v1878 = vrot.slane %v1745, 1
      %v1879 = vsel %vm693, %v1876, %v1878
      %v1880 = vrot.slane %v1746, 1
      %v1881 = vsel %vm693, %v1878, %v1880
      %v1882 = vrot.slane %v1747, 1
      %v1883 = vsel %vm693, %v1880, %v1882
      %v1884 = vrot.slane %v1748, 1
      %v1885 = vsel %vm693, %v1882, %v1884
      %v1886 = vrot.slane %v1749, 1
      %v1887 = vsel %vm693, %v1884, %v1886
      %v1888 = vrot.slane %v1750, 1
      %v1889 = vsel %vm693, %v1886, %v1888
      %v1890 = vrot.slane %v1751, 1
      %v1891 = vsel %vm693, %v1888, %v1890
      %v1892 = vrot.slane %v1752, 1
      %v1893 = vsel %vm693, %v1890, %v1892
      %v1894 = vrot.slane %v1753, 1
      %v1895 = vsel %vm693, %v1892, %v1894
      %1896 = vrot.lane.b32.xlu0 %v1875, 64
      %v1897 = vpop.permute.xlu0 %1896
      %1898 = vrot.lane.b32.xlu0 %v1877, 64
      %v1899 = vpop.permute.xlu0 %1898
      %1900 = vrot.lane.b32.xlu0 %v1879, 64
      %v1901 = vpop.permute.xlu0 %1900
      %1902 = vrot.lane.b32.xlu0 %v1881, 64
      %v1903 = vpop.permute.xlu0 %1902
      %1904 = vrot.lane.b32.xlu0 %v1883, 64
      %v1905 = vpop.permute.xlu0 %1904
      %1906 = vrot.lane.b32.xlu0 %v1885, 64
      %v1907 = vpop.permute.xlu0 %1906
      %1908 = vrot.lane.b32.xlu0 %v1887, 64
      %v1909 = vpop.permute.xlu0 %1908
      %1910 = vrot.lane.b32.xlu0 %v1889, 64
      %v1911 = vpop.permute.xlu0 %1910
      %1912 = vrot.lane.b32.xlu0 %v1891, 64
      %v1913 = vpop.permute.xlu0 %1912
      %1914 = vrot.lane.b32.xlu0 %v1893, 64
      %v1915 = vpop.permute.xlu0 %1914
      %1916 = vrot.lane.b32.xlu0 %v1895, 64
      %v1917 = vpop.permute.xlu0 %1916
      %1918 = vrot.lane.b32.xlu0 %v1894, 64
      %v1919 = vpop.permute.xlu0 %1918
      %v1923 = vunpack.c.l.b16 %v1688
      %v1924 = vunpack.c.l.b16 %v1689
      %v1925 = vunpack.c.l.b16 %v1690
      %v1926 = vpack.c.b16 %v1722, %v1721
      %v1927 = vpack.c.b16 %v1724, %v1723
      %v1928 = vpack.c.b16 %v1726, %v1725
      %v1929 = vpack.c.b16 %v1728, %v1727
      %v1930 = vpack.c.b16 %v1730, %v1729
      %v1931 = vpack.c.b16 %v1732, %v1731
      %v1932 = vpack.c.b16 %v1734, %v1733
      %v1933 = vpack.c.b16 %v1736, %v1735
      %v1934 = vpack.c.b16 %v1738, %v1737
      %v1935 = vpack.c.b16 %v1740, %v1739
      %v1936 = vpack.c.b16 %v1923, %v1741
      %v1937 = vpack.c.b16 %v1925, %v1924
      %1938 = vrot.lane.b32.xlu0 %v1926, 96
      %v1939 = vpop.permute.xlu0 %1938
      %1940 = vrot.lane.b32.xlu0 %v1927, 96
      %v1941 = vpop.permute.xlu0 %1940
      %1942 = vrot.lane.b32.xlu0 %v1928, 96
      %v1943 = vpop.permute.xlu0 %1942
      %1944 = vrot.lane.b32.xlu0 %v1929, 96
      %v1945 = vpop.permute.xlu0 %1944
      %1946 = vrot.lane.b32.xlu0 %v1930, 96
      %v1947 = vpop.permute.xlu0 %1946
      %1948 = vrot.lane.b32.xlu0 %v1931, 96
      %v1949 = vpop.permute.xlu0 %1948
      %1950 = vrot.lane.b32.xlu0 %v1932, 96
      %v1951 = vpop.permute.xlu0 %1950
      %1952 = vrot.lane.b32.xlu0 %v1933, 96
      %v1953 = vpop.permute.xlu0 %1952
      %1954 = vrot.lane.b32.xlu0 %v1934, 96
      %v1955 = vpop.permute.xlu0 %1954
      %1956 = vrot.lane.b32.xlu0 %v1935, 96
      %v1957 = vpop.permute.xlu0 %1956
      %1958 = vrot.lane.b32.xlu0 %v1936, 96
      %v1959 = vpop.permute.xlu0 %1958
      %1960 = vrot.lane.b32.xlu0 %v1937, 96
      %v1961 = vpop.permute.xlu0 %1960
      %v1963 = vshrl.u32 %v1926, 16
      %v1965 = vshll.u32 %v1926, 16
      %v1967 = vrot.slane %v1965, 1
      %v1968 = vor.u32 %v1963, %v1967
      %v1970 = vshll.u32 %v1927, 16
      %v1972 = vrot.slane %v1970, 1
      %v1973 = vsel %vm538, %v1968, %v1972
      %v1974 = vshrl.u32 %v1927, 16
      %v1976 = vor.u32 %v1974, %v1972
      %v1978 = vshll.u32 %v1928, 16
      %v1980 = vrot.slane %v1978, 1
      %v1981 = vsel %vm538, %v1976, %v1980
      %v1982 = vshrl.u32 %v1928, 16
      %v1984 = vor.u32 %v1982, %v1980
      %v1986 = vshll.u32 %v1929, 16
      %v1988 = vrot.slane %v1986, 1
      %v1989 = vsel %vm538, %v1984, %v1988
      %v1990 = vshrl.u32 %v1929, 16
      %v1992 = vor.u32 %v1990, %v1988
      %v1994 = vshll.u32 %v1930, 16
      %v1996 = vrot.slane %v1994, 1
      %v1997 = vsel %vm538, %v1992, %v1996
      %v1998 = vshrl.u32 %v1930, 16
      %v2000 = vor.u32 %v1998, %v1996
      %v2002 = vshll.u32 %v1931, 16
      %v2004 = vrot.slane %v2002, 1
      %v2005 = vsel %vm538, %v2000, %v2004
      %v2006 = vshrl.u32 %v1931, 16
      %v2008 = vor.u32 %v2006, %v2004
      %v2010 = vshll.u32 %v1932, 16
      %v2012 = vrot.slane %v2010, 1
      %v2013 = vsel %vm538, %v2008, %v2012
      %v2014 = vshrl.u32 %v1932, 16
      %v2016 = vor.u32 %v2014, %v2012
      %v2018 = vshll.u32 %v1933, 16
      %v2020 = vrot.slane %v2018, 1
      %v2021 = vsel %vm538, %v2016, %v2020
      %v2022 = vshrl.u32 %v1933, 16
      %v2024 = vor.u32 %v2022, %v2020
      %v2026 = vshll.u32 %v1934, 16
      %v2028 = vrot.slane %v2026, 1
      %v2029 = vsel %vm538, %v2024, %v2028
      %v2030 = vshrl.u32 %v1934, 16
      %v2032 = vor.u32 %v2030, %v2028
      %v2034 = vshll.u32 %v1935, 16
      %v2036 = vrot.slane %v2034, 1
      %v2037 = vsel %vm538, %v2032, %v2036
      %v2038 = vshrl.u32 %v1935, 16
      %v2040 = vor.u32 %v2038, %v2036
      %v2042 = vshll.u32 %v1936, 16
      %v2044 = vrot.slane %v2042, 1
      %v2045 = vsel %vm538, %v2040, %v2044
      %v2046 = vshrl.u32 %v1936, 16
      %v2048 = vor.u32 %v2046, %v2044
      %v2050 = vshll.u32 %v1937, 16
      %v2052 = vrot.slane %v2050, 1
      %v2053 = vsel %vm538, %v2048, %v2052
      %v2054 = vshrl.u32 %v1937, 16
      %v2056 = vor.u32 %v2054, %v2052
      %v2057 = vrot.slane %v1926, 1
      %v2058 = vrot.slane %v1927, 1
      %v2059 = vsel %vm693, %v2057, %v2058
      %v2060 = vrot.slane %v1928, 1
      %v2061 = vsel %vm693, %v2058, %v2060
      %v2062 = vrot.slane %v1929, 1
      %v2063 = vsel %vm693, %v2060, %v2062
      %v2064 = vrot.slane %v1930, 1
      %v2065 = vsel %vm693, %v2062, %v2064
      %v2066 = vrot.slane %v1931, 1
      %v2067 = vsel %vm693, %v2064, %v2066
      %v2068 = vrot.slane %v1932, 1
      %v2069 = vsel %vm693, %v2066, %v2068
      %v2070 = vrot.slane %v1933, 1
      %v2071 = vsel %vm693, %v2068, %v2070
      %v2072 = vrot.slane %v1934, 1
      %v2073 = vsel %vm693, %v2070, %v2072
      %v2074 = vrot.slane %v1935, 1
      %v2075 = vsel %vm693, %v2072, %v2074
      %v2076 = vrot.slane %v1936, 1
      %v2077 = vsel %vm693, %v2074, %v2076
      %v2078 = vrot.slane %v1937, 1
      %v2079 = vsel %vm693, %v2076, %v2078
      %2080 = vrot.lane.b32.xlu0 %v2059, 32
      %v2081 = vpop.permute.xlu0 %2080
      %2082 = vrot.lane.b32.xlu0 %v2061, 32
      %v2083 = vpop.permute.xlu0 %2082
      %2084 = vrot.lane.b32.xlu0 %v2063, 32
      %v2085 = vpop.permute.xlu0 %2084
      %2086 = vrot.lane.b32.xlu0 %v2065, 32
      %v2087 = vpop.permute.xlu0 %2086
      %2088 = vrot.lane.b32.xlu0 %v2067, 32
      %v2089 = vpop.permute.xlu0 %2088
      %2090 = vrot.lane.b32.xlu0 %v2069, 32
      %v2091 = vpop.permute.xlu0 %2090
      %2092 = vrot.lane.b32.xlu0 %v2071, 32
      %v2093 = vpop.permute.xlu0 %2092
      %2094 = vrot.lane.b32.xlu0 %v2073, 32
      %v2095 = vpop.permute.xlu0 %2094
      %2096 = vrot.lane.b32.xlu0 %v2075, 32
      %v2097 = vpop.permute.xlu0 %2096
      %2098 = vrot.lane.b32.xlu0 %v2077, 32
      %v2099 = vpop.permute.xlu0 %2098
      %2100 = vrot.lane.b32.xlu0 %v2079, 32
      %v2101 = vpop.permute.xlu0 %2100
      %2102 = vrot.lane.b32.xlu0 %v2078, 32
      %v2103 = vpop.permute.xlu0 %2102
      %v2107 = vunpack.c.l.b16 %v1691
      %v2108 = vunpack.c.l.b16 %v1692
      %v2109 = vunpack.c.l.b16 %v1693
      %v2110 = vpack.c.b16 %v1924, %v1923
      %v2111 = vpack.c.b16 %v2107, %v1925
      %v2112 = vpack.c.b16 %v2109, %v2108
      %2113 = vrot.lane.b32.xlu0 %v1745, 64
      %v2114 = vpop.permute.xlu0 %2113
      %2115 = vrot.lane.b32.xlu0 %v1746, 64
      %v2116 = vpop.permute.xlu0 %2115
      %2117 = vrot.lane.b32.xlu0 %v1747, 64
      %v2118 = vpop.permute.xlu0 %2117
      %2119 = vrot.lane.b32.xlu0 %v1748, 64
      %v2120 = vpop.permute.xlu0 %2119
      %2121 = vrot.lane.b32.xlu0 %v1749, 64
      %v2122 = vpop.permute.xlu0 %2121
      %2123 = vrot.lane.b32.xlu0 %v1750, 64
      %v2124 = vpop.permute.xlu0 %2123
      %2125 = vrot.lane.b32.xlu0 %v1751, 64
      %v2126 = vpop.permute.xlu0 %2125
      %2127 = vrot.lane.b32.xlu0 %v1752, 64
      %v2128 = vpop.permute.xlu0 %2127
      %2129 = vrot.lane.b32.xlu0 %v1753, 64
      %v2130 = vpop.permute.xlu0 %2129
      %2131 = vrot.lane.b32.xlu0 %v2110, 64
      %v2132 = vpop.permute.xlu0 %2131
      %2133 = vrot.lane.b32.xlu0 %v2111, 64
      %v2134 = vpop.permute.xlu0 %2133
      %2135 = vrot.lane.b32.xlu0 %v2112, 64
      %v2136 = vpop.permute.xlu0 %2135
      %v2138 = vshll.u32 %v2110, 16
      %v2140 = vrot.slane %v2138, 1
      %v2141 = vsel %vm538, %v1848, %v2140
      %v2142 = vshrl.u32 %v2110, 16
      %v2144 = vor.u32 %v2142, %v2140
      %v2146 = vshll.u32 %v2111, 16
      %v2148 = vrot.slane %v2146, 1
      %v2149 = vsel %vm538, %v2144, %v2148
      %v2150 = vshrl.u32 %v2111, 16
      %v2152 = vor.u32 %v2150, %v2148
      %v2154 = vshll.u32 %v2112, 16
      %v2156 = vrot.slane %v2154, 1
      %v2157 = vsel %vm538, %v2152, %v2156
      %v2158 = vshrl.u32 %v2112, 16
      %v2160 = vor.u32 %v2158, %v2156
      %2161 = vrot.lane.b32.xlu0 %v1789, 96
      %v2162 = vpop.permute.xlu0 %2161
      %2163 = vrot.lane.b32.xlu0 %v1797, 96
      %v2164 = vpop.permute.xlu0 %2163
      %2165 = vrot.lane.b32.xlu0 %v1805, 96
      %v2166 = vpop.permute.xlu0 %2165
      %2167 = vrot.lane.b32.xlu0 %v1813, 96
      %v2168 = vpop.permute.xlu0 %2167
      %2169 = vrot.lane.b32.xlu0 %v1821, 96
      %v2170 = vpop.permute.xlu0 %2169
      %2171 = vrot.lane.b32.xlu0 %v1829, 96
      %v2172 = vpop.permute.xlu0 %2171
      %2173 = vrot.lane.b32.xlu0 %v1837, 96
      %v2174 = vpop.permute.xlu0 %2173
      %2175 = vrot.lane.b32.xlu0 %v1845, 96
      %v2176 = vpop.permute.xlu0 %2175
      %2177 = vrot.lane.b32.xlu0 %v2141, 96
      %v2178 = vpop.permute.xlu0 %2177
      %2179 = vrot.lane.b32.xlu0 %v2149, 96
      %v2180 = vpop.permute.xlu0 %2179
      %2181 = vrot.lane.b32.xlu0 %v2157, 96
      %v2182 = vpop.permute.xlu0 %2181
      %2183 = vrot.lane.b32.xlu0 %v2160, 96
      %v2184 = vpop.permute.xlu0 %2183
      %v2185 = vrot.slane %v2110, 1
      %v2186 = vsel %vm693, %v1894, %v2185
      %v2187 = vrot.slane %v2111, 1
      %v2188 = vsel %vm693, %v2185, %v2187
      %v2189 = vrot.slane %v2112, 1
      %v2190 = vsel %vm693, %v2187, %v2189
      %v2192 = vsel %vm1376, %v1742, %v1850
      %v2194 = vsel %vm1376, %v1743, %v1852
      %v2196 = vsel %vm1376, %v1744, %v1854
      %v2198 = vsel %vm1376, %v1745, %v1856
      %v2200 = vsel %vm1376, %v1746, %v1858
      %v2202 = vsel %vm1376, %v1747, %v1860
      %v2204 = vsel %vm1376, %v1748, %v1862
      %v2206 = vsel %vm1376, %v1749, %v1864
      %v2208 = vsel %vm1376, %v1750, %v1866
      %v2210 = vsel %vm1376, %v1751, %v1868
      %v2212 = vsel %vm1376, %v1752, %v1870
      %v2214 = vsel %vm1376, %v1753, %v1872
      %vm2215 = vcmask 523264
      %v2217 = vsel %vm2215, %v2192, %v1897
      %v2219 = vsel %vm2215, %v2194, %v1899
      %v2221 = vsel %vm2215, %v2196, %v1901
      %v2223 = vsel %vm2215, %v2198, %v1903
      %v2225 = vsel %vm2215, %v2200, %v1905
      %v2227 = vsel %vm2215, %v2202, %v1907
      %v2229 = vsel %vm2215, %v2204, %v1909
      %v2231 = vsel %vm2215, %v2206, %v1911
      %v2233 = vsel %vm2215, %v2208, %v1913
      %v2235 = vsel %vm2215, %v2210, %v1915
      %v2237 = vsel %vm2215, %v2212, %v1917
      %v2239 = vsel %vm2215, %v2214, %v1919
      %vm2240 = vcmask 785408
      %v2242 = vsel %vm2240, %v2217, %v1939
      %v2245 = vsel %vm2240, %v2219, %v1941
      %v2248 = vsel %vm2240, %v2221, %v1943
      %v2251 = vsel %vm2240, %v2223, %v1945
      %v2254 = vsel %vm2240, %v2225, %v1947
      %v2257 = vsel %vm2240, %v2227, %v1949
      %v2260 = vsel %vm2240, %v2229, %v1951
      %v2263 = vsel %vm2240, %v2231, %v1953
      %v2266 = vsel %vm2240, %v2233, %v1955
      %v2269 = vsel %vm2240, %v2235, %v1957
      %v2272 = vsel %vm2240, %v2237, %v1959
      %v2275 = vsel %vm2240, %v2239, %v1961
      %v2279 = vsel %vm1376, %v1973, %v2081
      %v2282 = vsel %vm1376, %v1981, %v2083
      %v2285 = vsel %vm1376, %v1989, %v2085
      %v2288 = vsel %vm1376, %v1997, %v2087
      %v2291 = vsel %vm1376, %v2005, %v2089
      %v2294 = vsel %vm1376, %v2013, %v2091
      %v2297 = vsel %vm1376, %v2021, %v2093
      %v2300 = vsel %vm1376, %v2029, %v2095
      %v2303 = vsel %vm1376, %v2037, %v2097
      %v2306 = vsel %vm1376, %v2045, %v2099
      %v2309 = vsel %vm1376, %v2053, %v2101
      %v2312 = vsel %vm1376, %v2056, %v2103
      %v2314 = vsel %vm2215, %v2279, %v2114
      %v2316 = vsel %vm2215, %v2282, %v2116
      %v2318 = vsel %vm2215, %v2285, %v2118
      %v2320 = vsel %vm2215, %v2288, %v2120
      %v2322 = vsel %vm2215, %v2291, %v2122
      %v2324 = vsel %vm2215, %v2294, %v2124
      %v2326 = vsel %vm2215, %v2297, %v2126
      %v2328 = vsel %vm2215, %v2300, %v2128
      %v2330 = vsel %vm2215, %v2303, %v2130
      %v2332 = vsel %vm2215, %v2306, %v2132
      %v2334 = vsel %vm2215, %v2309, %v2134
      %v2336 = vsel %vm2215, %v2312, %v2136
      %v2338 = vsel %vm2240, %v2314, %v2162
      %v2341 = vsel %vm2240, %v2316, %v2164
      %v2344 = vsel %vm2240, %v2318, %v2166
      %v2347 = vsel %vm2240, %v2320, %v2168
      %v2350 = vsel %vm2240, %v2322, %v2170
      %v2353 = vsel %vm2240, %v2324, %v2172
      %v2356 = vsel %vm2240, %v2326, %v2174
      %v2359 = vsel %vm2240, %v2328, %v2176
      %v2362 = vsel %vm2240, %v2330, %v2178
      %v2365 = vsel %vm2240, %v2332, %v2180
      %v2368 = vsel %vm2240, %v2334, %v2182
      %v2371 = vsel %vm2240, %v2336, %v2184
      %v2374 = vperm.slane %v422, 0
      %v2412 = vunpack.c.l.b16 %v386
      %v2413 = vunpack.c.l.b16 %v387
      %v2414 = vunpack.c.l.b16 %v388
      %v2415 = vunpack.c.l.b16 %v389
      %v2416 = vunpack.c.l.b16 %v390
      %v2417 = vunpack.c.l.b16 %v391
      %v2418 = vunpack.c.l.b16 %v392
      %v2419 = vunpack.c.l.b16 %v393
      %v2420 = vunpack.c.l.b16 %v394
      %v2421 = vunpack.c.l.b16 %v395
      %v2422 = vunpack.c.l.b16 %v396
      %v2423 = vunpack.c.l.b16 %v397
      %v2424 = vunpack.c.l.b16 %v398
      %v2425 = vunpack.c.l.b16 %v399
      %v2426 = vunpack.c.l.b16 %v400
      %v2427 = vunpack.c.l.b16 %v401
      %v2428 = vunpack.c.l.b16 %v402
      %v2429 = vunpack.c.l.b16 %v403
      %v2430 = vunpack.c.l.b16 %v404
      %v2431 = vunpack.c.l.b16 %v405
      %v2432 = vunpack.c.l.b16 %v406
      %v2433 = vunpack.c.l.b16 %v407
      %v2434 = vunpack.c.l.b16 %v408
      %v2435 = vunpack.c.l.b16 %v409
      %v2436 = vunpack.c.l.b16 %v410
      %v2437 = vunpack.c.l.b16 %v411
      %v2438 = vunpack.c.l.b16 %v412
      %v2439 = vunpack.c.l.b16 %v413
      %v2440 = vunpack.c.l.b16 %v414
      %v2441 = vunpack.c.l.b16 %v415
      %v2442 = vunpack.c.l.b16 %v416
      %v2443 = vunpack.c.l.b16 %v417
      %v2444 = vunpack.c.l.b16 %v418
      %v2445 = vunpack.c.l.b16 %v419
      %v2446 = vunpack.c.l.b16 %v420
      %v2447 = vunpack.c.l.b16 %v421
      %v2448 = vpack.c.b16 %v2413, %v2412
      %v2449 = vpack.c.b16 %v2415, %v2414
      %v2450 = vpack.c.b16 %v2417, %v2416
      %v2451 = vpack.c.b16 %v2419, %v2418
      %v2452 = vpack.c.b16 %v2421, %v2420
      %v2453 = vpack.c.b16 %v2423, %v2422
      %v2454 = vpack.c.b16 %v2425, %v2424
      %v2455 = vpack.c.b16 %v2427, %v2426
      %v2456 = vpack.c.b16 %v2429, %v2428
      %v2457 = vpack.c.b16 %v2431, %v2430
      %v2458 = vpack.c.b16 %v2433, %v2432
      %v2459 = vpack.c.b16 %v2435, %v2434
      %v2460 = vpack.c.b16 %v2437, %v2436
      %v2461 = vpack.c.b16 %v2439, %v2438
      %v2462 = vpack.c.b16 %v2441, %v2440
      %v2463 = vpack.c.b16 %v2443, %v2442
      %v2464 = vpack.c.b16 %v2445, %v2444
      %v2465 = vpack.c.b16 %v2447, %v2446
      %v2485 = vsel %vm1376, %v1881, 0
      %v2488 = vsel %vm1376, %v1883, 0
      %v2491 = vsel %vm1376, %v1885, 0
      %v2494 = vsel %vm1376, %v1887, 0
      %v2497 = vsel %vm1376, %v1889, 0
      %v2500 = vsel %vm1376, %v1891, 0
      %v2503 = vsel %vm1376, %v1893, 0
      %v2506 = vsel %vm1376, %v1895, 0
      %v2509 = vsel %vm1376, %v2186, 0
      %v2512 = vsel %vm1376, %v2188, 0
      %v2515 = vsel %vm1376, %v2190, 0
      %v2518 = vsel %vm1376, %v2189, 0
      %2520 = vmatpush.bf16.msra.mxu0 %v2455
      %2521 = vmatpush.bf16.msra.mxu0 %v2454
      %2522 = vmatpush.bf16.msra.mxu0 %v2453
      %2523 = vmatpush.bf16.msra.mxu0 %v2452
      %2524 = vmatpush.bf16.msra.mxu0 %v2451
      %2525 = vmatpush.bf16.msra.mxu0 %v2450
      %2526 = vmatpush.bf16.msra.mxu0 %v2449
      %2527 = vmatpush.bf16.msra.mxu0 %v2448
      %2528 = vmatmul.bf16.gmra.mxu0 %v2242
      %v2529 = vpop.f32.mrf.mxu0
      %v2530 = vadd.f32 %v2374, %v2529
      %v2531 = vpop.f32.mrf.mxu0
      %v2532 = vadd.f32 %v2374, %v2531
      %2533 = vmatmul.bf16.gmra.mxu0 %v2245
      %v2534 = vpop.f32.mrf.mxu0
      %v2535 = vadd.f32 %v2374, %v2534
      %v2536 = vpop.f32.mrf.mxu0
      %v2537 = vadd.f32 %v2374, %v2536
      %2538 = vmatmul.bf16.gmra.mxu0 %v2248
      %v2539 = vpop.f32.mrf.mxu0
      %v2540 = vadd.f32 %v2374, %v2539
      %v2541 = vpop.f32.mrf.mxu0
      %v2542 = vadd.f32 %v2374, %v2541
      %2543 = vmatmul.bf16.gmra.mxu0 %v2251
      %v2544 = vpop.f32.mrf.mxu0
      %v2545 = vadd.f32 %v2374, %v2544
      %v2546 = vpop.f32.mrf.mxu0
      %v2547 = vadd.f32 %v2374, %v2546
      %2548 = vmatmul.bf16.gmra.mxu0 %v2254
      %v2549 = vpop.f32.mrf.mxu0
      %v2550 = vadd.f32 %v2374, %v2549
      %v2551 = vpop.f32.mrf.mxu0
      %v2552 = vadd.f32 %v2374, %v2551
      %2553 = vmatmul.bf16.gmra.mxu0 %v2257
      %v2554 = vpop.f32.mrf.mxu0
      %v2555 = vadd.f32 %v2374, %v2554
      %v2556 = vpop.f32.mrf.mxu0
      %v2557 = vadd.f32 %v2374, %v2556
      %2558 = vmatmul.bf16.gmra.mxu0 %v2260
      %v2559 = vpop.f32.mrf.mxu0
      %v2560 = vadd.f32 %v2374, %v2559
      %v2561 = vpop.f32.mrf.mxu0
      %v2562 = vadd.f32 %v2374, %v2561
      %2563 = vmatmul.bf16.gmra.mxu0 %v2263
      %v2564 = vpop.f32.mrf.mxu0
      %v2565 = vadd.f32 %v2374, %v2564
      %v2566 = vpop.f32.mrf.mxu0
      %v2567 = vadd.f32 %v2374, %v2566
      %2568 = vmatmul.bf16.gmra.mxu0 %v2266
      %v2569 = vpop.f32.mrf.mxu0
      %v2570 = vadd.f32 %v2374, %v2569
      %v2571 = vpop.f32.mrf.mxu0
      %v2572 = vadd.f32 %v2374, %v2571
      %2573 = vmatmul.bf16.gmra.mxu0 %v2269
      %v2574 = vpop.f32.mrf.mxu0
      %v2575 = vadd.f32 %v2374, %v2574
      %v2576 = vpop.f32.mrf.mxu0
      %v2577 = vadd.f32 %v2374, %v2576
      %2578 = vmatmul.bf16.gmra.mxu0 %v2272
      %v2579 = vpop.f32.mrf.mxu0
      %v2580 = vadd.f32 %v2374, %v2579
      %v2581 = vpop.f32.mrf.mxu0
      %v2582 = vadd.f32 %v2374, %v2581
      %2583 = vmatmul.bf16.gmra.mxu0 %v2275
      %v2584 = vpop.f32.mrf.mxu0
      %v2585 = vadd.f32 %v2374, %v2584
      %v2586 = vpop.f32.mrf.mxu0
      %v2587 = vadd.f32 %v2374, %v2586
      %2588 = vdwg.mxu0
      %2589 = vmatpush.bf16.msra.mxu0 %v2463
      %2590 = vmatpush.bf16.msra.mxu0 %v2462
      %2591 = vmatpush.bf16.msra.mxu0 %v2461
      %2592 = vmatpush.bf16.msra.mxu0 %v2460
      %2593 = vmatpush.bf16.msra.mxu0 %v2459
      %2594 = vmatpush.bf16.msra.mxu0 %v2458
      %2595 = vmatpush.bf16.msra.mxu0 %v2457
      %2596 = vmatpush.bf16.msra.mxu0 %v2456
      %2597 = vmatmul.bf16.gmra.mxu0 %v2338
      %v2598 = vpop.f32.mrf.mxu0
      %v2599 = vadd.f32 %v2530, %v2598
      %v2600 = vpop.f32.mrf.mxu0
      %v2601 = vadd.f32 %v2532, %v2600
      %2602 = vmatmul.bf16.gmra.mxu0 %v2341
      %v2603 = vpop.f32.mrf.mxu0
      %v2604 = vadd.f32 %v2535, %v2603
      %v2605 = vpop.f32.mrf.mxu0
      %v2606 = vadd.f32 %v2537, %v2605
      %2607 = vmatmul.bf16.gmra.mxu0 %v2344
      %v2608 = vpop.f32.mrf.mxu0
      %v2609 = vadd.f32 %v2540, %v2608
      %v2610 = vpop.f32.mrf.mxu0
      %v2611 = vadd.f32 %v2542, %v2610
      %2612 = vmatmul.bf16.gmra.mxu0 %v2347
      %v2613 = vpop.f32.mrf.mxu0
      %v2614 = vadd.f32 %v2545, %v2613
      %v2615 = vpop.f32.mrf.mxu0
      %v2616 = vadd.f32 %v2547, %v2615
      %2617 = vmatmul.bf16.gmra.mxu0 %v2350
      %v2618 = vpop.f32.mrf.mxu0
      %v2619 = vadd.f32 %v2550, %v2618
      %v2620 = vpop.f32.mrf.mxu0
      %v2621 = vadd.f32 %v2552, %v2620
      %2622 = vmatmul.bf16.gmra.mxu0 %v2353
      %v2623 = vpop.f32.mrf.mxu0
      %v2624 = vadd.f32 %v2555, %v2623
      %v2625 = vpop.f32.mrf.mxu0
      %v2626 = vadd.f32 %v2557, %v2625
      %2627 = vmatmul.bf16.gmra.mxu0 %v2356
      %v2628 = vpop.f32.mrf.mxu0
      %v2629 = vadd.f32 %v2560, %v2628
      %v2630 = vpop.f32.mrf.mxu0
      %v2631 = vadd.f32 %v2562, %v2630
      %2632 = vmatmul.bf16.gmra.mxu0 %v2359
      %v2633 = vpop.f32.mrf.mxu0
      %v2634 = vadd.f32 %v2565, %v2633
      %v2635 = vpop.f32.mrf.mxu0
      %v2636 = vadd.f32 %v2567, %v2635
      %2637 = vmatmul.bf16.gmra.mxu0 %v2362
      %v2638 = vpop.f32.mrf.mxu0
      %v2639 = vadd.f32 %v2570, %v2638
      %v2640 = vpop.f32.mrf.mxu0
      %v2641 = vadd.f32 %v2572, %v2640
      %2642 = vmatmul.bf16.gmra.mxu0 %v2365
      %v2643 = vpop.f32.mrf.mxu0
      %v2644 = vadd.f32 %v2575, %v2643
      %v2645 = vpop.f32.mrf.mxu0
      %v2646 = vadd.f32 %v2577, %v2645
      %2647 = vmatmul.bf16.gmra.mxu0 %v2368
      %v2648 = vpop.f32.mrf.mxu0
      %v2649 = vadd.f32 %v2580, %v2648
      %v2650 = vpop.f32.mrf.mxu0
      %v2651 = vadd.f32 %v2582, %v2650
      %2652 = vmatmul.bf16.gmra.mxu0 %v2371
      %v2653 = vpop.f32.mrf.mxu0
      %v2654 = vadd.f32 %v2585, %v2653
      %v2655 = vpop.f32.mrf.mxu0
      %v2656 = vadd.f32 %v2587, %v2655
      %2657 = vdwg.mxu0
      %2658 = vmatpush.bf16.msra.mxu0 0
      %2659 = vmatpush.bf16.msra.mxu0 0
      %2660 = vmatpush.bf16.msra.mxu0 0
      %2661 = vmatpush.bf16.msra.mxu0 0
      %2662 = vmatpush.bf16.msra.mxu0 0
      %2663 = vmatpush.bf16.msra.mxu0 0
      %2664 = vmatpush.bf16.msra.mxu0 %v2465
      %2665 = vmatpush.bf16.msra.mxu0 %v2464
      %2666 = vmatmul.bf16.gmra.mxu0 %v2485
      %v2667 = vpop.f32.mrf.mxu0
      %v2668 = vadd.f32 %v2599, %v2667
      %v2669 = vpop.f32.mrf.mxu0
      %v2670 = vadd.f32 %v2601, %v2669
      %2671 = vmatmul.bf16.gmra.mxu0 %v2488
      %v2672 = vpop.f32.mrf.mxu0
      %v2673 = vadd.f32 %v2604, %v2672
      %v2674 = vpop.f32.mrf.mxu0
      %v2675 = vadd.f32 %v2606, %v2674
      %2676 = vmatmul.bf16.gmra.mxu0 %v2491
      %v2677 = vpop.f32.mrf.mxu0
      %v2678 = vadd.f32 %v2609, %v2677
      %v2679 = vpop.f32.mrf.mxu0
      %v2680 = vadd.f32 %v2611, %v2679
      %2681 = vmatmul.bf16.gmra.mxu0 %v2494
      %v2682 = vpop.f32.mrf.mxu0
      %v2683 = vadd.f32 %v2614, %v2682
      %v2684 = vpop.f32.mrf.mxu0
      %v2685 = vadd.f32 %v2616, %v2684
      %2686 = vmatmul.bf16.gmra.mxu0 %v2497
      %v2687 = vpop.f32.mrf.mxu0
      %v2688 = vadd.f32 %v2619, %v2687
      %v2689 = vpop.f32.mrf.mxu0
      %v2690 = vadd.f32 %v2621, %v2689
      %2691 = vmatmul.bf16.gmra.mxu0 %v2500
      %v2692 = vpop.f32.mrf.mxu0
      %v2693 = vadd.f32 %v2624, %v2692
      %v2694 = vpop.f32.mrf.mxu0
      %v2695 = vadd.f32 %v2626, %v2694
      %2696 = vmatmul.bf16.gmra.mxu0 %v2503
      %v2697 = vpop.f32.mrf.mxu0
      %v2698 = vadd.f32 %v2629, %v2697
      %v2699 = vpop.f32.mrf.mxu0
      %v2700 = vadd.f32 %v2631, %v2699
      %2701 = vmatmul.bf16.gmra.mxu0 %v2506
      %v2702 = vpop.f32.mrf.mxu0
      %v2703 = vadd.f32 %v2634, %v2702
      %v2704 = vpop.f32.mrf.mxu0
      %v2705 = vadd.f32 %v2636, %v2704
      %2706 = vmatmul.bf16.gmra.mxu0 %v2509
      %v2707 = vpop.f32.mrf.mxu0
      %v2708 = vadd.f32 %v2639, %v2707
      %v2709 = vpop.f32.mrf.mxu0
      %v2710 = vadd.f32 %v2641, %v2709
      %2711 = vmatmul.bf16.gmra.mxu0 %v2512
      %v2712 = vpop.f32.mrf.mxu0
      %v2713 = vadd.f32 %v2644, %v2712
      %v2714 = vpop.f32.mrf.mxu0
      %v2715 = vadd.f32 %v2646, %v2714
      %2716 = vmatmul.bf16.gmra.mxu0 %v2515
      %v2717 = vpop.f32.mrf.mxu0
      %v2718 = vadd.f32 %v2649, %v2717
      %v2719 = vpop.f32.mrf.mxu0
      %v2720 = vadd.f32 %v2651, %v2719
      %2721 = vmatmul.bf16.gmra.mxu0 %v2518
      %v2722 = vpop.f32.mrf.mxu0
      %v2723 = vadd.f32 %v2654, %v2722
      %v2724 = vpop.f32.mrf.mxu0
      %v2725 = vadd.f32 %v2656, %v2724
      %2726 = vdwg.mxu0
      %v2727 = vmax.f32 %v2668, 0.0
      %v2728 = vmax.f32 %v2670, 0.0
      %v2729 = vmax.f32 %v2673, 0.0
      %v2730 = vmax.f32 %v2675, 0.0
      %v2731 = vmax.f32 %v2678, 0.0
      %v2732 = vmax.f32 %v2680, 0.0
      %v2733 = vmax.f32 %v2683, 0.0
      %v2734 = vmax.f32 %v2685, 0.0
      %v2735 = vmax.f32 %v2688, 0.0
      %v2736 = vmax.f32 %v2690, 0.0
      %v2737 = vmax.f32 %v2693, 0.0
      %v2738 = vmax.f32 %v2695, 0.0
      %v2739 = vmax.f32 %v2698, 0.0
      %v2740 = vmax.f32 %v2700, 0.0
      %v2741 = vmax.f32 %v2703, 0.0
      %v2742 = vmax.f32 %v2705, 0.0
      %v2743 = vmax.f32 %v2708, 0.0
      %v2744 = vmax.f32 %v2710, 0.0
      %v2745 = vmax.f32 %v2713, 0.0
      %v2746 = vmax.f32 %v2715, 0.0
      %v2747 = vmax.f32 %v2718, 0.0
      %v2748 = vmax.f32 %v2720, 0.0
      %v2749 = vmax.f32 %v2723, 0.0
      %v2750 = vmax.f32 %v2725, 0.0
      %vm2751 = vcmask 1043456
      %v2752 = vsel %vm2751, %v2750, 0.0
      %2753 = vst.msk [vmem:[%s262] sm:$0xff] %vm1376, %v2727
      %2754 = vst.msk [vmem:[%s262 + $0x8] sm:$0xff] %vm1376, %v2728
      %2755 = vst.msk [vmem:[%s262 + $0x10] sm:$0xff] %vm1376, %v2729
      %2756 = vst.msk [vmem:[%s262 + $0x18] sm:$0xff] %vm1376, %v2730
      %2757 = vst.msk [vmem:[%s262 + $0x20] sm:$0xff] %vm1376, %v2731
      %2758 = vst.msk [vmem:[%s262 + $0x28] sm:$0xff] %vm1376, %v2732
      %2759 = vst.msk [vmem:[%s262 + $0x30] sm:$0xff] %vm1376, %v2733
      %2760 = vst.msk [vmem:[%s262 + $0x38] sm:$0xff] %vm1376, %v2734
      %2761 = vst.msk [vmem:[%s262 + $0x40] sm:$0xff] %vm1376, %v2735
      %2762 = vst.msk [vmem:[%s262 + $0x48] sm:$0xff] %vm1376, %v2736
      %2763 = vst.msk [vmem:[%s262 + $0x50] sm:$0xff] %vm1376, %v2737
      %2764 = vst.msk [vmem:[%s262 + $0x58] sm:$0xff] %vm1376, %v2738
      %2765 = vst.msk [vmem:[%s262 + $0x60] sm:$0xff] %vm1376, %v2739
      %2766 = vst.msk [vmem:[%s262 + $0x68] sm:$0xff] %vm1376, %v2740
      %2767 = vst.msk [vmem:[%s262 + $0x70] sm:$0xff] %vm1376, %v2741
      %2768 = vst.msk [vmem:[%s262 + $0x78] sm:$0xff] %vm1376, %v2742
      %2769 = vst.msk [vmem:[%s262 + $0x80] sm:$0xff] %vm1376, %v2743
      %2770 = vst.msk [vmem:[%s262 + $0x88] sm:$0xff] %vm1376, %v2744
      %2771 = vst.msk [vmem:[%s262 + $0x90] sm:$0xff] %vm1376, %v2745
      %2772 = vst.msk [vmem:[%s262 + $0x98] sm:$0xff] %vm1376, %v2746
      %2773 = vst.msk [vmem:[%s262 + $0xa0] sm:$0xff] %vm1376, %v2747
      %2774 = vst.msk [vmem:[%s262 + $0xa8] sm:$0xff] %vm1376, %v2748
      %2775 = vst.msk [vmem:[%s262 + $0xb0] sm:$0xff] %vm1376, %v2749
      %2776 = vst.msk [vmem:[%s262 + $0xb8] sm:$0xff] %vm1376, %v2752
      %s2777 = smul.u32 8, %s21
      %p2778 = scmp.lt.s32.totalorder %s20, 1
      %s2779 = scalar_select %p2778, %s20, 1
      %p2780 = scmp.lt.s32.totalorder %s2777, 15
      %s2781 = scalar_select %p2780, %s2777, 15
      %s2782 = smul.addr %s2781, 3
      %s2783 = smul.addr %s2779, 48
      %s2784 = sadd.s32 %s2782, %s2783
      %s2785 = smul.addr %s2784, 8
      %s2786 = scalar_lea.vmem %s5, %s2785
      // Predicated region
      $region41: #{conv_block_forward.1} parent=39 // pred_check
        %p2787 = pneg %p160
      $region42: #{conv_block_forward.1} parent=39 // pred_check_branch
        %2789 = sbr.rel (%p2787) target = $region44
      $region43: #{conv_block_forward.1} parent=39 // pred_region
        %s2790 = smul.u32 8, %s21
      $region44: #{conv_block_forward.1} parent=39 // pred_fallthru
        _
    $region40: #{conv_block_forward.1} parent=5 // pred_fallthru
      _
    %p2791 = scmp.le.s32.totalorder 2, %s11
    // Predicated region
    $region45: #{conv_block_forward.1} parent=5 // pred_check
      %p2792 = pneg %p2791
    $region46: #{conv_block_forward.1} parent=5 // pred_check_branch
      %2794 = sbr.rel (%p2792) target = $region48
    $region47: #{conv_block_forward.1} parent=5 // pred_region
      %s2795 = ssub.s32 %s11, 2
      // Predicated region
      $region49: #{conv_block_forward.1} parent=47 // pred_check
        %p2796 = pneg %p166
      $region50: #{conv_block_forward.1} parent=47 // pred_check_branch
        %2798 = sbr.rel (%p2796) target = $region52
      $region51: #{conv_block_forward.1} parent=47 // pred_region
        %s2799 = smul.u32 8, %s23
        %p2800 = scmp.lt.s32.totalorder %s22, 1
        %s2801 = scalar_select %p2800, %s22, 1
        %p2802 = scmp.lt.s32.totalorder %s2799, 15
        %s2803 = scalar_select %p2802, %s2799, 15
        %s2804 = smul.addr %s2803, 3
        %s2805 = smul.addr %s2801, 48
        %s2806 = sadd.s32 %s2804, %s2805
        %s2807 = smul.addr %s2806, 8
        %s2808 = scalar_lea.vmem %s5, %s2807
      $region52: #{conv_block_forward.1} parent=47 // pred_fallthru
        _
    $region48: #{conv_block_forward.1} parent=5 // pred_fallthru
      _
  $region6: #{conv_block_forward.1} parent=0 // loop_footer
    %s15 = sadd.s32 1, %s11
  $region7: #{conv_block_forward.1} parent=0 // loop_footer_branch
    %10 = sbr.rel target = $region3
  $region8: #{conv_block_forward.1} parent=0 // loop_exit
    _

</llo_original>
